<compile_context>
chip_gen: v7x
topology: tpu7x:2x2x1
jax: 0.10.0
libtpu: 0.0.40
codegen_flags: <defaults>
</compile_context>

<pallas_src>
import functools

import numpy as np
import jax
import jax.numpy as jnp
from jax import lax
from jax.experimental import pallas as pl
from jax.experimental.pallas import tpu as pltpu

EPS = 1e-5
LRELU_SLOPE = 0.01  # F.leaky_relu default negative_slope


# ---------------------------------------------------------------------------
# Generation-aware compiler params
# ---------------------------------------------------------------------------
@functools.lru_cache(maxsize=None)
def _vmem_limit_bytes():
    cap = None
    try:
        cap = getattr(pltpu.get_tpu_info(), "vmem_capacity_bytes", None)
    except Exception:
        cap = None
    if not cap:
        cap = 64 * 1024 * 1024  # conservative fallback (safe even on v7x)
    # leave headroom for Mosaic internal scratch / pipeline buffers
    return int(min(cap * 3 // 4, 112 * 1024 * 1024))


def _compiler_params(dimension_semantics):
    return pltpu.CompilerParams(
        dimension_semantics=dimension_semantics,
        vmem_limit_bytes=_vmem_limit_bytes(),
    )


# ---------------------------------------------------------------------------
# In-kernel helpers (values only, all 2D: (pixels, channels), channels on lanes)
# ---------------------------------------------------------------------------
def _instance_norm_lrelu(v, npix):
    """affine=False InstanceNorm (biased var) + LeakyReLU over all rows of v (f32)."""
    inv_n = 1.0 / npix
    mean = jnp.sum(v, axis=0, keepdims=True) * inv_n
    d = v - mean
    var = jnp.sum(d * d, axis=0, keepdims=True) * inv_n
    y = d * lax.rsqrt(var + EPS)
    return jnp.where(y >= 0, y, LRELU_SLOPE * y)


def _conv3x3_deepk(src_bf16, w_ref, mLb, mRb, W, M):
    """3x3 'same' conv (zero pad) on compact row-major (M, C) bf16 data.

    Implemented as 3 deep-K matmuls: for each kernel row ky the three dx-shifted copies are
    lane-concatenated (K = 3*C) and multiplied against w_ref[ky] (3*C, Cout).  Out-of-image
    rows come from a small in-VMEM zero pad; column wrap-around of the +-1 dx shifts is
    removed by the 0/1 masks mLb (w==0) / mRb (w==W-1).
    """
    C = src_bf16.shape[1]
    zp = jnp.zeros((W + 1, C), jnp.bfloat16)
    sp = jnp.concatenate([zp, src_bf16, zp], axis=0)  # (M + 2W + 2, C)
    acc = jnp.zeros((M, w_ref.shape[2]), jnp.float32)
    for ky in range(3):
        base = ky * W
        op = jnp.concatenate(
            [sp[base:base + M, :] * mLb,          # dx = -1 (masked at w == 0)
             sp[base + 1:base + 1 + M, :],        # dx =  0
             sp[base + 2:base + 2 + M, :] * mRb], # dx = +1 (masked at w == W-1)
            axis=1)                               # (M, 3*C) bf16
        acc = acc + jnp.dot(op, w_ref[ky], preferred_element_type=jnp.float32)
    return acc


def _upsample_w_2x(z, mL, mR):
    """2x bilinear upsample (align_corners=False) along W on compact (M=H*W, C) f32 data.

    Returns (M, 2C) with lanes [even output column | odd output column]; the wrapper-side
    reshape (N, M, 2C) -> (N, 2M, C) is bitcast-equivalent and yields the interleaved layout.
    mL / mR are (M,1) f32: 0 where w==0 / w==W-1 (used for edge clamping).
    """
    shiftm = jnp.concatenate([z[:1], z[:-1]], axis=0)   # z[f-1] (wrap fixed by mask)
    shiftp = jnp.concatenate([z[1:], z[-1:]], axis=0)   # z[f+1]
    left = mL * shiftm + (1.0 - mL) * z                 # clamp at w == 0
    right = mR * shiftp + (1.0 - mR) * z                # clamp at w == W-1
    even = 0.25 * left + 0.75 * z
    odd = 0.75 * z + 0.25 * right
    return jnp.concatenate([even, odd], axis=1)


# ---------------------------------------------------------------------------
# Pallas kernels
# ---------------------------------------------------------------------------
def _stage1_kernel(x_ref, w1_ref, w2_ref, mL_ref, mR_ref, o_ref, *, W):
    """conv1(3x3) -> IN -> lrelu -> conv2(1x1) -> W-upsample.  One image per grid step."""
    M = x_ref.shape[0]
    mLf = mL_ref[...]                               # (M,1) f32
    mRf = mR_ref[...]
    acc = _conv3x3_deepk(x_ref[...], w1_ref,
                         mLf.astype(jnp.bfloat16), mRf.astype(jnp.bfloat16), W, M)
    xn = _instance_norm_lrelu(acc, float(M))
    z = jnp.dot(xn.astype(jnp.bfloat16), w2_ref[...],
                preferred_element_type=jnp.float32)  # 1x1 conv at LOW resolution (exact reorder)
    o_ref[...] = _upsample_w_2x(z, mLf, mRf).astype(o_ref.dtype)


def _stage1_first_kernel(x_ref, w2_ref, mL_ref, mR_ref, o_ref):
    """first=True path: conv2(1x1) at low resolution -> W-upsample."""
    z = jnp.dot(x_ref[...], w2_ref[...], preferred_element_type=jnp.float32)
    o_ref[...] = _upsample_w_2x(z, mL_ref[...], mR_ref[...]).astype(o_ref.dtype)


def _h_upsample_kernel(a_ref, x_ref, o_ref):
    """out = A @ x[n] : 2x bilinear row upsample on a lane-dense (H, 2W*C) view."""
    o_ref[...] = jnp.dot(a_ref[...], x_ref[...],
                         preferred_element_type=jnp.float32).astype(o_ref.dtype)


def _stage3_kernel(y2_ref, prev_ref, w3_ref, mL_ref, mR_ref, o_ref, *, W2):
    """IN+lrelu on upsampled y, conv3(3x3) over concat([prev, y]) (lane-concat), IN+lrelu."""
    M2 = y2_ref.shape[0]
    yn = _instance_norm_lrelu(y2_ref[...].astype(jnp.float32), float(M2))
    buf = jnp.concatenate([prev_ref[...], yn.astype(jnp.bfloat16)], axis=1)  # (M2, 2*Cp)
    mLb = mL_ref[...].astype(jnp.bfloat16)
    mRb = mR_ref[...].astype(jnp.bfloat16)
    acc = _conv3x3_deepk(buf, w3_ref, mLb, mRb, W2, M2)
    o_ref[...] = _instance_norm_lrelu(acc, float(M2)).astype(o_ref.dtype)


# ---------------------------------------------------------------------------
# Host-side helpers: weight repack, masks, interpolation matrix
# ---------------------------------------------------------------------------
def _conv3x3_weight_deepk(w):
    """PyTorch (Cout, Cin, 3, 3) -> (3, 3*Cin, Cout); row order inside slab ky = kx-major."""
    Cout, Cin, _, _ = w.shape
    return jnp.transpose(w, (2, 3, 1, 0)).reshape(3, 3 * Cin, Cout)


def _conv1x1_weight(w):
    return jnp.transpose(w[:, :, 0, 0], (1, 0))  # (Cin, Cout)


def _col_masks(H, W):
    """(H*W, 1) f32 masks: mL = 0 at w==0, mR = 0 at w==W-1 (flat row-major index)."""
    w = np.arange(H * W) % W
    mL = (w != 0).astype(np.float32)[:, None]
    mR = (w != W - 1).astype(np.float32)[:, None]
    return jnp.asarray(mL), jnp.asarray(mR)


def _bilinear_interp_matrix(n_in, n_out):
    """1-D interpolation matrix matching PyTorch bilinear, align_corners=False."""
    A = np.zeros((n_out, n_in), np.float32)
    scale = n_in / n_out
    for i in range(n_out):
        src = max((i + 0.5) * scale - 0.5, 0.0)
        i0 = min(int(np.floor(src)), n_in - 1)
        i1 = min(i0 + 1, n_in - 1)
        l1 = src - i0
        A[i, i0] += 1.0 - l1
        A[i, i1] += l1
    return A


# ---------------------------------------------------------------------------
# Pallas wrappers
# ---------------------------------------------------------------------------
def _stage1(x_nhwc, params, first):
    """x (N,H,W,Cin) -> (N, H*W, 2*Cp) bf16 with lanes [even col | odd col] (W-upsampled)."""
    N, H, W, Cin = x_nhwc.shape
    M = H * W
    Cp = params["w2"].shape[0]
    mL, mR = _col_masks(H, W)
    xf = x_nhwc.reshape(N, M, Cin).astype(jnp.bfloat16)
    w2m = _conv1x1_weight(params["w2"]).astype(jnp.bfloat16)
    cp = _compiler_params(("parallel",))
    out_shape = jax.ShapeDtypeStruct((N, M, 2 * Cp), jnp.bfloat16)
    if first:
        return pl.pallas_call(
            _stage1_first_kernel,
            out_shape=out_shape,
            grid=(N,),
            in_specs=[
                pl.BlockSpec((None, M, Cin), lambda n: (n, 0, 0)),
                pl.BlockSpec((Cin, Cp), lambda n: (0, 0)),
                pl.BlockSpec((M, 1), lambda n: (0, 0)),
                pl.BlockSpec((M, 1), lambda n: (0, 0)),
            ],
            out_specs=pl.BlockSpec((None, M, 2 * Cp), lambda n: (n, 0, 0)),
            compiler_params=cp,
        )(xf, w2m, mL, mR)
    Cmid = params["w1"].shape[0]
    w1t = _conv3x3_weight_deepk(params["w1"]).astype(jnp.bfloat16)
    return pl.pallas_call(
        functools.partial(_stage1_kernel, W=W),
        out_shape=out_shape,
        grid=(N,),
        in_specs=[
            pl.BlockSpec((None, M, Cin), lambda n: (n, 0, 0)),
            pl.BlockSpec((3, 3 * Cin, Cmid), lambda n: (0, 0, 0)),
            pl.BlockSpec((Cmid, Cp), lambda n: (0, 0)),
            pl.BlockSpec((M, 1), lambda n: (0, 0)),
            pl.BlockSpec((M, 1), lambda n: (0, 0)),
        ],
        out_specs=pl.BlockSpec((None, M, 2 * Cp), lambda n: (n, 0, 0)),
        compiler_params=cp,
    )(xf, w1t, w2m, mL, mR)


def _h_upsample(z_half, H):
    """z_half (N, H, 2W*Cp) bf16 -> (N, 2H, 2W*Cp) bf16 via a (2H,H) left matmul."""
    N, _, WC = z_half.shape
    A = jnp.asarray(_bilinear_interp_matrix(H, 2 * H), jnp.bfloat16)  # 0.25/0.75/1.0 exact
    return pl.pallas_call(
        _h_upsample_kernel,
        out_shape=jax.ShapeDtypeStruct((N, 2 * H, WC), jnp.bfloat16),
        grid=(N,),
        in_specs=[
            pl.BlockSpec((2 * H, H), lambda n: (0, 0)),
            pl.BlockSpec((None, H, WC), lambda n: (n, 0, 0)),
        ],
        out_specs=pl.BlockSpec((None, 2 * H, WC), lambda n: (n, 0, 0)),
        compiler_params=_compiler_params(("parallel",)),
    )(A, z_half)


def _stage3(y2_flat, prev_flat, w3, W2):
    """(N, M2, Cp) y2 + prev -> lrelu(IN(conv3(concat([prev, lrelu(IN(y2))])))), (N,M2,Cout) f32."""
    N, M2, Cp = y2_flat.shape
    Cout = w3.shape[0]
    w3t = _conv3x3_weight_deepk(w3).astype(jnp.bfloat16)  # (3, 3*2*Cp, Cout)
    mL, mR = _col_masks(M2 // W2, W2)
    # Second parallel grid axis over output-channel tiles (keeps v7x's 2nd TC busy at N==1).
    cout_t = 128 if (Cout > 128 and Cout % 128 == 0) else Cout
    CT = Cout // cout_t
    return pl.pallas_call(
        functools.partial(_stage3_kernel, W2=W2),
        out_shape=jax.ShapeDtypeStruct((N, M2, Cout), jnp.float32),
        grid=(N, CT),
        in_specs=[
            pl.BlockSpec((None, M2, Cp), lambda n, j: (n, 0, 0)),
            pl.BlockSpec((None, M2, Cp), lambda n, j: (n, 0, 0)),
            pl.BlockSpec((3, 3 * 2 * Cp, cout_t), lambda n, j: (0, 0, j)),
            pl.BlockSpec((M2, 1), lambda n, j: (0, 0)),
            pl.BlockSpec((M2, 1), lambda n, j: (0, 0)),
        ],
        out_specs=pl.BlockSpec((None, M2, cout_t), lambda n, j: (n, 0, j)),
        compiler_params=_compiler_params(("parallel", "parallel")),
    )(y2_flat, prev_flat, w3t, mL, mR)


# ---------------------------------------------------------------------------
# ConvU forward (meta_loss=None inference path), NCHW in / NCHW out
# ---------------------------------------------------------------------------
def conv_u_forward(x, prev, params, first=False):
    x = jnp.transpose(x, (0, 2, 3, 1)).astype(jnp.float32)        # NHWC
    prev_h = jnp.transpose(prev, (0, 2, 3, 1)).astype(jnp.float32)
    N, H, W, _ = x.shape
    planes = params["w3"].shape[0]
    Cp = planes // 2
    H2, W2 = 2 * H, 2 * W

    zq = _stage1(x, params, first)                 # (N, H*W, 2*Cp) bf16, [even|odd] lanes
    z_half = zq.reshape(N, H, W2 * Cp)             # free (bitcast) reshape -> W-interleaved
    y2r = _h_upsample(z_half, H)                   # (N, H2, W2*Cp) bf16
    y2_flat = y2r.reshape(N, H2 * W2, Cp)          # free reshape -> compact (pixels, Cp)
    prev_flat = prev_h.reshape(N, H2 * W2, Cp).astype(jnp.bfloat16)
    out = _stage3(y2_flat, prev_flat, params["w3"], W2)            # (N, M2, planes) f32
    return jnp.transpose(out.reshape(N, H2, W2, planes), (0, 3, 1, 2))


# ---------------------------------------------------------------------------
# Pure-JAX reference of the exact PyTorch graph (f32, biases included)
# ---------------------------------------------------------------------------
def conv_u_reference(x, prev, params, first=False):
    def conv(h, w, b, pad):
        out = lax.conv_general_dilated(
            h, w, window_strides=(1, 1), padding=[(pad, pad), (pad, pad)],
            dimension_numbers=("NCHW", "OIHW", "NCHW"))
        return out + b[None, :, None, None]

    def inorm(h):
        mean = jnp.mean(h, axis=(2, 3), keepdims=True)
        var = jnp.mean((h - mean) ** 2, axis=(2, 3), keepdims=True)
        return (h - mean) * lax.rsqrt(var + EPS)

    def lrelu(v):
        return jnp.where(v >= 0, v, LRELU_SLOPE * v)

    h = x
    if not first:
        h = lrelu(inorm(conv(h, params["w1"], params["b1"], 1)))
    _, _, H, W = h.shape
    A = jnp.asarray(_bilinear_interp_matrix(H, 2 * H), jnp.float32)
    B = jnp.asarray(_bilinear_interp_matrix(W, 2 * W), jnp.float32)
    y = jnp.einsum("ah,bw,nchw->ncab", A, B, h)
    y = lrelu(inorm(conv(y, params["w2"], params["b2"], 0)))
    y = jnp.concatenate([prev, y], axis=1)
    y = lrelu(inorm(conv(y, params["w3"], params["b3"], 1)))
    return y


# ---------------------------------------------------------------------------
# Deterministic parameter init (shapes from ConvU.__init__; norm='in' has no params).
# Biases exist for graph fidelity; they are exactly cancelled by affine=False IN.
# ---------------------------------------------------------------------------
def init_params(key, planes):
    def conv_init(kw, kb, cout, cin, kh, kwid):
        fan_in = cin * kh * kwid
        bound = 1.0 / np.sqrt(fan_in)
        w = jax.random.uniform(kw, (cout, cin, kh, kwid), jnp.float32, -bound, bound)
        b = jax.random.uniform(kb, (cout,), jnp.float32, -bound, bound)
        return w, b

    k = jax.random.split(key, 6)
    w1, b1 = conv_init(k[0], k[1], planes, 2 * planes, 3, 3)     # conv1
    w2, b2 = conv_init(k[2], k[3], planes // 2, planes, 1, 1)    # conv2
    w3, b3 = conv_init(k[4], k[5], planes, planes, 3, 3)         # conv3
    return {"w1": w1, "b1": b1, "w2": w2, "b2": b2, "w3": w3, "b3": b3}


if __name__ == "__main__":
    planes = 4
    N, H, W = 2, 8, 8
    key = jax.random.PRNGKey(0)
    kx, kxf, kp, kparam = jax.random.split(key, 4)

    # ConvU(planes=4, norm='in'): x (N, 2*planes, H, W), prev (N, planes//2, 2H, 2W)
    x = jax.random.normal(kx, (N, 2 * planes, H, W), jnp.float32)
    x_first = jax.random.normal(kxf, (N, planes, H, W), jnp.float32)
    prev = jax.random.normal(kp, (N, planes // 2, 2 * H, 2 * W), jnp.float32)
    params = init_params(kparam, planes)

    # first=False path
    fwd = jax.jit(functools.partial(conv_u_forward, first=False))
    out = jax.block_until_ready(fwd(x, prev, params))
    assert out.shape == (N, planes, 2 * H, 2 * W), out.shape
    assert out.dtype == jnp.float32
    assert bool(jnp.all(jnp.isfinite(out)))
    ref = conv_u_reference(x, prev, params, first=False)
    err = float(jnp.max(jnp.abs(out - ref)))
    assert err < 0.2, f"first=False mismatch vs f32 reference: max abs err {err}"

    # first=True path
    fwd_first = jax.jit(functools.partial(conv_u_forward, first=True))
    out_f = jax.block_until_ready(fwd_first(x_first, prev, params))
    assert out_f.shape == (N, planes, 2 * H, 2 * W), out_f.shape
    ref_f = conv_u_reference(x_first, prev, params, first=True)
    err_f = float(jnp.max(jnp.abs(out_f - ref_f)))
    assert err_f < 0.2, f"first=True mismatch vs f32 reference: max abs err {err_f}"

    print("KERNEL_OK")
</pallas_src>

<mosaic_0001>
module attributes {stable_mosaic.version = 11 : i64} {
  func.func @_stage1_kernel(%arg0: i32, %arg1: memref<1x64x8xbf16, #tpu.memory_space<vmem>>, %arg2: memref<3x24x4xbf16, #tpu.memory_space<vmem>>, %arg3: memref<4x2xbf16, #tpu.memory_space<vmem>>, %arg4: memref<64x1xf32, #tpu.memory_space<vmem>>, %arg5: memref<64x1xf32, #tpu.memory_space<vmem>>, %arg6: memref<1x64x4xbf16, #tpu.memory_space<vmem>>) attributes {dimension_semantics = [#tpu.dimension_semantics<parallel>], iteration_bounds = array<i64: 2>, scalar_prefetch = 0 : i64, scratch_operands = 0 : i64, tpu.core_type = #tpu.core_type<tc>, window_params = [{transform_indices = @transform_0, window_bounds = array<i64: 1, 64, 8>}, {pipeline_mode = #tpu.pipeline_mode<synchronous>, transform_indices = @transform_1, window_bounds = array<i64: 3, 24, 4>}, {pipeline_mode = #tpu.pipeline_mode<synchronous>, transform_indices = @transform_2, window_bounds = array<i64: 4, 2>}, {pipeline_mode = #tpu.pipeline_mode<synchronous>, transform_indices = @transform_3, window_bounds = array<i64: 64, 1>}, {pipeline_mode = #tpu.pipeline_mode<synchronous>, transform_indices = @transform_4, window_bounds = array<i64: 64, 1>}, {transform_indices = @transform_5, window_bounds = array<i64: 1, 64, 4>}]} {
    %c0 = arith.constant 0 : index
    %c0_0 = arith.constant 0 : index
    %0 = vector.load %arg4[%c0, %c0_0] : memref<64x1xf32, #tpu.memory_space<vmem>>, vector<64x1xf32>
    %c0_1 = arith.constant 0 : index
    %c0_2 = arith.constant 0 : index
    %1 = vector.load %arg5[%c0_1, %c0_2] : memref<64x1xf32, #tpu.memory_space<vmem>>, vector<64x1xf32>
    %c0_3 = arith.constant 0 : index
    %c0_4 = arith.constant 0 : index
    %c0_5 = arith.constant 0 : index
    %2 = vector.load %arg1[%c0_3, %c0_4, %c0_5] : memref<1x64x8xbf16, #tpu.memory_space<vmem>>, vector<1x64x8xbf16>
    %3 = vector.shape_cast %2 : vector<1x64x8xbf16> to vector<64x8xbf16>
    %4 = arith.truncf %0 : vector<64x1xf32> to vector<64x1xbf16>
    %5 = arith.truncf %1 : vector<64x1xf32> to vector<64x1xbf16>
    %cst = arith.constant 0.000000e+00 : bf16
    %6 = vector.broadcast %cst : bf16 to vector<9x8xbf16>
    %7 = tpu.concatenate %6, %3, %6 in 0 : vector<9x8xbf16>, vector<64x8xbf16>, vector<9x8xbf16> -> vector<82x8xbf16>
    %cst_6 = arith.constant 0.000000e+00 : f32
    %8 = vector.broadcast %cst_6 : f32 to vector<64x4xf32>
    %9 = vector.extract_strided_slice %7 {offsets = [0, 0], sizes = [64, 8], strides = [1, 1]} : vector<82x8xbf16> to vector<64x8xbf16>
    %10 = vector.broadcast %4 : vector<64x1xbf16> to vector<64x8xbf16>
    %11 = arith.mulf %9, %10 : vector<64x8xbf16>
    %12 = vector.extract_strided_slice %7 {offsets = [1, 0], sizes = [64, 8], strides = [1, 1]} : vector<82x8xbf16> to vector<64x8xbf16>
    %13 = vector.extract_strided_slice %7 {offsets = [2, 0], sizes = [64, 8], strides = [1, 1]} : vector<82x8xbf16> to vector<64x8xbf16>
    %14 = vector.broadcast %5 : vector<64x1xbf16> to vector<64x8xbf16>
    %15 = arith.mulf %13, %14 : vector<64x8xbf16>
    %16 = tpu.concatenate %11, %12, %15 in 1 : vector<64x8xbf16>, vector<64x8xbf16>, vector<64x8xbf16> -> vector<64x24xbf16>
    %c0_7 = arith.constant 0 : index
    %c0_8 = arith.constant 0 : index
    %c0_9 = arith.constant 0 : index
    %17 = vector.load %arg2[%c0_7, %c0_8, %c0_9] : memref<3x24x4xbf16, #tpu.memory_space<vmem>>, vector<1x24x4xbf16>
    %18 = vector.shape_cast %17 : vector<1x24x4xbf16> to vector<24x4xbf16>
    %cst_10 = arith.constant dense<0.000000e+00> : vector<64x4xf32>
    %19 = tpu.matmul %16, %18, %cst_10 {dimension_numbers = #tpu.dot_dimension_numbers<[1], [0], [0], [1], [0, 0, 1, 1], [], []>} : vector<64x24xbf16>, vector<24x4xbf16>, vector<64x4xf32> -> vector<64x4xf32>
    %20 = arith.addf %8, %19 : vector<64x4xf32>
    %21 = vector.extract_strided_slice %7 {offsets = [8, 0], sizes = [64, 8], strides = [1, 1]} : vector<82x8xbf16> to vector<64x8xbf16>
    %22 = vector.broadcast %4 : vector<64x1xbf16> to vector<64x8xbf16>
    %23 = arith.mulf %21, %22 : vector<64x8xbf16>
    %24 = vector.extract_strided_slice %7 {offsets = [9, 0], sizes = [64, 8], strides = [1, 1]} : vector<82x8xbf16> to vector<64x8xbf16>
    %25 = vector.extract_strided_slice %7 {offsets = [10, 0], sizes = [64, 8], strides = [1, 1]} : vector<82x8xbf16> to vector<64x8xbf16>
    %26 = vector.broadcast %5 : vector<64x1xbf16> to vector<64x8xbf16>
    %27 = arith.mulf %25, %26 : vector<64x8xbf16>
    %28 = tpu.concatenate %23, %24, %27 in 1 : vector<64x8xbf16>, vector<64x8xbf16>, vector<64x8xbf16> -> vector<64x24xbf16>
    %c1 = arith.constant 1 : index
    %c0_11 = arith.constant 0 : index
    %c0_12 = arith.constant 0 : index
    %29 = vector.load %arg2[%c1, %c0_11, %c0_12] : memref<3x24x4xbf16, #tpu.memory_space<vmem>>, vector<1x24x4xbf16>
    %30 = vector.shape_cast %29 : vector<1x24x4xbf16> to vector<24x4xbf16>
    %cst_13 = arith.constant dense<0.000000e+00> : vector<64x4xf32>
    %31 = tpu.matmul %28, %30, %cst_13 {dimension_numbers = #tpu.dot_dimension_numbers<[1], [0], [0], [1], [0, 0, 1, 1], [], []>} : vector<64x24xbf16>, vector<24x4xbf16>, vector<64x4xf32> -> vector<64x4xf32>
    %32 = arith.addf %20, %31 : vector<64x4xf32>
    %33 = vector.extract_strided_slice %7 {offsets = [16, 0], sizes = [64, 8], strides = [1, 1]} : vector<82x8xbf16> to vector<64x8xbf16>
    %34 = vector.broadcast %4 : vector<64x1xbf16> to vector<64x8xbf16>
    %35 = arith.mulf %33, %34 : vector<64x8xbf16>
    %36 = vector.extract_strided_slice %7 {offsets = [17, 0], sizes = [64, 8], strides = [1, 1]} : vector<82x8xbf16> to vector<64x8xbf16>
    %37 = vector.extract_strided_slice %7 {offsets = [18, 0], sizes = [64, 8], strides = [1, 1]} : vector<82x8xbf16> to vector<64x8xbf16>
    %38 = vector.broadcast %5 : vector<64x1xbf16> to vector<64x8xbf16>
    %39 = arith.mulf %37, %38 : vector<64x8xbf16>
    %40 = tpu.concatenate %35, %36, %39 in 1 : vector<64x8xbf16>, vector<64x8xbf16>, vector<64x8xbf16> -> vector<64x24xbf16>
    %c2 = arith.constant 2 : index
    %c0_14 = arith.constant 0 : index
    %c0_15 = arith.constant 0 : index
    %41 = vector.load %arg2[%c2, %c0_14, %c0_15] : memref<3x24x4xbf16, #tpu.memory_space<vmem>>, vector<1x24x4xbf16>
    %42 = vector.shape_cast %41 : vector<1x24x4xbf16> to vector<24x4xbf16>
    %cst_16 = arith.constant dense<0.000000e+00> : vector<64x4xf32>
    %43 = tpu.matmul %40, %42, %cst_16 {dimension_numbers = #tpu.dot_dimension_numbers<[1], [0], [0], [1], [0, 0, 1, 1], [], []>} : vector<64x24xbf16>, vector<24x4xbf16>, vector<64x4xf32> -> vector<64x4xf32>
    %44 = arith.addf %32, %43 : vector<64x4xf32>
    %cst_17 = arith.constant dense<0.000000e+00> : vector<4xf32>
    %45 = vector.multi_reduction <add>, %44, %cst_17 [0] : vector<64x4xf32> to vector<4xf32>
    %46 = vector.shape_cast %45 : vector<4xf32> to vector<1x4xf32>
    %cst_18 = arith.constant 1.562500e-02 : f32
    %47 = vector.broadcast %cst_18 : f32 to vector<1x4xf32>
    %48 = arith.mulf %46, %47 : vector<1x4xf32>
    %49 = vector.broadcast %48 : vector<1x4xf32> to vector<64x4xf32>
    %50 = arith.subf %44, %49 : vector<64x4xf32>
    %51 = arith.mulf %50, %50 : vector<64x4xf32>
    %cst_19 = arith.constant dense<0.000000e+00> : vector<4xf32>
    %52 = vector.multi_reduction <add>, %51, %cst_19 [0] : vector<64x4xf32> to vector<4xf32>
    %53 = vector.shape_cast %52 : vector<4xf32> to vector<1x4xf32>
    %cst_20 = arith.constant 1.562500e-02 : f32
    %54 = vector.broadcast %cst_20 : f32 to vector<1x4xf32>
    %55 = arith.mulf %53, %54 : vector<1x4xf32>
    %cst_21 = arith.constant 9.99999974E-6 : f32
    %56 = vector.broadcast %cst_21 : f32 to vector<1x4xf32>
    %57 = arith.addf %55, %56 : vector<1x4xf32>
    %58 = math.rsqrt %57 : vector<1x4xf32>
    %59 = vector.broadcast %58 : vector<1x4xf32> to vector<64x4xf32>
    %60 = arith.mulf %50, %59 : vector<64x4xf32>
    %cst_22 = arith.constant 0.000000e+00 : f32
    %61 = vector.broadcast %cst_22 : f32 to vector<64x4xf32>
    %62 = arith.cmpf oge, %60, %61 : vector<64x4xf32>
    %cst_23 = arith.constant 0.00999999977 : f32
    %63 = vector.broadcast %cst_23 : f32 to vector<64x4xf32>
    %64 = arith.mulf %63, %60 : vector<64x4xf32>
    %65 = arith.select %62, %60, %64 : vector<64x4xi1>, vector<64x4xf32>
    %66 = arith.truncf %65 : vector<64x4xf32> to vector<64x4xbf16>
    %c0_24 = arith.constant 0 : index
    %c0_25 = arith.constant 0 : index
    %67 = vector.load %arg3[%c0_24, %c0_25] : memref<4x2xbf16, #tpu.memory_space<vmem>>, vector<4x2xbf16>
    %cst_26 = arith.constant dense<0.000000e+00> : vector<64x2xf32>
    %68 = tpu.matmul %66, %67, %cst_26 {dimension_numbers = #tpu.dot_dimension_numbers<[1], [0], [0], [1], [0, 0, 1, 1], [], []>} : vector<64x4xbf16>, vector<4x2xbf16>, vector<64x2xf32> -> vector<64x2xf32>
    %69 = vector.extract_strided_slice %68 {offsets = [0, 0], sizes = [1, 2], strides = [1, 1]} : vector<64x2xf32> to vector<1x2xf32>
    %70 = vector.extract_strided_slice %68 {offsets = [0, 0], sizes = [63, 2], strides = [1, 1]} : vector<64x2xf32> to vector<63x2xf32>
    %71 = tpu.concatenate %69, %70 in 0 : vector<1x2xf32>, vector<63x2xf32> -> vector<64x2xf32>
    %72 = vector.extract_strided_slice %68 {offsets = [1, 0], sizes = [63, 2], strides = [1, 1]} : vector<64x2xf32> to vector<63x2xf32>
    %73 = vector.extract_strided_slice %68 {offsets = [63, 0], sizes = [1, 2], strides = [1, 1]} : vector<64x2xf32> to vector<1x2xf32>
    %74 = tpu.concatenate %72, %73 in 0 : vector<63x2xf32>, vector<1x2xf32> -> vector<64x2xf32>
    %75 = vector.broadcast %0 : vector<64x1xf32> to vector<64x2xf32>
    %76 = arith.mulf %75, %71 : vector<64x2xf32>
    %cst_27 = arith.constant 1.000000e+00 : f32
    %77 = vector.broadcast %cst_27 : f32 to vector<64x1xf32>
    %78 = arith.subf %77, %0 : vector<64x1xf32>
    %79 = vector.broadcast %78 : vector<64x1xf32> to vector<64x2xf32>
    %80 = arith.mulf %79, %68 : vector<64x2xf32>
    %81 = arith.addf %76, %80 : vector<64x2xf32>
    %82 = vector.broadcast %1 : vector<64x1xf32> to vector<64x2xf32>
    %83 = arith.mulf %82, %74 : vector<64x2xf32>
    %cst_28 = arith.constant 1.000000e+00 : f32
    %84 = vector.broadcast %cst_28 : f32 to vector<64x1xf32>
    %85 = arith.subf %84, %1 : vector<64x1xf32>
    %86 = vector.broadcast %85 : vector<64x1xf32> to vector<64x2xf32>
    %87 = arith.mulf %86, %68 : vector<64x2xf32>
    %88 = arith.addf %83, %87 : vector<64x2xf32>
    %cst_29 = arith.constant 2.500000e-01 : f32
    %89 = vector.broadcast %cst_29 : f32 to vector<64x2xf32>
    %90 = arith.mulf %89, %81 : vector<64x2xf32>
    %cst_30 = arith.constant 7.500000e-01 : f32
    %91 = vector.broadcast %cst_30 : f32 to vector<64x2xf32>
    %92 = arith.mulf %91, %68 : vector<64x2xf32>
    %93 = arith.addf %90, %92 : vector<64x2xf32>
    %cst_31 = arith.constant 7.500000e-01 : f32
    %94 = vector.broadcast %cst_31 : f32 to vector<64x2xf32>
    %95 = arith.mulf %94, %68 : vector<64x2xf32>
    %cst_32 = arith.constant 2.500000e-01 : f32
    %96 = vector.broadcast %cst_32 : f32 to vector<64x2xf32>
    %97 = arith.mulf %96, %88 : vector<64x2xf32>
    %98 = arith.addf %95, %97 : vector<64x2xf32>
    %99 = tpu.concatenate %93, %98 in 1 : vector<64x2xf32>, vector<64x2xf32> -> vector<64x4xf32>
    %100 = arith.truncf %99 : vector<64x4xf32> to vector<64x4xbf16>
    %c0_33 = arith.constant 0 : index
    %c0_34 = arith.constant 0 : index
    %c0_35 = arith.constant 0 : index
    %101 = vector.load %arg6[%c0_33, %c0_34, %c0_35] : memref<1x64x4xbf16, #tpu.memory_space<vmem>>, vector<1x64x4xbf16>
    %102 = vector.shape_cast %101 : vector<1x64x4xbf16> to vector<64x4xbf16>
    %103 = vector.shape_cast %100 : vector<64x4xbf16> to vector<1x64x4xbf16>
    tpu.vector_store %arg6[%c0_33, %c0_34, %c0_35], %103 {strides = array<i32>} : memref<1x64x4xbf16, #tpu.memory_space<vmem>>, vector<1x64x4xbf16>,
    return
  }
  func.func @transform_0(%arg0: i32) -> (i32, i32, i32) {
    %c0_i32 = arith.constant 0 : i32
    %c0_i32_0 = arith.constant 0 : i32
    %c0_i32_1 = arith.constant 0 : i32
    return %arg0, %c0_i32, %c0_i32_0 : i32, i32, i32
  }
  func.func @transform_1(%arg0: i32) -> (i32, i32, i32) {
    %c0_i32 = arith.constant 0 : i32
    %c0_i32_0 = arith.constant 0 : i32
    %c0_i32_1 = arith.constant 0 : i32
    %c0_i32_2 = arith.constant 0 : i32
    return %c0_i32, %c0_i32_0, %c0_i32_1 : i32, i32, i32
  }
  func.func @transform_2(%arg0: i32) -> (i32, i32) {
    %c0_i32 = arith.constant 0 : i32
    %c0_i32_0 = arith.constant 0 : i32
    %c0_i32_1 = arith.constant 0 : i32
    return %c0_i32, %c0_i32_0 : i32, i32
  }
  func.func @transform_3(%arg0: i32) -> (i32, i32) {
    %c0_i32 = arith.constant 0 : i32
    %c0_i32_0 = arith.constant 0 : i32
    %c0_i32_1 = arith.constant 0 : i32
    return %c0_i32, %c0_i32_0 : i32, i32
  }
  func.func @transform_4(%arg0: i32) -> (i32, i32) {
    %c0_i32 = arith.constant 0 : i32
    %c0_i32_0 = arith.constant 0 : i32
    %c0_i32_1 = arith.constant 0 : i32
    return %c0_i32, %c0_i32_0 : i32, i32
  }
  func.func @transform_5(%arg0: i32) -> (i32, i32, i32) {
    %c0_i32 = arith.constant 0 : i32
    %c0_i32_0 = arith.constant 0 : i32
    %c0_i32_1 = arith.constant 0 : i32
    return %arg0, %c0_i32, %c0_i32_0 : i32, i32, i32
  }
}

module attributes {stable_mosaic.version = 11 : i64} {
  func.func @_h_upsample_kernel(%arg0: i32, %arg1: memref<16x8xbf16, #tpu.memory_space<vmem>>, %arg2: memref<1x8x32xbf16, #tpu.memory_space<vmem>>, %arg3: memref<1x16x32xbf16, #tpu.memory_space<vmem>>) attributes {dimension_semantics = [#tpu.dimension_semantics<parallel>], iteration_bounds = array<i64: 2>, scalar_prefetch = 0 : i64, scratch_operands = 0 : i64, tpu.core_type = #tpu.core_type<tc>, window_params = [{pipeline_mode = #tpu.pipeline_mode<synchronous>, transform_indices = @transform_0, window_bounds = array<i64: 16, 8>}, {transform_indices = @transform_1, window_bounds = array<i64: 1, 8, 32>}, {transform_indices = @transform_2, window_bounds = array<i64: 1, 16, 32>}]} {
    %c0 = arith.constant 0 : index
    %c0_0 = arith.constant 0 : index
    %0 = vector.load %arg1[%c0, %c0_0] : memref<16x8xbf16, #tpu.memory_space<vmem>>, vector<16x8xbf16>
    %c0_1 = arith.constant 0 : index
    %c0_2 = arith.constant 0 : index
    %c0_3 = arith.constant 0 : index
    %1 = vector.load %arg2[%c0_1, %c0_2, %c0_3] : memref<1x8x32xbf16, #tpu.memory_space<vmem>>, vector<1x8x32xbf16>
    %2 = vector.shape_cast %1 : vector<1x8x32xbf16> to vector<8x32xbf16>
    %cst = arith.constant dense<0.000000e+00> : vector<16x32xf32>
    %3 = tpu.matmul %0, %2, %cst {dimension_numbers = #tpu.dot_dimension_numbers<[1], [0], [0], [1], [0, 0, 1, 1], [], []>} : vector<16x8xbf16>, vector<8x32xbf16>, vector<16x32xf32> -> vector<16x32xf32>
    %4 = arith.truncf %3 : vector<16x32xf32> to vector<16x32xbf16>
    %c0_4 = arith.constant 0 : index
    %c0_5 = arith.constant 0 : index
    %c0_6 = arith.constant 0 : index
    %5 = vector.load %arg3[%c0_4, %c0_5, %c0_6] : memref<1x16x32xbf16, #tpu.memory_space<vmem>>, vector<1x16x32xbf16>
    %6 = vector.shape_cast %5 : vector<1x16x32xbf16> to vector<16x32xbf16>
    %7 = vector.shape_cast %4 : vector<16x32xbf16> to vector<1x16x32xbf16>
    tpu.vector_store %arg3[%c0_4, %c0_5, %c0_6], %7 {strides = array<i32>} : memref<1x16x32xbf16, #tpu.memory_space<vmem>>, vector<1x16x32xbf16>,
    return
  }
  func.func @transform_0(%arg0: i32) -> (i32, i32) {
    %c0_i32 = arith.constant 0 : i32
    %c0_i32_0 = arith.constant 0 : i32
    %c0_i32_1 = arith.constant 0 : i32
    return %c0_i32, %c0_i32_0 : i32, i32
  }
  func.func @transform_1(%arg0: i32) -> (i32, i32, i32) {
    %c0_i32 = arith.constant 0 : i32
    %c0_i32_0 = arith.constant 0 : i32
    %c0_i32_1 = arith.constant 0 : i32
    return %arg0, %c0_i32, %c0_i32_0 : i32, i32, i32
  }
  func.func @transform_2(%arg0: i32) -> (i32, i32, i32) {
    %c0_i32 = arith.constant 0 : i32
    %c0_i32_0 = arith.constant 0 : i32
    %c0_i32_1 = arith.constant 0 : i32
    return %arg0, %c0_i32, %c0_i32_0 : i32, i32, i32
  }
}

module attributes {stable_mosaic.version = 11 : i64} {
  func.func @_stage3_kernel(%arg0: i32, %arg1: i32, %arg2: memref<1x256x2xbf16, #tpu.memory_space<vmem>>, %arg3: memref<1x256x2xbf16, #tpu.memory_space<vmem>>, %arg4: memref<3x12x4xbf16, #tpu.memory_space<vmem>>, %arg5: memref<256x1xf32, #tpu.memory_space<vmem>>, %arg6: memref<256x1xf32, #tpu.memory_space<vmem>>, %arg7: memref<1x256x4xf32, #tpu.memory_space<vmem>>) attributes {dimension_semantics = [#tpu.dimension_semantics<parallel>, #tpu.dimension_semantics<parallel>], iteration_bounds = array<i64: 2, 1>, scalar_prefetch = 0 : i64, scratch_operands = 0 : i64, tpu.core_type = #tpu.core_type<tc>, window_params = [{transform_indices = @transform_0, window_bounds = array<i64: 1, 256, 2>}, {transform_indices = @transform_1, window_bounds = array<i64: 1, 256, 2>}, {transform_indices = @transform_2, window_bounds = array<i64: 3, 12, 4>}, {pipeline_mode = #tpu.pipeline_mode<synchronous>, transform_indices = @transform_3, window_bounds = array<i64: 256, 1>}, {pipeline_mode = #tpu.pipeline_mode<synchronous>, transform_indices = @transform_4, window_bounds = array<i64: 256, 1>}, {transform_indices = @transform_5, window_bounds = array<i64: 1, 256, 4>}]} {
    %c0 = arith.constant 0 : index
    %c0_0 = arith.constant 0 : index
    %c0_1 = arith.constant 0 : index
    %0 = vector.load %arg2[%c0, %c0_0, %c0_1] : memref<1x256x2xbf16, #tpu.memory_space<vmem>>, vector<1x256x2xbf16>
    %1 = vector.shape_cast %0 : vector<1x256x2xbf16> to vector<256x2xbf16>
    %2 = arith.extf %1 : vector<256x2xbf16> to vector<256x2xf32>
    %cst = arith.constant dense<0.000000e+00> : vector<2xf32>
    %3 = vector.multi_reduction <add>, %2, %cst [0] : vector<256x2xf32> to vector<2xf32>
    %4 = vector.shape_cast %3 : vector<2xf32> to vector<1x2xf32>
    %cst_2 = arith.constant 3.906250e-03 : f32
    %5 = vector.broadcast %cst_2 : f32 to vector<1x2xf32>
    %6 = arith.mulf %4, %5 : vector<1x2xf32>
    %7 = vector.broadcast %6 : vector<1x2xf32> to vector<256x2xf32>
    %8 = arith.subf %2, %7 : vector<256x2xf32>
    %9 = arith.mulf %8, %8 : vector<256x2xf32>
    %cst_3 = arith.constant dense<0.000000e+00> : vector<2xf32>
    %10 = vector.multi_reduction <add>, %9, %cst_3 [0] : vector<256x2xf32> to vector<2xf32>
    %11 = vector.shape_cast %10 : vector<2xf32> to vector<1x2xf32>
    %cst_4 = arith.constant 3.906250e-03 : f32
    %12 = vector.broadcast %cst_4 : f32 to vector<1x2xf32>
    %13 = arith.mulf %11, %12 : vector<1x2xf32>
    %cst_5 = arith.constant 9.99999974E-6 : f32
    %14 = vector.broadcast %cst_5 : f32 to vector<1x2xf32>
    %15 = arith.addf %13, %14 : vector<1x2xf32>
    %16 = math.rsqrt %15 : vector<1x2xf32>
    %17 = vector.broadcast %16 : vector<1x2xf32> to vector<256x2xf32>
    %18 = arith.mulf %8, %17 : vector<256x2xf32>
    %cst_6 = arith.constant 0.000000e+00 : f32
    %19 = vector.broadcast %cst_6 : f32 to vector<256x2xf32>
    %20 = arith.cmpf oge, %18, %19 : vector<256x2xf32>
    %cst_7 = arith.constant 0.00999999977 : f32
    %21 = vector.broadcast %cst_7 : f32 to vector<256x2xf32>
    %22 = arith.mulf %21, %18 : vector<256x2xf32>
    %23 = arith.select %20, %18, %22 : vector<256x2xi1>, vector<256x2xf32>
    %c0_8 = arith.constant 0 : index
    %c0_9 = arith.constant 0 : index
    %c0_10 = arith.constant 0 : index
    %24 = vector.load %arg3[%c0_8, %c0_9, %c0_10] : memref<1x256x2xbf16, #tpu.memory_space<vmem>>, vector<1x256x2xbf16>
    %25 = vector.shape_cast %24 : vector<1x256x2xbf16> to vector<256x2xbf16>
    %26 = arith.truncf %23 : vector<256x2xf32> to vector<256x2xbf16>
    %27 = tpu.concatenate %25, %26 in 1 : vector<256x2xbf16>, vector<256x2xbf16> -> vector<256x4xbf16>
    %c0_11 = arith.constant 0 : index
    %c0_12 = arith.constant 0 : index
    %28 = vector.load %arg5[%c0_11, %c0_12] : memref<256x1xf32, #tpu.memory_space<vmem>>, vector<256x1xf32>
    %29 = arith.truncf %28 : vector<256x1xf32> to vector<256x1xbf16>
    %c0_13 = arith.constant 0 : index
    %c0_14 = arith.constant 0 : index
    %30 = vector.load %arg6[%c0_13, %c0_14] : memref<256x1xf32, #tpu.memory_space<vmem>>, vector<256x1xf32>
    %31 = arith.truncf %30 : vector<256x1xf32> to vector<256x1xbf16>
    %cst_15 = arith.constant 0.000000e+00 : bf16
    %32 = vector.broadcast %cst_15 : bf16 to vector<17x4xbf16>
    %33 = tpu.concatenate %32, %27, %32 in 0 : vector<17x4xbf16>, vector<256x4xbf16>, vector<17x4xbf16> -> vector<290x4xbf16>
    %cst_16 = arith.constant 0.000000e+00 : f32
    %34 = vector.broadcast %cst_16 : f32 to vector<256x4xf32>
    %35 = vector.extract_strided_slice %33 {offsets = [0, 0], sizes = [256, 4], strides = [1, 1]} : vector<290x4xbf16> to vector<256x4xbf16>
    %36 = vector.broadcast %29 : vector<256x1xbf16> to vector<256x4xbf16>
    %37 = arith.mulf %35, %36 : vector<256x4xbf16>
    %38 = vector.extract_strided_slice %33 {offsets = [1, 0], sizes = [256, 4], strides = [1, 1]} : vector<290x4xbf16> to vector<256x4xbf16>
    %39 = vector.extract_strided_slice %33 {offsets = [2, 0], sizes = [256, 4], strides = [1, 1]} : vector<290x4xbf16> to vector<256x4xbf16>
    %40 = vector.broadcast %31 : vector<256x1xbf16> to vector<256x4xbf16>
    %41 = arith.mulf %39, %40 : vector<256x4xbf16>
    %42 = tpu.concatenate %37, %38, %41 in 1 : vector<256x4xbf16>, vector<256x4xbf16>, vector<256x4xbf16> -> vector<256x12xbf16>
    %c0_17 = arith.constant 0 : index
    %c0_18 = arith.constant 0 : index
    %c0_19 = arith.constant 0 : index
    %43 = vector.load %arg4[%c0_17, %c0_18, %c0_19] : memref<3x12x4xbf16, #tpu.memory_space<vmem>>, vector<1x12x4xbf16>
    %44 = vector.shape_cast %43 : vector<1x12x4xbf16> to vector<12x4xbf16>
    %cst_20 = arith.constant dense<0.000000e+00> : vector<256x4xf32>
    %45 = tpu.matmul %42, %44, %cst_20 {dimension_numbers = #tpu.dot_dimension_numbers<[1], [0], [0], [1], [0, 0, 1, 1], [], []>} : vector<256x12xbf16>, vector<12x4xbf16>, vector<256x4xf32> -> vector<256x4xf32>
    %46 = arith.addf %34, %45 : vector<256x4xf32>
    %47 = vector.extract_strided_slice %33 {offsets = [16, 0], sizes = [256, 4], strides = [1, 1]} : vector<290x4xbf16> to vector<256x4xbf16>
    %48 = vector.broadcast %29 : vector<256x1xbf16> to vector<256x4xbf16>
    %49 = arith.mulf %47, %48 : vector<256x4xbf16>
    %50 = vector.extract_strided_slice %33 {offsets = [17, 0], sizes = [256, 4], strides = [1, 1]} : vector<290x4xbf16> to vector<256x4xbf16>
    %51 = vector.extract_strided_slice %33 {offsets = [18, 0], sizes = [256, 4], strides = [1, 1]} : vector<290x4xbf16> to vector<256x4xbf16>
    %52 = vector.broadcast %31 : vector<256x1xbf16> to vector<256x4xbf16>
    %53 = arith.mulf %51, %52 : vector<256x4xbf16>
    %54 = tpu.concatenate %49, %50, %53 in 1 : vector<256x4xbf16>, vector<256x4xbf16>, vector<256x4xbf16> -> vector<256x12xbf16>
    %c1 = arith.constant 1 : index
    %c0_21 = arith.constant 0 : index
    %c0_22 = arith.constant 0 : index
    %55 = vector.load %arg4[%c1, %c0_21, %c0_22] : memref<3x12x4xbf16, #tpu.memory_space<vmem>>, vector<1x12x4xbf16>
    %56 = vector.shape_cast %55 : vector<1x12x4xbf16> to vector<12x4xbf16>
    %cst_23 = arith.constant dense<0.000000e+00> : vector<256x4xf32>
    %57 = tpu.matmul %54, %56, %cst_23 {dimension_numbers = #tpu.dot_dimension_numbers<[1], [0], [0], [1], [0, 0, 1, 1], [], []>} : vector<256x12xbf16>, vector<12x4xbf16>, vector<256x4xf32> -> vector<256x4xf32>
    %58 = arith.addf %46, %57 : vector<256x4xf32>
    %59 = vector.extract_strided_slice %33 {offsets = [32, 0], sizes = [256, 4], strides = [1, 1]} : vector<290x4xbf16> to vector<256x4xbf16>
    %60 = vector.broadcast %29 : vector<256x1xbf16> to vector<256x4xbf16>
    %61 = arith.mulf %59, %60 : vector<256x4xbf16>
    %62 = vector.extract_strided_slice %33 {offsets = [33, 0], sizes = [256, 4], strides = [1, 1]} : vector<290x4xbf16> to vector<256x4xbf16>
    %63 = vector.extract_strided_slice %33 {offsets = [34, 0], sizes = [256, 4], strides = [1, 1]} : vector<290x4xbf16> to vector<256x4xbf16>
    %64 = vector.broadcast %31 : vector<256x1xbf16> to vector<256x4xbf16>
    %65 = arith.mulf %63, %64 : vector<256x4xbf16>
    %66 = tpu.concatenate %61, %62, %65 in 1 : vector<256x4xbf16>, vector<256x4xbf16>, vector<256x4xbf16> -> vector<256x12xbf16>
    %c2 = arith.constant 2 : index
    %c0_24 = arith.constant 0 : index
    %c0_25 = arith.constant 0 : index
    %67 = vector.load %arg4[%c2, %c0_24, %c0_25] : memref<3x12x4xbf16, #tpu.memory_space<vmem>>, vector<1x12x4xbf16>
    %68 = vector.shape_cast %67 : vector<1x12x4xbf16> to vector<12x4xbf16>
    %cst_26 = arith.constant dense<0.000000e+00> : vector<256x4xf32>
    %69 = tpu.matmul %66, %68, %cst_26 {dimension_numbers = #tpu.dot_dimension_numbers<[1], [0], [0], [1], [0, 0, 1, 1], [], []>} : vector<256x12xbf16>, vector<12x4xbf16>, vector<256x4xf32> -> vector<256x4xf32>
    %70 = arith.addf %58, %69 : vector<256x4xf32>
    %cst_27 = arith.constant dense<0.000000e+00> : vector<4xf32>
    %71 = vector.multi_reduction <add>, %70, %cst_27 [0] : vector<256x4xf32> to vector<4xf32>
    %72 = vector.shape_cast %71 : vector<4xf32> to vector<1x4xf32>
    %cst_28 = arith.constant 3.906250e-03 : f32
    %73 = vector.broadcast %cst_28 : f32 to vector<1x4xf32>
    %74 = arith.mulf %72, %73 : vector<1x4xf32>
    %75 = vector.broadcast %74 : vector<1x4xf32> to vector<256x4xf32>
    %76 = arith.subf %70, %75 : vector<256x4xf32>
    %77 = arith.mulf %76, %76 : vector<256x4xf32>
    %cst_29 = arith.constant dense<0.000000e+00> : vector<4xf32>
    %78 = vector.multi_reduction <add>, %77, %cst_29 [0] : vector<256x4xf32> to vector<4xf32>
    %79 = vector.shape_cast %78 : vector<4xf32> to vector<1x4xf32>
    %cst_30 = arith.constant 3.906250e-03 : f32
    %80 = vector.broadcast %cst_30 : f32 to vector<1x4xf32>
    %81 = arith.mulf %79, %80 : vector<1x4xf32>
    %cst_31 = arith.constant 9.99999974E-6 : f32
    %82 = vector.broadcast %cst_31 : f32 to vector<1x4xf32>
    %83 = arith.addf %81, %82 : vector<1x4xf32>
    %84 = math.rsqrt %83 : vector<1x4xf32>
    %85 = vector.broadcast %84 : vector<1x4xf32> to vector<256x4xf32>
    %86 = arith.mulf %76, %85 : vector<256x4xf32>
    %cst_32 = arith.constant 0.000000e+00 : f32
    %87 = vector.broadcast %cst_32 : f32 to vector<256x4xf32>
    %88 = arith.cmpf oge, %86, %87 : vector<256x4xf32>
    %cst_33 = arith.constant 0.00999999977 : f32
    %89 = vector.broadcast %cst_33 : f32 to vector<256x4xf32>
    %90 = arith.mulf %89, %86 : vector<256x4xf32>
    %91 = arith.select %88, %86, %90 : vector<256x4xi1>, vector<256x4xf32>
    %c0_34 = arith.constant 0 : index
    %c0_35 = arith.constant 0 : index
    %c0_36 = arith.constant 0 : index
    %92 = vector.load %arg7[%c0_34, %c0_35, %c0_36] : memref<1x256x4xf32, #tpu.memory_space<vmem>>, vector<1x256x4xf32>
    %93 = vector.shape_cast %92 : vector<1x256x4xf32> to vector<256x4xf32>
    %94 = vector.shape_cast %91 : vector<256x4xf32> to vector<1x256x4xf32>
    tpu.vector_store %arg7[%c0_34, %c0_35, %c0_36], %94 {strides = array<i32>} : memref<1x256x4xf32, #tpu.memory_space<vmem>>, vector<1x256x4xf32>,
    return
  }
  func.func @transform_0(%arg0: i32, %arg1: i32) -> (i32, i32, i32) {
    %c0_i32 = arith.constant 0 : i32
    %c0_i32_0 = arith.constant 0 : i32
    %c0_i32_1 = arith.constant 0 : i32
    return %arg0, %c0_i32, %c0_i32_0 : i32, i32, i32
  }
  func.func @transform_1(%arg0: i32, %arg1: i32) -> (i32, i32, i32) {
    %c0_i32 = arith.constant 0 : i32
    %c0_i32_0 = arith.constant 0 : i32
    %c0_i32_1 = arith.constant 0 : i32
    return %arg0, %c0_i32, %c0_i32_0 : i32, i32, i32
  }
  func.func @transform_2(%arg0: i32, %arg1: i32) -> (i32, i32, i32) {
    %c0_i32 = arith.constant 0 : i32
    %c0_i32_0 = arith.constant 0 : i32
    %c0_i32_1 = arith.constant 0 : i32
    return %c0_i32, %c0_i32_0, %arg1 : i32, i32, i32
  }
  func.func @transform_3(%arg0: i32, %arg1: i32) -> (i32, i32) {
    %c0_i32 = arith.constant 0 : i32
    %c0_i32_0 = arith.constant 0 : i32
    %c0_i32_1 = arith.constant 0 : i32
    return %c0_i32, %c0_i32_0 : i32, i32
  }
  func.func @transform_4(%arg0: i32, %arg1: i32) -> (i32, i32) {
    %c0_i32 = arith.constant 0 : i32
    %c0_i32_0 = arith.constant 0 : i32
    %c0_i32_1 = arith.constant 0 : i32
    return %c0_i32, %c0_i32_0 : i32, i32
  }
  func.func @transform_5(%arg0: i32, %arg1: i32) -> (i32, i32, i32) {
    %c0_i32 = arith.constant 0 : i32
    %c0_i32_0 = arith.constant 0 : i32
    return %arg0, %c0_i32, %arg1 : i32, i32, i32
  }
}

</mosaic_0001>

<llo_original>
// kernel: conv_u_forward.4
$region0: #{conv_u_forward.4}
  #allocation0 [shape = 'u32[]', space=smem, size = 0x4, offset = 0x4, fixed_abs, tag = 'smem constant byte address 0x4 - core index']
  #allocation1 [shape = 'u32[144,128]{1,0:T(1,128)}', space=vmem, size = 0x12000, scoped, tag = 'internal scratch']
  %s0 = inlined_call_operand.vmem [shape: bf16[16,8], index: 0, kind: input, shape index: {}]
  %s1 = inlined_call_operand.vmem [shape: bf16[2,8,32], index: 1, kind: input, shape index: {}]
  %s2 = inlined_call_operand.vmem [shape: bf16[2,16,32], index: 2, kind: output, shape index: {}]
  %s3 = sld [smem:[#allocation0]]
  $region41: #{conv_u_forward.4} parent=0
    _
  %s5 = ssub.s32 1, %s3
  %s6 = scalar_select 0, %s5, %s3
  loop: start=0, step=1, limit=4
  $region2: #{conv_u_forward.4} parent=0 // loop_pre_header
    _
  $region3: #{conv_u_forward.4} parent=0 // loop_header
    %s8 = sphi 0, %s12
    %p9 = scmp.ge.s32.totalorder %s8, 4
    %s16 = sphi 0, %s16
    %s18 = sphi 0, %s16
    %s19 = sphi 0, %s18
    %s33 = sphi 0, %s19
    %s39 = sphi 0, %s41
    %s42 = sphi 0, %s39
    %s43 = sphi 0, %s42
    %s59 = sphi 0, %s43
    %s65 = sphi 0, %s67
    %s68 = sphi 0, %s65
    %s69 = sphi 0, %s68
    %s85 = sphi 0, %s69
  $region4: #{conv_u_forward.4} parent=0 // loop_header_branch
    %11 = sbr.rel (%p9) target = $region8
  $region5: #{conv_u_forward.4} parent=0 // loop_body
    %s13 = ssub.s32 %s8, 1
    %s14 = ssub.s32 %s8, 2
    %s15 = sadd.s32 %s8, 1
    %s17 = sadd.s32 %s16, 1
    %p20 = scmp.eq.s32.totalorder %s8, 1
    %p21 = scmp.ne.s32.totalorder %s16, %s18
    %p22 = scmp.eq.s32.totalorder %s8, 0
    %p23 = por %p21, %p22
    %p24 = scmp.ne.s32.totalorder %s16, %s18
    %p25 = scmp.eq.s32.totalorder %s13, 1
    %p26 = por %p24, %p25
    %p27 = scmp.ne.s32.totalorder %s18, %s19
    %p28 = scmp.eq.s32.totalorder %s13, 0
    %p29 = por %p27, %p28
    %p30 = scmp.ne.s32.totalorder %s18, %s19
    %p31 = scmp.eq.s32.totalorder %s14, 1
    %p32 = por %p30, %p31
    %p34 = scmp.ne.s32.totalorder %s19, %s33
    %p35 = scmp.eq.s32.totalorder %s14, 0
    %p36 = por %p34, %p35
    %s37 = ssub.s32 %s8, %s15
    %p38 = scmp.eq.s32.totalorder %s37, 0
    %s40 = sadd.s32 %s39, 1
    %s41 = scalar_select %p38, %s39, %s40
    %p44 = pneg %p38
    %p45 = scmp.eq.s32.totalorder %s8, 1
    %p46 = por %p44, %p45
    %p47 = scmp.ne.s32.totalorder %s39, %s42
    %p48 = scmp.eq.s32.totalorder %s8, 0
    %p49 = por %p47, %p48
    %p50 = scmp.ne.s32.totalorder %s39, %s42
    %p51 = scmp.eq.s32.totalorder %s13, 1
    %p52 = por %p50, %p51
    %p53 = scmp.ne.s32.totalorder %s42, %s43
    %p54 = scmp.eq.s32.totalorder %s13, 0
    %p55 = por %p53, %p54
    %p56 = scmp.ne.s32.totalorder %s42, %s43
    %p57 = scmp.eq.s32.totalorder %s14, 1
    %p58 = por %p56, %p57
    %p60 = scmp.ne.s32.totalorder %s43, %s59
    %p61 = scmp.eq.s32.totalorder %s14, 0
    %p62 = por %p60, %p61
    %s63 = ssub.s32 %s8, %s15
    %p64 = scmp.eq.s32.totalorder %s63, 0
    %s66 = sadd.s32 %s65, 1
    %s67 = scalar_select %p64, %s65, %s66
    %p70 = pneg %p64
    %p71 = scmp.eq.s32.totalorder %s8, 1
    %p72 = por %p70, %p71
    %p73 = scmp.ne.s32.totalorder %s65, %s68
    %p74 = scmp.eq.s32.totalorder %s8, 0
    %p75 = por %p73, %p74
    %p76 = scmp.ne.s32.totalorder %s65, %s68
    %p77 = scmp.eq.s32.totalorder %s13, 1
    %p78 = por %p76, %p77
    %p79 = scmp.ne.s32.totalorder %s68, %s69
    %p80 = scmp.eq.s32.totalorder %s13, 0
    %p81 = por %p79, %p80
    %p82 = scmp.ne.s32.totalorder %s68, %s69
    %p83 = scmp.eq.s32.totalorder %s14, 1
    %p84 = por %p82, %p83
    %p86 = scmp.ne.s32.totalorder %s69, %s85
    %p87 = scmp.eq.s32.totalorder %s14, 0
    %p88 = por %p86, %p87
    %p89 = scmp.le.s32.totalorder 1, %s8
    %p90 = scmp.lt.s32.totalorder %s8, 3
    %p91 = pnand %p89, %p90
    %p92 = pneg %p91
    // Predicated region
    $region9: #{conv_u_forward.4} parent=5 // pred_check
      _
    $region10: #{conv_u_forward.4} parent=5 // pred_check_branch
      %94 = sbr.rel (%p91) target = $region12
    $region11: #{conv_u_forward.4} parent=5 // pred_region
      %s95 = ssub.s32 %s8, 1
      // Predicated region
      $region13: #{conv_u_forward.4} parent=11 // pred_check
        %p96 = pneg %p29
      $region14: #{conv_u_forward.4} parent=11 // pred_check_branch
        %98 = sbr.rel (%p96) target = $region16
      $region15: #{conv_u_forward.4} parent=11 // pred_region
        _
      $region16: #{conv_u_forward.4} parent=11 // pred_fallthru
        _
    $region12: #{conv_u_forward.4} parent=5 // pred_fallthru
      _
    %p99 = scmp.lt.s32.totalorder %s8, 2
    // Predicated region
    $region17: #{conv_u_forward.4} parent=5 // pred_check
      %p100 = pneg %p99
    $region18: #{conv_u_forward.4} parent=5 // pred_check_branch
      %102 = sbr.rel (%p100) target = $region20
    $region19: #{conv_u_forward.4} parent=5 // pred_region
      // Predicated region
      $region21: #{conv_u_forward.4} parent=19 // pred_check
        %p103 = pneg %p49
      $region22: #{conv_u_forward.4} parent=19 // pred_check_branch
        %105 = sbr.rel (%p103) target = $region24
      $region23: #{conv_u_forward.4} parent=19 // pred_region
        %p106 = scmp.lt.s32.totalorder %s8, 1
        %s107 = scalar_select %p106, %s8, 1
        %s108 = smul.addr %s107, 4
        %s109 = scalar_lea.vmem %s1, %s108
      $region24: #{conv_u_forward.4} parent=19 // pred_fallthru
        _
    $region20: #{conv_u_forward.4} parent=5 // pred_fallthru
      _
    %p110 = scmp.le.s32.totalorder 1, %s8
    %p111 = scmp.lt.s32.totalorder %s8, 3
    %p112 = pnand %p110, %p111
    %p113 = pneg %p112
    // Predicated region
    $region25: #{conv_u_forward.4} parent=5 // pred_check
      _
    $region26: #{conv_u_forward.4} parent=5 // pred_check_branch
      %115 = sbr.rel (%p112) target = $region28
    $region27: #{conv_u_forward.4} parent=5 // pred_region
      %s116 = ssub.s32 %s8, 1
      %p117 = pneg %p29
      %p118 = pneg %p26
      %p119 = scmp.lt.s32.totalorder %s13, 1
      %s120 = scalar_select %p119, %s13, 1
      %s121 = smul.addr %s120, 4
      %s122 = scalar_lea.vmem %s1, %s121
      %p123 = pneg %p55
      %p124 = pneg %p52
      %p125 = pneg %p81
      %p126 = pneg %p78
      %p127 = scmp.lt.s32.totalorder %s13, 1
      %s128 = scalar_select %p127, %s13, 1
      %s129 = smul.addr %s128, 2
      %s130 = smul.addr %s129, 4
      %s131 = scalar_lea.vmem %s2, %s130
      %p132 = scmp.lt.s32.totalorder %s13, 1
      %s133 = scalar_select %p132, %s13, 1
      %s134 = smul.addr %s133, 4
      %s135 = scalar_lea.vmem %s1, %s134
      %p136 = scmp.lt.s32.totalorder %s13, 1
      %s137 = scalar_select %p136, %s13, 1
      %s138 = smul.addr %s137, 2
      %s139 = smul.addr %s138, 4
      %s140 = scalar_lea.vmem %s2, %s139
      %v142 = vld [vmem:[%s0] sm:$0xf]
      %v143 = vld [vmem:[%s0 + $0x4] sm:$0xf]
      %v144 = vld [vmem:[%s135] sm:$0xf]
      %v147 = vunpack.c.l.b16 %v142
      %v148 = vunpack.c.l.b16 %v143
      %v149 = vpack.c.b16 %v148, %v147
      %vm150 = vcmask 64512
      %v152 = vsel %vm150, %v149, 0
      %vm154 = vcmask 1043456
      %v156 = vsel %vm154, %v144, 0
      %158 = vmatprep.subr.bf16.mxu0 0
      %159 = vmatpush1.bf16.msra.mxu0 %v156
      %160 = vmatprep.subr.bf16.mxu0 0
      %161 = vmatpush1.bf16.msra.mxu0 0
      %162 = vmatprep.subr.bf16.mxu0 0
      %163 = vmatpush1.bf16.msra.mxu0 0
      %164 = vmatprep.subr.bf16.mxu0 0
      %165 = vmatpush1.bf16.msra.mxu0 0
      %166 = vmatprep.subr.bf16.mxu0 0
      %167 = vmatpush1.bf16.msra.mxu0 0
      %168 = vmatprep.subr.bf16.mxu0 0
      %169 = vmatpush1.bf16.msra.mxu0 0
      %170 = vmatprep.subr.bf16.mxu0 0
      %171 = vmatpush1.bf16.msra.mxu0 0
      %172 = vmatprep.subr.bf16.mxu0 0
      %173 = vmatpush1.bf16.msra.mxu0 0
      %174 = vmatprep.subr.bf16.mxu0 0
      %175 = vmatpush1.bf16.msra.mxu0 0
      %176 = vmatprep.subr.bf16.mxu0 0
      %177 = vmatpush1.bf16.msra.mxu0 0
      %178 = vmatprep.subr.bf16.mxu0 0
      %179 = vmatpush1.bf16.msra.mxu0 0
      %180 = vmatprep.subr.bf16.mxu0 0
      %181 = vmatpush1.bf16.msra.mxu0 0
      %182 = vmatprep.subr.bf16.mxu0 0
      %183 = vmatpush1.bf16.msra.mxu0 0
      %184 = vmatprep.subr.bf16.mxu0 0
      %185 = vmatpush1.bf16.msra.mxu0 0
      %186 = vmatprep.subr.bf16.mxu0 0
      %187 = vmatpush1.bf16.msra.mxu0 0
      %188 = vmatprep.subr.bf16.mxu0 0
      %189 = vmatpush1.bf16.msra.mxu0 0
      %190 = vmatprep.mubr.bf16.mxu0 0
      %191 = vmatmul.mubr.bf16.gmra.mrb[0].mxu0 %v152
      %v192 = vpop.f32.mrb[0].mxu0
      %v193 = vadd.f32 0.0, %v192
      %v194 = vpop.f32.mrb[0].mxu0
      %v195 = vpop.f32.mrb[0].mxu0
      %v196 = vadd.f32 0.0, %v195
      %v197 = vpop.f32.mrb[0].mxu0
      %198 = vdwg.mxu0
      %v199 = vpack.c.bf16 %v196, %v193
      %v201 = vunpack.c.l.b16 %v199
      %v202 = vunpack.c.h.b16 %v199
      %v203 = vpack.c.b16 %v201, %v201
      %v204 = vpack.c.b16 %v202, %v202
      %vm207 = vcmask 257024
      %208 = vst.msk [vmem:[%s140] sm:$0xf] %vm207, %v203
      %209 = vst.msk [vmem:[%s140 + $0x4] sm:$0xf] %vm207, %v204
      %p210 = scmp.lt.s32.totalorder %s13, 1
      %s211 = scalar_select %p210, %s13, 1
      %s212 = smul.addr %s211, 2
      %s213 = smul.addr %s212, 4
      %s214 = scalar_lea.vmem %s2, %s213
      // Predicated region
      $region29: #{conv_u_forward.4} parent=27 // pred_check
        %p215 = pneg %p78
      $region30: #{conv_u_forward.4} parent=27 // pred_check_branch
        %217 = sbr.rel (%p215) target = $region32
      $region31: #{conv_u_forward.4} parent=27 // pred_region
        _
      $region32: #{conv_u_forward.4} parent=27 // pred_fallthru
        _
    $region28: #{conv_u_forward.4} parent=5 // pred_fallthru
      _
    %p218 = scmp.le.s32.totalorder 2, %s8
    // Predicated region
    $region33: #{conv_u_forward.4} parent=5 // pred_check
      %p219 = pneg %p218
    $region34: #{conv_u_forward.4} parent=5 // pred_check_branch
      %221 = sbr.rel (%p219) target = $region36
    $region35: #{conv_u_forward.4} parent=5 // pred_region
      %s222 = ssub.s32 %s8, 2
      // Predicated region
      $region37: #{conv_u_forward.4} parent=35 // pred_check
        %p223 = pneg %p84
      $region38: #{conv_u_forward.4} parent=35 // pred_check_branch
        %225 = sbr.rel (%p223) target = $region40
      $region39: #{conv_u_forward.4} parent=35 // pred_region
        %p226 = scmp.lt.s32.totalorder %s14, 1
        %s227 = scalar_select %p226, %s14, 1
        %s228 = smul.addr %s227, 2
        %s229 = smul.addr %s228, 4
        %s230 = scalar_lea.vmem %s2, %s229
      $region40: #{conv_u_forward.4} parent=35 // pred_fallthru
        _
    $region36: #{conv_u_forward.4} parent=5 // pred_fallthru
      _
  $region6: #{conv_u_forward.4} parent=0 // loop_footer
    %s12 = sadd.s32 1, %s8
  $region7: #{conv_u_forward.4} parent=0 // loop_footer_branch
    %7 = sbr.rel target = $region3
  $region8: #{conv_u_forward.4} parent=0 // loop_exit
    _

// kernel: conv_u_forward.3
$region0: #{conv_u_forward.3}
  #allocation0 [shape = 'u32[]', space=smem, size = 0x4, offset = 0x4, fixed_abs, tag = 'smem constant byte address 0x4 - core index']
  #allocation1 [shape = 'u32[144,128]{1,0:T(1,128)}', space=vmem, size = 0x12000, scoped, tag = 'internal scratch']
  %s0 = inlined_call_operand.vmem [shape: bf16[2,64,8], index: 0, kind: input, shape index: {}]
  %s1 = inlined_call_operand.vmem [shape: bf16[3,24,4], index: 1, kind: input, shape index: {}]
  %s2 = inlined_call_operand.vmem [shape: bf16[4,2], index: 2, kind: input, shape index: {}]
  %s3 = inlined_call_operand.vmem [shape: f32[64,1], index: 3, kind: input, shape index: {}]
  %s4 = inlined_call_operand.vmem [shape: f32[64,1], index: 4, kind: input, shape index: {}]
  %s5 = inlined_call_operand.vmem [shape: bf16[2,64,4], index: 5, kind: output, shape index: {}]
  %s6 = sld [smem:[#allocation0]]
  $region53: #{conv_u_forward.3} parent=0
    _
  %s8 = ssub.s32 1, %s6
  %s9 = scalar_select 0, %s8, %s6
  loop: start=0, step=1, limit=4
  $region2: #{conv_u_forward.3} parent=0 // loop_pre_header
    _
  $region3: #{conv_u_forward.3} parent=0 // loop_header
    %s11 = sphi 0, %s15
    %p12 = scmp.ge.s32.totalorder %s11, 4
    %s21 = sphi 0, %s23
    %s24 = sphi 0, %s21
    %s25 = sphi 0, %s24
    %s41 = sphi 0, %s25
    %s45 = sphi 0, %s45
    %s47 = sphi 0, %s45
    %s48 = sphi 0, %s47
    %s62 = sphi 0, %s48
    %s66 = sphi 0, %s66
    %s68 = sphi 0, %s66
    %s69 = sphi 0, %s68
    %s83 = sphi 0, %s69
    %s87 = sphi 0, %s87
    %s89 = sphi 0, %s87
    %s90 = sphi 0, %s89
    %s104 = sphi 0, %s90
    %s108 = sphi 0, %s108
    %s110 = sphi 0, %s108
    %s111 = sphi 0, %s110
    %s125 = sphi 0, %s111
    %s131 = sphi 0, %s133
    %s134 = sphi 0, %s131
    %s135 = sphi 0, %s134
    %s151 = sphi 0, %s135
  $region4: #{conv_u_forward.3} parent=0 // loop_header_branch
    %14 = sbr.rel (%p12) target = $region8
  $region5: #{conv_u_forward.3} parent=0 // loop_body
    %s16 = ssub.s32 %s11, 1
    %s17 = ssub.s32 %s11, 2
    %s18 = sadd.s32 %s11, 1
    %s19 = ssub.s32 %s11, %s18
    %p20 = scmp.eq.s32.totalorder %s19, 0
    %s22 = sadd.s32 %s21, 1
    %s23 = scalar_select %p20, %s21, %s22
    %p26 = pneg %p20
    %p27 = scmp.eq.s32.totalorder %s11, 1
    %p28 = por %p26, %p27
    %p29 = scmp.ne.s32.totalorder %s21, %s24
    %p30 = scmp.eq.s32.totalorder %s11, 0
    %p31 = por %p29, %p30
    %p32 = scmp.ne.s32.totalorder %s21, %s24
    %p33 = scmp.eq.s32.totalorder %s16, 1
    %p34 = por %p32, %p33
    %p35 = scmp.ne.s32.totalorder %s24, %s25
    %p36 = scmp.eq.s32.totalorder %s16, 0
    %p37 = por %p35, %p36
    %p38 = scmp.ne.s32.totalorder %s24, %s25
    %p39 = scmp.eq.s32.totalorder %s17, 1
    %p40 = por %p38, %p39
    %p42 = scmp.ne.s32.totalorder %s25, %s41
    %p43 = scmp.eq.s32.totalorder %s17, 0
    %p44 = por %p42, %p43
    %s46 = sadd.s32 %s45, 1
    %p49 = scmp.eq.s32.totalorder %s11, 1
    %p50 = scmp.ne.s32.totalorder %s45, %s47
    %p51 = scmp.eq.s32.totalorder %s11, 0
    %p52 = por %p50, %p51
    %p53 = scmp.ne.s32.totalorder %s45, %s47
    %p54 = scmp.eq.s32.totalorder %s16, 1
    %p55 = por %p53, %p54
    %p56 = scmp.ne.s32.totalorder %s47, %s48
    %p57 = scmp.eq.s32.totalorder %s16, 0
    %p58 = por %p56, %p57
    %p59 = scmp.ne.s32.totalorder %s47, %s48
    %p60 = scmp.eq.s32.totalorder %s17, 1
    %p61 = por %p59, %p60
    %p63 = scmp.ne.s32.totalorder %s48, %s62
    %p64 = scmp.eq.s32.totalorder %s17, 0
    %p65 = por %p63, %p64
    %s67 = sadd.s32 %s66, 1
    %p70 = scmp.eq.s32.totalorder %s11, 1
    %p71 = scmp.ne.s32.totalorder %s66, %s68
    %p72 = scmp.eq.s32.totalorder %s11, 0
    %p73 = por %p71, %p72
    %p74 = scmp.ne.s32.totalorder %s66, %s68
    %p75 = scmp.eq.s32.totalorder %s16, 1
    %p76 = por %p74, %p75
    %p77 = scmp.ne.s32.totalorder %s68, %s69
    %p78 = scmp.eq.s32.totalorder %s16, 0
    %p79 = por %p77, %p78
    %p80 = scmp.ne.s32.totalorder %s68, %s69
    %p81 = scmp.eq.s32.totalorder %s17, 1
    %p82 = por %p80, %p81
    %p84 = scmp.ne.s32.totalorder %s69, %s83
    %p85 = scmp.eq.s32.totalorder %s17, 0
    %p86 = por %p84, %p85
    %s88 = sadd.s32 %s87, 1
    %p91 = scmp.eq.s32.totalorder %s11, 1
    %p92 = scmp.ne.s32.totalorder %s87, %s89
    %p93 = scmp.eq.s32.totalorder %s11, 0
    %p94 = por %p92, %p93
    %p95 = scmp.ne.s32.totalorder %s87, %s89
    %p96 = scmp.eq.s32.totalorder %s16, 1
    %p97 = por %p95, %p96
    %p98 = scmp.ne.s32.totalorder %s89, %s90
    %p99 = scmp.eq.s32.totalorder %s16, 0
    %p100 = por %p98, %p99
    %p101 = scmp.ne.s32.totalorder %s89, %s90
    %p102 = scmp.eq.s32.totalorder %s17, 1
    %p103 = por %p101, %p102
    %p105 = scmp.ne.s32.totalorder %s90, %s104
    %p106 = scmp.eq.s32.totalorder %s17, 0
    %p107 = por %p105, %p106
    %s109 = sadd.s32 %s108, 1
    %p112 = scmp.eq.s32.totalorder %s11, 1
    %p113 = scmp.ne.s32.totalorder %s108, %s110
    %p114 = scmp.eq.s32.totalorder %s11, 0
    %p115 = por %p113, %p114
    %p116 = scmp.ne.s32.totalorder %s108, %s110
    %p117 = scmp.eq.s32.totalorder %s16, 1
    %p118 = por %p116, %p117
    %p119 = scmp.ne.s32.totalorder %s110, %s111
    %p120 = scmp.eq.s32.totalorder %s16, 0
    %p121 = por %p119, %p120
    %p122 = scmp.ne.s32.totalorder %s110, %s111
    %p123 = scmp.eq.s32.totalorder %s17, 1
    %p124 = por %p122, %p123
    %p126 = scmp.ne.s32.totalorder %s111, %s125
    %p127 = scmp.eq.s32.totalorder %s17, 0
    %p128 = por %p126, %p127
    %s129 = ssub.s32 %s11, %s18
    %p130 = scmp.eq.s32.totalorder %s129, 0
    %s132 = sadd.s32 %s131, 1
    %s133 = scalar_select %p130, %s131, %s132
    %p136 = pneg %p130
    %p137 = scmp.eq.s32.totalorder %s11, 1
    %p138 = por %p136, %p137
    %p139 = scmp.ne.s32.totalorder %s131, %s134
    %p140 = scmp.eq.s32.totalorder %s11, 0
    %p141 = por %p139, %p140
    %p142 = scmp.ne.s32.totalorder %s131, %s134
    %p143 = scmp.eq.s32.totalorder %s16, 1
    %p144 = por %p142, %p143
    %p145 = scmp.ne.s32.totalorder %s134, %s135
    %p146 = scmp.eq.s32.totalorder %s16, 0
    %p147 = por %p145, %p146
    %p148 = scmp.ne.s32.totalorder %s134, %s135
    %p149 = scmp.eq.s32.totalorder %s17, 1
    %p150 = por %p148, %p149
    %p152 = scmp.ne.s32.totalorder %s135, %s151
    %p153 = scmp.eq.s32.totalorder %s17, 0
    %p154 = por %p152, %p153
    %p155 = scmp.le.s32.totalorder 1, %s11
    %p156 = scmp.lt.s32.totalorder %s11, 3
    %p157 = pnand %p155, %p156
    %p158 = pneg %p157
    // Predicated region
    $region9: #{conv_u_forward.3} parent=5 // pred_check
      _
    $region10: #{conv_u_forward.3} parent=5 // pred_check_branch
      %160 = sbr.rel (%p157) target = $region12
    $region11: #{conv_u_forward.3} parent=5 // pred_region
      %s161 = ssub.s32 %s11, 1
      // Predicated region
      $region13: #{conv_u_forward.3} parent=11 // pred_check
        %p162 = pneg %p58
      $region14: #{conv_u_forward.3} parent=11 // pred_check_branch
        %164 = sbr.rel (%p162) target = $region16
      $region15: #{conv_u_forward.3} parent=11 // pred_region
        _
      $region16: #{conv_u_forward.3} parent=11 // pred_fallthru
        _
      // Predicated region
      $region17: #{conv_u_forward.3} parent=11 // pred_check
        %p165 = pneg %p79
      $region18: #{conv_u_forward.3} parent=11 // pred_check_branch
        %167 = sbr.rel (%p165) target = $region20
      $region19: #{conv_u_forward.3} parent=11 // pred_region
        _
      $region20: #{conv_u_forward.3} parent=11 // pred_fallthru
        _
      // Predicated region
      $region21: #{conv_u_forward.3} parent=11 // pred_check
        %p168 = pneg %p100
      $region22: #{conv_u_forward.3} parent=11 // pred_check_branch
        %170 = sbr.rel (%p168) target = $region24
      $region23: #{conv_u_forward.3} parent=11 // pred_region
        _
      $region24: #{conv_u_forward.3} parent=11 // pred_fallthru
        _
      // Predicated region
      $region25: #{conv_u_forward.3} parent=11 // pred_check
        %p171 = pneg %p121
      $region26: #{conv_u_forward.3} parent=11 // pred_check_branch
        %173 = sbr.rel (%p171) target = $region28
      $region27: #{conv_u_forward.3} parent=11 // pred_region
        _
      $region28: #{conv_u_forward.3} parent=11 // pred_fallthru
        _
    $region12: #{conv_u_forward.3} parent=5 // pred_fallthru
      _
    %p174 = scmp.lt.s32.totalorder %s11, 2
    // Predicated region
    $region29: #{conv_u_forward.3} parent=5 // pred_check
      %p175 = pneg %p174
    $region30: #{conv_u_forward.3} parent=5 // pred_check_branch
      %177 = sbr.rel (%p175) target = $region32
    $region31: #{conv_u_forward.3} parent=5 // pred_region
      // Predicated region
      $region33: #{conv_u_forward.3} parent=31 // pred_check
        %p178 = pneg %p31
      $region34: #{conv_u_forward.3} parent=31 // pred_check_branch
        %180 = sbr.rel (%p178) target = $region36
      $region35: #{conv_u_forward.3} parent=31 // pred_region
        %p181 = scmp.lt.s32.totalorder %s11, 1
        %s182 = scalar_select %p181, %s11, 1
        %s183 = smul.addr %s182, 8
        %s184 = smul.addr %s183, 4
        %s185 = scalar_lea.vmem %s0, %s184
      $region36: #{conv_u_forward.3} parent=31 // pred_fallthru
        _
    $region32: #{conv_u_forward.3} parent=5 // pred_fallthru
      _
    %p186 = scmp.le.s32.totalorder 1, %s11
    %p187 = scmp.lt.s32.totalorder %s11, 3
    %p188 = pnand %p186, %p187
    %p189 = pneg %p188
    // Predicated region
    $region37: #{conv_u_forward.3} parent=5 // pred_check
      _
    $region38: #{conv_u_forward.3} parent=5 // pred_check_branch
      %191 = sbr.rel (%p188) target = $region40
    $region39: #{conv_u_forward.3} parent=5 // pred_region
      %s192 = ssub.s32 %s11, 1
      %p193 = scmp.lt.s32.totalorder %s16, 1
      %s194 = scalar_select %p193, %s16, 1
      %s195 = smul.addr %s194, 8
      %s196 = smul.addr %s195, 4
      %s197 = scalar_lea.vmem %s0, %s196
      %p198 = pneg %p37
      %p199 = pneg %p34
      %p200 = pneg %p58
      %p201 = pneg %p55
      %p202 = pneg %p79
      %p203 = pneg %p76
      %p204 = pneg %p100
      %p205 = pneg %p97
      %p206 = pneg %p121
      %p207 = pneg %p118
      %p208 = pneg %p147
      %p209 = pneg %p144
      %p210 = scmp.lt.s32.totalorder %s16, 1
      %s211 = scalar_select %p210, %s16, 1
      %s212 = smul.addr %s211, 8
      %s213 = smul.addr %s212, 4
      %s214 = scalar_lea.vmem %s5, %s213
      %p215 = scmp.lt.s32.totalorder %s16, 1
      %s216 = scalar_select %p215, %s16, 1
      %s217 = smul.addr %s216, 8
      %s218 = smul.addr %s217, 4
      %s219 = scalar_lea.vmem %s0, %s218
      %p220 = scmp.lt.s32.totalorder %s16, 1
      %s221 = scalar_select %p220, %s16, 1
      %s222 = smul.addr %s221, 8
      %s223 = smul.addr %s222, 4
      %s224 = scalar_lea.vmem %s5, %s223
      %v226 = vld [vmem:[%s3] sm:$0xff]
      %v227 = vld [vmem:[%s3 + $0x8] sm:$0xff]
      %v228 = vld [vmem:[%s3 + $0x10] sm:$0xff]
      %v229 = vld [vmem:[%s3 + $0x18] sm:$0xff]
      %v230 = vld [vmem:[%s3 + $0x20] sm:$0xff]
      %v231 = vld [vmem:[%s3 + $0x28] sm:$0xff]
      %v232 = vld [vmem:[%s3 + $0x30] sm:$0xff]
      %v233 = vld [vmem:[%s3 + $0x38] sm:$0xff]
      %v234 = vld [vmem:[%s4] sm:$0xff]
      %v235 = vld [vmem:[%s4 + $0x8] sm:$0xff]
      %v236 = vld [vmem:[%s4 + $0x10] sm:$0xff]
      %v237 = vld [vmem:[%s4 + $0x18] sm:$0xff]
      %v238 = vld [vmem:[%s4 + $0x20] sm:$0xff]
      %v239 = vld [vmem:[%s4 + $0x28] sm:$0xff]
      %v240 = vld [vmem:[%s4 + $0x30] sm:$0xff]
      %v241 = vld [vmem:[%s4 + $0x38] sm:$0xff]
      %v242 = vld [vmem:[%s219] sm:$0xf]
      %v243 = vld [vmem:[%s219 + $0x4] sm:$0xf]
      %v244 = vld [vmem:[%s219 + $0x8] sm:$0xf]
      %v245 = vld [vmem:[%s219 + $0xc] sm:$0xf]
      %v246 = vld [vmem:[%s219 + $0x10] sm:$0xf]
      %v247 = vld [vmem:[%s219 + $0x14] sm:$0xf]
      %v248 = vld [vmem:[%s219 + $0x18] sm:$0xf]
      %v249 = vld [vmem:[%s219 + $0x1c] sm:$0xf]
      %v250 = vpack.c.bf16 %v227, %v226
      %v251 = vpack.c.bf16 %v229, %v228
      %v252 = vpack.c.bf16 %v231, %v230
      %v253 = vpack.c.bf16 %v233, %v232
      %v254 = vpack.c.bf16 %v235, %v234
      %v255 = vpack.c.bf16 %v237, %v236
      %v256 = vpack.c.bf16 %v239, %v238
      %v257 = vpack.c.bf16 %v241, %v240
      %v266 = vunpack.c.l.b16 %v242
      %v267 = vunpack.c.l.b16 %v243
      %v268 = vunpack.c.l.b16 %v244
      %v269 = vunpack.c.l.b16 %v245
      %v270 = vunpack.c.l.b16 %v246
      %v271 = vunpack.c.l.b16 %v247
      %v272 = vunpack.c.l.b16 %v248
      %v273 = vunpack.c.l.b16 %v249
      %v274 = vpack.c.b16 %v267, %v266
      %v275 = vpack.c.b16 %v269, %v268
      %v276 = vpack.c.b16 %v271, %v270
      %v277 = vpack.c.b16 %v273, %v272
      %vm278 = vsmask.f32 4352
      %v280 = vshrl.u32 %v274, 16
      %v282 = vrot.slane %v280, 3
      %v283 = vshll.u32 %v274, 16
      %v285 = vrot.slane %v283, 4
      %v286 = vor.u32 %v282, %v285
      %v288 = vshrl.u32 %v275, 16
      %v290 = vrot.slane %v288, 3
      %v291 = vshll.u32 %v275, 16
      %v293 = vrot.slane %v291, 4
      %v294 = vor.u32 %v290, %v293
      %v295 = vsel %vm278, %v286, %v294
      %v297 = vshrl.u32 %v276, 16
      %v299 = vrot.slane %v297, 3
      %v300 = vshll.u32 %v276, 16
      %v302 = vrot.slane %v300, 4
      %v303 = vor.u32 %v299, %v302
      %v304 = vsel %vm278, %v294, %v303
      %v306 = vshrl.u32 %v277, 16
      %v308 = vrot.slane %v306, 3
      %v309 = vshll.u32 %v277, 16
      %v311 = vrot.slane %v309, 4
      %v312 = vor.u32 %v308, %v311
      %v313 = vsel %vm278, %v303, %v312
      %vm319 = vcmask 1044480
      %vm320 = vmand %vm319, %vm278
      %v321 = vsel %vm320, 0, %v286
      %v322 = vsel %vm320, %v312, 0
      %324 = vset.pattern.permute.xlu0 0
      %325 = vperm.xlu0 %324, %v250
      %v326 = vpop.permute.xlu0 %325
      %329 = vset.pattern.permute.xlu0 0
      %330 = vperm.xlu0 %329, %v251
      %v331 = vpop.permute.xlu0 %330
      %334 = vset.pattern.permute.xlu0 0
      %335 = vperm.xlu0 %334, %v252
      %v336 = vpop.permute.xlu0 %335
      %339 = vset.pattern.permute.xlu0 0
      %340 = vperm.xlu0 %339, %v253
      %v341 = vpop.permute.xlu0 %340
      %v343 = vmul.bf16 %v321, %v326
      %v344 = vmul.bf16 %v295, %v331
      %v345 = vmul.bf16 %v304, %v336
      %v346 = vmul.bf16 %v313, %v341
      %348 = vset.pattern.permute.xlu0 0
      %349 = vperm.xlu0 %348, %v254
      %v350 = vpop.permute.xlu0 %349
      %352 = vset.pattern.permute.xlu0 0
      %353 = vperm.xlu0 %352, %v255
      %v354 = vpop.permute.xlu0 %353
      %356 = vset.pattern.permute.xlu0 0
      %357 = vperm.xlu0 %356, %v256
      %v358 = vpop.permute.xlu0 %357
      %360 = vset.pattern.permute.xlu0 0
      %361 = vperm.xlu0 %360, %v257
      %v362 = vpop.permute.xlu0 %361
      %vm367 = vcmask 1040384
      %v368 = vrot.slane %v350, 7
      %v369 = vrot.slane %v354, 7
      %v370 = vsel %vm367, %v368, %v369
      %v371 = vrot.slane %v358, 7
      %v372 = vsel %vm367, %v369, %v371
      %v373 = vrot.slane %v362, 7
      %v374 = vsel %vm367, %v371, %v373
      %v380 = vmul.bf16 %v321, %v368
      %v381 = vmul.bf16 %v295, %v370
      %v382 = vmul.bf16 %v304, %v372
      %v383 = vmul.bf16 %v313, %v374
      %v384 = vmul.bf16 %v322, %v373
      %vm385 = vsmask.f32 7424
      %v387 = vshrl.u32 %v321, 16
      %v389 = vshll.u32 %v321, 16
      %v391 = vrot.slane %v389, 1
      %v392 = vor.u32 %v387, %v391
      %v394 = vshll.u32 %v295, 16
      %v396 = vrot.slane %v394, 1
      %v397 = vsel %vm385, %v392, %v396
      %v398 = vshrl.u32 %v295, 16
      %v400 = vor.u32 %v398, %v396
      %v402 = vshll.u32 %v304, 16
      %v404 = vrot.slane %v402, 1
      %v405 = vsel %vm385, %v400, %v404
      %v406 = vshrl.u32 %v304, 16
      %v408 = vor.u32 %v406, %v404
      %v410 = vshll.u32 %v313, 16
      %v412 = vrot.slane %v410, 1
      %v413 = vsel %vm385, %v408, %v412
      %v414 = vshrl.u32 %v313, 16
      %v416 = vor.u32 %v414, %v412
      %v418 = vshll.u32 %v322, 16
      %v420 = vrot.slane %v418, 1
      %v421 = vsel %vm385, %v416, %v420
      %422 = vrot.lane.b32.xlu0 %v397, 8
      %v423 = vpop.permute.xlu0 %422
      %424 = vrot.lane.b32.xlu0 %v405, 8
      %v425 = vpop.permute.xlu0 %424
      %426 = vrot.lane.b32.xlu0 %v413, 8
      %v427 = vpop.permute.xlu0 %426
      %428 = vrot.lane.b32.xlu0 %v421, 8
      %v429 = vpop.permute.xlu0 %428
      %vm435 = vcmask 1046528
      %v436 = vrot.slane %v380, 1
      %v437 = vrot.slane %v381, 1
      %v438 = vsel %vm435, %v436, %v437
      %v439 = vrot.slane %v382, 1
      %v440 = vsel %vm435, %v437, %v439
      %v441 = vrot.slane %v383, 1
      %v442 = vsel %vm435, %v439, %v441
      %v443 = vrot.slane %v384, 1
      %v444 = vsel %vm435, %v441, %v443
      %445 = vrot.lane.b32.xlu0 %v438, 16
      %v446 = vpop.permute.xlu0 %445
      %447 = vrot.lane.b32.xlu0 %v440, 16
      %v448 = vpop.permute.xlu0 %447
      %449 = vrot.lane.b32.xlu0 %v442, 16
      %v450 = vpop.permute.xlu0 %449
      %451 = vrot.lane.b32.xlu0 %v444, 16
      %v452 = vpop.permute.xlu0 %451
      %vm453 = vcmask 64512
      %v456 = vsel %vm453, %v343, %v423
      %v459 = vsel %vm453, %v344, %v425
      %v462 = vsel %vm453, %v345, %v427
      %v465 = vsel %vm453, %v346, %v429
      %vm466 = vcmask 130048
      %v468 = vsel %vm466, %v456, %v446
      %v470 = vsel %vm466, %v459, %v448
      %v472 = vsel %vm466, %v462, %v450
      %v474 = vsel %vm466, %v465, %v452
      %v475 = vld [vmem:[%s1] sm:$0xf]
      %v476 = vld [vmem:[%s1 + $0x4] sm:$0xf]
      %v477 = vld [vmem:[%s1 + $0x8] sm:$0xf]
      %vm482 = vcmask 1043456
      %v483 = vrot.slane %v326, 4
      %v484 = vrot.slane %v331, 4
      %v485 = vsel %vm482, %v483, %v484
      %v486 = vrot.slane %v336, 4
      %v487 = vsel %vm482, %v484, %v486
      %v488 = vrot.slane %v341, 4
      %v489 = vsel %vm482, %v486, %v488
      %v495 = vmul.bf16 %v321, %v483
      %v496 = vmul.bf16 %v295, %v485
      %v497 = vmul.bf16 %v304, %v487
      %v498 = vmul.bf16 %v313, %v489
      %v499 = vmul.bf16 %v322, %v488
      %v500 = vrot.slane %v350, 3
      %v501 = vrot.slane %v354, 3
      %v502 = vsel %vm319, %v500, %v501
      %v503 = vrot.slane %v358, 3
      %v504 = vsel %vm319, %v501, %v503
      %v505 = vrot.slane %v362, 3
      %v506 = vsel %vm319, %v503, %v505
      %v512 = vmul.bf16 %v321, %v500
      %v513 = vmul.bf16 %v295, %v502
      %v514 = vmul.bf16 %v304, %v504
      %v515 = vmul.bf16 %v313, %v506
      %v516 = vmul.bf16 %v322, %v505
      %v517 = vshrl.u32 %v322, 16
      %v519 = vor.u32 %v517, %v420
      %520 = vrot.lane.b32.xlu0 %v519, 8
      %v521 = vpop.permute.xlu0 %520
      %v527 = vrot.slane %v512, 1
      %v528 = vrot.slane %v513, 1
      %v529 = vsel %vm435, %v527, %v528
      %v530 = vrot.slane %v514, 1
      %v531 = vsel %vm435, %v528, %v530
      %v532 = vrot.slane %v515, 1
      %v533 = vsel %vm435, %v530, %v532
      %v534 = vrot.slane %v516, 1
      %v535 = vsel %vm435, %v532, %v534
      %536 = vrot.lane.b32.xlu0 %v529, 16
      %v537 = vpop.permute.xlu0 %536
      %538 = vrot.lane.b32.xlu0 %v531, 16
      %v539 = vpop.permute.xlu0 %538
      %540 = vrot.lane.b32.xlu0 %v533, 16
      %v541 = vpop.permute.xlu0 %540
      %542 = vrot.lane.b32.xlu0 %v535, 16
      %v543 = vpop.permute.xlu0 %542
      %544 = vrot.lane.b32.xlu0 %v534, 16
      %v545 = vpop.permute.xlu0 %544
      %v547 = vsel %vm453, %v495, %v423
      %v549 = vsel %vm453, %v496, %v425
      %v551 = vsel %vm453, %v497, %v427
      %v553 = vsel %vm453, %v498, %v429
      %v556 = vsel %vm453, %v499, %v521
      %v558 = vsel %vm466, %v547, %v537
      %v560 = vsel %vm466, %v549, %v539
      %v562 = vsel %vm466, %v551, %v541
      %v564 = vsel %vm466, %v553, %v543
      %v566 = vsel %vm466, %v556, %v545
      %s567 = scalar_lea.vmem %s1, 12
      %v568 = vld [vmem:[%s567] sm:$0xf]
      %v569 = vld [vmem:[%s567 + $0x4] sm:$0xf]
      %v570 = vld [vmem:[%s567 + $0x8] sm:$0xf]
      %v576 = vrot.slane %v558, 4
      %v577 = vrot.slane %v560, 4
      %v578 = vsel %vm482, %v576, %v577
      %v579 = vrot.slane %v562, 4
      %v580 = vsel %vm482, %v577, %v579
      %v581 = vrot.slane %v564, 4
      %v582 = vsel %vm482, %v579, %v581
      %v583 = vrot.slane %v566, 4
      %v584 = vsel %vm482, %v581, %v583
      %v588 = vunpack.c.l.b16 %v568
      %v589 = vunpack.c.l.b16 %v569
      %v590 = vunpack.c.l.b16 %v570
      %v591 = vpack.c.b16 %v589, %v588
      %v592 = vpack.c.b16 %v590, %v590
      %vm594 = vcmask 195584
      %v596 = vsel %vm594, %v578, 0
      %v599 = vsel %vm594, %v580, 0
      %v602 = vsel %vm594, %v582, 0
      %v605 = vsel %vm594, %v584, 0
      %vm607 = vcmask 1043456
      %v609 = vsel %vm607, %v592, 0
      %611 = vmatprep.subr.bf16.mxu0 0
      %612 = vmatpush1.bf16.msra.mxu0 %v591
      %613 = vmatprep.subr.bf16.mxu0 0
      %614 = vmatpush1.bf16.msra.mxu0 %v609
      %615 = vmatprep.subr.bf16.mxu0 0
      %616 = vmatpush1.bf16.msra.mxu0 0
      %617 = vmatprep.subr.bf16.mxu0 0
      %618 = vmatpush1.bf16.msra.mxu0 0
      %619 = vmatprep.subr.bf16.mxu0 0
      %620 = vmatpush1.bf16.msra.mxu0 0
      %621 = vmatprep.subr.bf16.mxu0 0
      %622 = vmatpush1.bf16.msra.mxu0 0
      %623 = vmatprep.subr.bf16.mxu0 0
      %624 = vmatpush1.bf16.msra.mxu0 0
      %625 = vmatprep.subr.bf16.mxu0 0
      %626 = vmatpush1.bf16.msra.mxu0 0
      %627 = vmatprep.subr.bf16.mxu0 0
      %628 = vmatpush1.bf16.msra.mxu0 0
      %629 = vmatprep.subr.bf16.mxu0 0
      %630 = vmatpush1.bf16.msra.mxu0 0
      %631 = vmatprep.subr.bf16.mxu0 0
      %632 = vmatpush1.bf16.msra.mxu0 0
      %633 = vmatprep.subr.bf16.mxu0 0
      %634 = vmatpush1.bf16.msra.mxu0 0
      %635 = vmatprep.subr.bf16.mxu0 0
      %636 = vmatpush1.bf16.msra.mxu0 0
      %637 = vmatprep.subr.bf16.mxu0 0
      %638 = vmatpush1.bf16.msra.mxu0 0
      %639 = vmatprep.subr.bf16.mxu0 0
      %640 = vmatpush1.bf16.msra.mxu0 0
      %641 = vmatprep.subr.bf16.mxu0 0
      %642 = vmatpush1.bf16.msra.mxu0 0
      %643 = vmatprep.mubr.bf16.mxu0 0
      %644 = vmatmul.mubr.bf16.gmra.mrb[0].mxu0 %v596
      %v645 = vpop.f32.mrb[0].mxu0
      %v646 = vadd.f32 0.0, %v645
      %v647 = vpop.f32.mrb[0].mxu0
      %v648 = vpop.f32.mrb[0].mxu0
      %v649 = vadd.f32 0.0, %v648
      %v650 = vpop.f32.mrb[0].mxu0
      %651 = vmatprep.mubr.bf16.mxu0 0
      %652 = vmatmul.mubr.bf16.gmra.mrb[0].mxu0 %v599
      %v653 = vpop.f32.mrb[0].mxu0
      %v654 = vadd.f32 0.0, %v653
      %v655 = vpop.f32.mrb[0].mxu0
      %v656 = vpop.f32.mrb[0].mxu0
      %v657 = vadd.f32 0.0, %v656
      %v658 = vpop.f32.mrb[0].mxu0
      %659 = vmatprep.mubr.bf16.mxu0 0
      %660 = vmatmul.mubr.bf16.gmra.mrb[0].mxu0 %v602
      %v661 = vpop.f32.mrb[0].mxu0
      %v662 = vadd.f32 0.0, %v661
      %v663 = vpop.f32.mrb[0].mxu0
      %v664 = vpop.f32.mrb[0].mxu0
      %v665 = vadd.f32 0.0, %v664
      %v666 = vpop.f32.mrb[0].mxu0
      %667 = vmatprep.mubr.bf16.mxu0 0
      %668 = vmatmul.mubr.bf16.gmra.mrb[0].mxu0 %v605
      %v669 = vpop.f32.mrb[0].mxu0
      %v670 = vadd.f32 0.0, %v669
      %v671 = vpop.f32.mrb[0].mxu0
      %v672 = vpop.f32.mrb[0].mxu0
      %v673 = vadd.f32 0.0, %v672
      %v674 = vpop.f32.mrb[0].mxu0
      %675 = vdwg.mxu0
      %v679 = vunpack.c.l.b16 %v475
      %v680 = vunpack.c.l.b16 %v476
      %v681 = vunpack.c.l.b16 %v477
      %v682 = vpack.c.b16 %v680, %v679
      %v683 = vpack.c.b16 %v681, %v681
      %v685 = vsel %vm594, %v468, 0
      %v687 = vsel %vm594, %v470, 0
      %v689 = vsel %vm594, %v472, 0
      %v691 = vsel %vm594, %v474, 0
      %v694 = vsel %vm607, %v683, 0
      %696 = vmatprep.subr.bf16.mxu0 0
      %697 = vmatpush1.bf16.msra.mxu0 %v682
      %698 = vmatprep.subr.bf16.mxu0 0
      %699 = vmatpush1.bf16.msra.mxu0 %v694
      %700 = vmatprep.subr.bf16.mxu0 0
      %701 = vmatpush1.bf16.msra.mxu0 0
      %702 = vmatprep.subr.bf16.mxu0 0
      %703 = vmatpush1.bf16.msra.mxu0 0
      %704 = vmatprep.subr.bf16.mxu0 0
      %705 = vmatpush1.bf16.msra.mxu0 0
      %706 = vmatprep.subr.bf16.mxu0 0
      %707 = vmatpush1.bf16.msra.mxu0 0
      %708 = vmatprep.subr.bf16.mxu0 0
      %709 = vmatpush1.bf16.msra.mxu0 0
      %710 = vmatprep.subr.bf16.mxu0 0
      %711 = vmatpush1.bf16.msra.mxu0 0
      %712 = vmatprep.subr.bf16.mxu0 0
      %713 = vmatpush1.bf16.msra.mxu0 0
      %714 = vmatprep.subr.bf16.mxu0 0
      %715 = vmatpush1.bf16.msra.mxu0 0
      %716 = vmatprep.subr.bf16.mxu0 0
      %717 = vmatpush1.bf16.msra.mxu0 0
      %718 = vmatprep.subr.bf16.mxu0 0
      %719 = vmatpush1.bf16.msra.mxu0 0
      %720 = vmatprep.subr.bf16.mxu0 0
      %721 = vmatpush1.bf16.msra.mxu0 0
      %722 = vmatprep.subr.bf16.mxu0 0
      %723 = vmatpush1.bf16.msra.mxu0 0
      %724 = vmatprep.subr.bf16.mxu0 0
      %725 = vmatpush1.bf16.msra.mxu0 0
      %726 = vmatprep.subr.bf16.mxu0 0
      %727 = vmatpush1.bf16.msra.mxu0 0
      %728 = vmatprep.mubr.bf16.mxu0 0
      %729 = vmatmul.mubr.bf16.gmra.mrb[0].mxu0 %v685
      %v730 = vpop.f32.mrb[0].mxu0
      %v731 = vadd.f32 %v646, %v730
      %v732 = vpop.f32.mrb[0].mxu0
      %v733 = vpop.f32.mrb[0].mxu0
      %v734 = vadd.f32 %v649, %v733
      %v735 = vpop.f32.mrb[0].mxu0
      %736 = vmatprep.mubr.bf16.mxu0 0
      %737 = vmatmul.mubr.bf16.gmra.mrb[0].mxu0 %v687
      %v738 = vpop.f32.mrb[0].mxu0
      %v739 = vadd.f32 %v654, %v738
      %v740 = vpop.f32.mrb[0].mxu0
      %v741 = vpop.f32.mrb[0].mxu0
      %v742 = vadd.f32 %v657, %v741
      %v743 = vpop.f32.mrb[0].mxu0
      %744 = vmatprep.mubr.bf16.mxu0 0
      %745 = vmatmul.mubr.bf16.gmra.mrb[0].mxu0 %v689
      %v746 = vpop.f32.mrb[0].mxu0
      %v747 = vadd.f32 %v662, %v746
      %v748 = vpop.f32.mrb[0].mxu0
      %v749 = vpop.f32.mrb[0].mxu0
      %v750 = vadd.f32 %v665, %v749
      %v751 = vpop.f32.mrb[0].mxu0
      %752 = vmatprep.mubr.bf16.mxu0 0
      %753 = vmatmul.mubr.bf16.gmra.mrb[0].mxu0 %v691
      %v754 = vpop.f32.mrb[0].mxu0
      %v755 = vadd.f32 %v670, %v754
      %v756 = vpop.f32.mrb[0].mxu0
      %v757 = vpop.f32.mrb[0].mxu0
      %v758 = vadd.f32 %v673, %v757
      %v759 = vpop.f32.mrb[0].mxu0
      %760 = vdwg.mxu0
      %v761 = vmul.bf16 %v295, %v326
      %v762 = vmul.bf16 %v304, %v331
      %v763 = vmul.bf16 %v313, %v336
      %v764 = vmul.bf16 %v322, %v341
      %v765 = vmul.bf16 %v295, %v368
      %v766 = vmul.bf16 %v304, %v370
      %v767 = vmul.bf16 %v313, %v372
      %v768 = vmul.bf16 %v322, %v374
      %v769 = vmul.bf16 %v373, 0
      %v771 = vshll.u32 0, 16
      %v773 = vrot.slane %v771, 1
      %v774 = vsel %vm385, %v519, %v773
      %775 = vrot.lane.b32.xlu0 %v774, 8
      %v776 = vpop.permute.xlu0 %775
      %v782 = vrot.slane %v765, 1
      %v783 = vrot.slane %v766, 1
      %v784 = vsel %vm435, %v782, %v783
      %v785 = vrot.slane %v767, 1
      %v786 = vsel %vm435, %v783, %v785
      %v787 = vrot.slane %v768, 1
      %v788 = vsel %vm435, %v785, %v787
      %v789 = vrot.slane %v769, 1
      %v790 = vsel %vm435, %v787, %v789
      %791 = vrot.lane.b32.xlu0 %v784, 16
      %v792 = vpop.permute.xlu0 %791
      %793 = vrot.lane.b32.xlu0 %v786, 16
      %v794 = vpop.permute.xlu0 %793
      %795 = vrot.lane.b32.xlu0 %v788, 16
      %v796 = vpop.permute.xlu0 %795
      %797 = vrot.lane.b32.xlu0 %v790, 16
      %v798 = vpop.permute.xlu0 %797
      %v800 = vsel %vm453, %v761, %v425
      %v802 = vsel %vm453, %v762, %v427
      %v804 = vsel %vm453, %v763, %v429
      %v807 = vsel %vm453, %v764, %v776
      %v809 = vsel %vm466, %v800, %v792
      %v811 = vsel %vm466, %v802, %v794
      %v813 = vsel %vm466, %v804, %v796
      %v815 = vsel %vm466, %v807, %v798
      %s816 = scalar_lea.vmem %s1, 24
      %v817 = vld [vmem:[%s816] sm:$0xf]
      %v818 = vld [vmem:[%s816 + $0x4] sm:$0xf]
      %v819 = vld [vmem:[%s816 + $0x8] sm:$0xf]
      %v823 = vunpack.c.l.b16 %v817
      %v824 = vunpack.c.l.b16 %v818
      %v825 = vunpack.c.l.b16 %v819
      %v826 = vpack.c.b16 %v824, %v823
      %v827 = vpack.c.b16 %v825, %v825
      %v829 = vsel %vm594, %v809, 0
      %v831 = vsel %vm594, %v811, 0
      %v833 = vsel %vm594, %v813, 0
      %v835 = vsel %vm594, %v815, 0
      %v838 = vsel %vm607, %v827, 0
      %840 = vmatprep.subr.bf16.mxu0 0
      %841 = vmatpush1.bf16.msra.mxu0 %v826
      %842 = vmatprep.subr.bf16.mxu0 0
      %843 = vmatpush1.bf16.msra.mxu0 %v838
      %844 = vmatprep.subr.bf16.mxu0 0
      %845 = vmatpush1.bf16.msra.mxu0 0
      %846 = vmatprep.subr.bf16.mxu0 0
      %847 = vmatpush1.bf16.msra.mxu0 0
      %848 = vmatprep.subr.bf16.mxu0 0
      %849 = vmatpush1.bf16.msra.mxu0 0
      %850 = vmatprep.subr.bf16.mxu0 0
      %851 = vmatpush1.bf16.msra.mxu0 0
      %852 = vmatprep.subr.bf16.mxu0 0
      %853 = vmatpush1.bf16.msra.mxu0 0
      %854 = vmatprep.subr.bf16.mxu0 0
      %855 = vmatpush1.bf16.msra.mxu0 0
      %856 = vmatprep.subr.bf16.mxu0 0
      %857 = vmatpush1.bf16.msra.mxu0 0
      %858 = vmatprep.subr.bf16.mxu0 0
      %859 = vmatpush1.bf16.msra.mxu0 0
      %860 = vmatprep.subr.bf16.mxu0 0
      %861 = vmatpush1.bf16.msra.mxu0 0
      %862 = vmatprep.subr.bf16.mxu0 0
      %863 = vmatpush1.bf16.msra.mxu0 0
      %864 = vmatprep.subr.bf16.mxu0 0
      %865 = vmatpush1.bf16.msra.mxu0 0
      %866 = vmatprep.subr.bf16.mxu0 0
      %867 = vmatpush1.bf16.msra.mxu0 0
      %868 = vmatprep.subr.bf16.mxu0 0
      %869 = vmatpush1.bf16.msra.mxu0 0
      %870 = vmatprep.subr.bf16.mxu0 0
      %871 = vmatpush1.bf16.msra.mxu0 0
      %872 = vmatprep.mubr.bf16.mxu0 0
      %873 = vmatmul.mubr.bf16.gmra.mrb[0].mxu0 %v829
      %v874 = vpop.f32.mrb[0].mxu0
      %v875 = vadd.f32 0.0, %v874
      %v876 = vpop.f32.mrb[0].mxu0
      %v877 = vpop.f32.mrb[0].mxu0
      %v878 = vadd.f32 0.0, %v877
      %v879 = vpop.f32.mrb[0].mxu0
      %880 = vmatprep.mubr.bf16.mxu0 0
      %881 = vmatmul.mubr.bf16.gmra.mrb[0].mxu0 %v831
      %v882 = vpop.f32.mrb[0].mxu0
      %v883 = vadd.f32 0.0, %v882
      %v884 = vpop.f32.mrb[0].mxu0
      %v885 = vpop.f32.mrb[0].mxu0
      %v886 = vadd.f32 0.0, %v885
      %v887 = vpop.f32.mrb[0].mxu0
      %888 = vmatprep.mubr.bf16.mxu0 0
      %889 = vmatmul.mubr.bf16.gmra.mrb[0].mxu0 %v833
      %v890 = vpop.f32.mrb[0].mxu0
      %v891 = vadd.f32 0.0, %v890
      %v892 = vpop.f32.mrb[0].mxu0
      %v893 = vpop.f32.mrb[0].mxu0
      %v894 = vadd.f32 0.0, %v893
      %v895 = vpop.f32.mrb[0].mxu0
      %896 = vmatprep.mubr.bf16.mxu0 0
      %897 = vmatmul.mubr.bf16.gmra.mrb[0].mxu0 %v835
      %v898 = vpop.f32.mrb[0].mxu0
      %v899 = vadd.f32 0.0, %v898
      %v900 = vpop.f32.mrb[0].mxu0
      %v901 = vpop.f32.mrb[0].mxu0
      %v902 = vadd.f32 0.0, %v901
      %v903 = vpop.f32.mrb[0].mxu0
      %904 = vdwg.mxu0
      %v905 = vadd.f32 %v731, %v875
      %v906 = vadd.f32 %v734, %v878
      %v907 = vadd.f32 %v739, %v883
      %v908 = vadd.f32 %v742, %v886
      %v909 = vadd.f32 %v747, %v891
      %v910 = vadd.f32 %v750, %v894
      %v911 = vadd.f32 %v755, %v899
      %v912 = vadd.f32 %v758, %v902
      %vm913 = vcmask 31744
      %v914 = vsel %vm913, %v905, 0.0
      %v915 = vsel %vm913, %v906, 0.0
      %v916 = vadd.f32 %v914, %v915
      %v917 = vsel %vm913, %v907, 0.0
      %v918 = vadd.f32 %v916, %v917
      %v919 = vsel %vm913, %v908, 0.0
      %v920 = vadd.f32 %v918, %v919
      %v921 = vsel %vm913, %v909, 0.0
      %v922 = vadd.f32 %v920, %v921
      %v923 = vsel %vm913, %v910, 0.0
      %v924 = vadd.f32 %v922, %v923
      %v925 = vsel %vm913, %v911, 0.0
      %v926 = vadd.f32 %v924, %v925
      %v927 = vsel %vm913, %v912, 0.0
      %v928 = vadd.f32 %v926, %v927
      %v929 = vrot.slane %v928, 4
      %v930 = vadd.f32 %v928, %v929
      %v931 = vrot.slane %v930, 2
      %v932 = vadd.f32 %v930, %v931
      %v933 = vrot.slane %v932, 1
      %v934 = vadd.f32 %v932, %v933
      %v935 = vmul.f32 %v934, 0.015625
      %v936 = vsub.f32 %v905, %v935
      %v937 = vsub.f32 %v906, %v935
      %v938 = vsub.f32 %v907, %v935
      %v939 = vsub.f32 %v908, %v935
      %v940 = vsub.f32 %v909, %v935
      %v941 = vsub.f32 %v910, %v935
      %v942 = vsub.f32 %v911, %v935
      %v943 = vsub.f32 %v912, %v935
      %v944 = vmul.f32 %v936, %v936
      %v945 = vmul.f32 %v937, %v937
      %v946 = vmul.f32 %v938, %v938
      %v947 = vmul.f32 %v939, %v939
      %v948 = vmul.f32 %v940, %v940
      %v949 = vmul.f32 %v941, %v941
      %v950 = vmul.f32 %v942, %v942
      %v951 = vmul.f32 %v943, %v943
      %v952 = vsel %vm913, %v944, 0.0
      %v953 = vsel %vm913, %v945, 0.0
      %v954 = vadd.f32 %v952, %v953
      %v955 = vsel %vm913, %v946, 0.0
      %v956 = vadd.f32 %v954, %v955
      %v957 = vsel %vm913, %v947, 0.0
      %v958 = vadd.f32 %v956, %v957
      %v959 = vsel %vm913, %v948, 0.0
      %v960 = vadd.f32 %v958, %v959
      %v961 = vsel %vm913, %v949, 0.0
      %v962 = vadd.f32 %v960, %v961
      %v963 = vsel %vm913, %v950, 0.0
      %v964 = vadd.f32 %v962, %v963
      %v965 = vsel %vm913, %v951, 0.0
      %v966 = vadd.f32 %v964, %v965
      %v967 = vrot.slane %v966, 4
      %v968 = vadd.f32 %v966, %v967
      %v969 = vrot.slane %v968, 2
      %v970 = vadd.f32 %v968, %v969
      %v971 = vrot.slane %v970, 1
      %v972 = vadd.f32 %v970, %v971
      %v973 = vmul.f32 %v972, 0.015625
      %v974 = vadd.f32 %v973, 1e-05
      %v975 = vrsqrt.pop %v974
      %v976 = vmul.f32 %v936, %v975
      %v977 = vmul.f32 %v937, %v975
      %v978 = vmul.f32 %v938, %v975
      %v979 = vmul.f32 %v939, %v975
      %v980 = vmul.f32 %v940, %v975
      %v981 = vmul.f32 %v941, %v975
      %v982 = vmul.f32 %v942, %v975
      %v983 = vmul.f32 %v943, %v975
      %vm984 = vcmp.ge.f32.partialorder %v976, 0.0
      %vm985 = vcmp.ge.f32.partialorder %v977, 0.0
      %vm986 = vcmp.ge.f32.partialorder %v978, 0.0
      %vm987 = vcmp.ge.f32.partialorder %v979, 0.0
      %vm988 = vcmp.ge.f32.partialorder %v980, 0.0
      %vm989 = vcmp.ge.f32.partialorder %v981, 0.0
      %vm990 = vcmp.ge.f32.partialorder %v982, 0.0
      %vm991 = vcmp.ge.f32.partialorder %v983, 0.0
      %v992 = vmul.f32 %v976, 0.01
      %v993 = vmul.f32 %v977, 0.01
      %v994 = vmul.f32 %v978, 0.01
      %v995 = vmul.f32 %v979, 0.01
      %v996 = vmul.f32 %v980, 0.01
      %v997 = vmul.f32 %v981, 0.01
      %v998 = vmul.f32 %v982, 0.01
      %v999 = vmul.f32 %v983, 0.01
      %v1000 = vsel %vm984, %v976, %v992
      %v1001 = vsel %vm985, %v977, %v993
      %v1002 = vsel %vm986, %v978, %v994
      %v1003 = vsel %vm987, %v979, %v995
      %v1004 = vsel %vm988, %v980, %v996
      %v1005 = vsel %vm989, %v981, %v997
      %v1006 = vsel %vm990, %v982, %v998
      %v1007 = vsel %vm991, %v983, %v999
      %v1008 = vpack.c.bf16 %v1001, %v1000
      %v1009 = vpack.c.bf16 %v1003, %v1002
      %v1010 = vpack.c.bf16 %v1005, %v1004
      %v1011 = vpack.c.bf16 %v1007, %v1006
      %v1012 = vld [vmem:[%s2] sm:$0x3]
      %v1014 = vsel %vm913, %v1008, 0
      %v1017 = vsel %vm913, %v1009, 0
      %v1020 = vsel %vm913, %v1010, 0
      %v1023 = vsel %vm913, %v1011, 0
      %vm1025 = vcmask 1041408
      %v1027 = vsel %vm1025, %v1012, 0
      %1029 = vmatprep.subr.bf16.mxu0 0
      %1030 = vmatpush1.bf16.msra.mxu0 %v1027
      %1031 = vmatprep.subr.bf16.mxu0 0
      %1032 = vmatpush1.bf16.msra.mxu0 0
      %1033 = vmatprep.subr.bf16.mxu0 0
      %1034 = vmatpush1.bf16.msra.mxu0 0
      %1035 = vmatprep.subr.bf16.mxu0 0
      %1036 = vmatpush1.bf16.msra.mxu0 0
      %1037 = vmatprep.subr.bf16.mxu0 0
      %1038 = vmatpush1.bf16.msra.mxu0 0
      %1039 = vmatprep.subr.bf16.mxu0 0
      %1040 = vmatpush1.bf16.msra.mxu0 0
      %1041 = vmatprep.subr.bf16.mxu0 0
      %1042 = vmatpush1.bf16.msra.mxu0 0
      %1043 = vmatprep.subr.bf16.mxu0 0
      %1044 = vmatpush1.bf16.msra.mxu0 0
      %1045 = vmatprep.subr.bf16.mxu0 0
      %1046 = vmatpush1.bf16.msra.mxu0 0
      %1047 = vmatprep.subr.bf16.mxu0 0
      %1048 = vmatpush1.bf16.msra.mxu0 0
      %1049 = vmatprep.subr.bf16.mxu0 0
      %1050 = vmatpush1.bf16.msra.mxu0 0
      %1051 = vmatprep.subr.bf16.mxu0 0
      %1052 = vmatpush1.bf16.msra.mxu0 0
      %1053 = vmatprep.subr.bf16.mxu0 0
      %1054 = vmatpush1.bf16.msra.mxu0 0
      %1055 = vmatprep.subr.bf16.mxu0 0
      %1056 = vmatpush1.bf16.msra.mxu0 0
      %1057 = vmatprep.subr.bf16.mxu0 0
      %1058 = vmatpush1.bf16.msra.mxu0 0
      %1059 = vmatprep.subr.bf16.mxu0 0
      %1060 = vmatpush1.bf16.msra.mxu0 0
      %1061 = vmatprep.mubr.bf16.mxu0 0
      %1062 = vmatmul.mubr.bf16.gmra.mrb[0].mxu0 %v1014
      %v1063 = vpop.f32.mrb[0].mxu0
      %v1064 = vadd.f32 0.0, %v1063
      %v1065 = vpop.f32.mrb[0].mxu0
      %v1066 = vpop.f32.mrb[0].mxu0
      %v1067 = vadd.f32 0.0, %v1066
      %v1068 = vpop.f32.mrb[0].mxu0
      %1069 = vmatprep.mubr.bf16.mxu0 0
      %1070 = vmatmul.mubr.bf16.gmra.mrb[0].mxu0 %v1017
      %v1071 = vpop.f32.mrb[0].mxu0
      %v1072 = vadd.f32 0.0, %v1071
      %v1073 = vpop.f32.mrb[0].mxu0
      %v1074 = vpop.f32.mrb[0].mxu0
      %v1075 = vadd.f32 0.0, %v1074
      %v1076 = vpop.f32.mrb[0].mxu0
      %1077 = vmatprep.mubr.bf16.mxu0 0
      %1078 = vmatmul.mubr.bf16.gmra.mrb[0].mxu0 %v1020
      %v1079 = vpop.f32.mrb[0].mxu0
      %v1080 = vadd.f32 0.0, %v1079
      %v1081 = vpop.f32.mrb[0].mxu0
      %v1082 = vpop.f32.mrb[0].mxu0
      %v1083 = vadd.f32 0.0, %v1082
      %v1084 = vpop.f32.mrb[0].mxu0
      %1085 = vmatprep.mubr.bf16.mxu0 0
      %1086 = vmatmul.mubr.bf16.gmra.mrb[0].mxu0 %v1023
      %v1087 = vpop.f32.mrb[0].mxu0
      %v1088 = vadd.f32 0.0, %v1087
      %v1089 = vpop.f32.mrb[0].mxu0
      %v1090 = vpop.f32.mrb[0].mxu0
      %v1091 = vadd.f32 0.0, %v1090
      %v1092 = vpop.f32.mrb[0].mxu0
      %1093 = vdwg.mxu0
      %vm1102 = vcmask 1040384
      %v1103 = vrot.slane %v1064, 7
      %v1104 = vrot.slane %v1067, 7
      %v1105 = vsel %vm1102, %v1103, %v1104
      %v1106 = vrot.slane %v1072, 7
      %v1107 = vsel %vm1102, %v1104, %v1106
      %v1108 = vrot.slane %v1075, 7
      %v1109 = vsel %vm1102, %v1106, %v1108
      %v1110 = vrot.slane %v1080, 7
      %v1111 = vsel %vm1102, %v1108, %v1110
      %v1112 = vrot.slane %v1083, 7
      %v1113 = vsel %vm1102, %v1110, %v1112
      %v1114 = vrot.slane %v1088, 7
      %v1115 = vsel %vm1102, %v1112, %v1114
      %v1116 = vrot.slane %v1091, 7
      %v1117 = vsel %vm1102, %v1114, %v1116
      %v1126 = vsel %vm1102, %v1064, %v1103
      %vm1127 = vcmask 1046528
      %v1128 = vrot.slane %v1064, 1
      %v1129 = vrot.slane %v1067, 1
      %v1130 = vsel %vm1127, %v1128, %v1129
      %v1131 = vrot.slane %v1072, 1
      %v1132 = vsel %vm1127, %v1129, %v1131
      %v1133 = vrot.slane %v1075, 1
      %v1134 = vsel %vm1127, %v1131, %v1133
      %v1135 = vrot.slane %v1080, 1
      %v1136 = vsel %vm1127, %v1133, %v1135
      %v1137 = vrot.slane %v1083, 1
      %v1138 = vsel %vm1127, %v1135, %v1137
      %v1139 = vrot.slane %v1088, 1
      %v1140 = vsel %vm1127, %v1137, %v1139
      %v1141 = vrot.slane %v1091, 1
      %v1142 = vsel %vm1127, %v1139, %v1141
      %v1151 = vsel %vm1127, %v1141, %v1091
      %1153 = vset.pattern.permute.xlu0 0
      %1154 = vperm.xlu0 %1153, %v226
      %v1155 = vpop.permute.xlu0 %1154
      %1158 = vset.pattern.permute.xlu0 0
      %1159 = vperm.xlu0 %1158, %v227
      %v1160 = vpop.permute.xlu0 %1159
      %1163 = vset.pattern.permute.xlu0 0
      %1164 = vperm.xlu0 %1163, %v228
      %v1165 = vpop.permute.xlu0 %1164
      %1168 = vset.pattern.permute.xlu0 0
      %1169 = vperm.xlu0 %1168, %v229
      %v1170 = vpop.permute.xlu0 %1169
      %1173 = vset.pattern.permute.xlu0 0
      %1174 = vperm.xlu0 %1173, %v230
      %v1175 = vpop.permute.xlu0 %1174
      %1178 = vset.pattern.permute.xlu0 0
      %1179 = vperm.xlu0 %1178, %v231
      %v1180 = vpop.permute.xlu0 %1179
      %1183 = vset.pattern.permute.xlu0 0
      %1184 = vperm.xlu0 %1183, %v232
      %v1185 = vpop.permute.xlu0 %1184
      %1188 = vset.pattern.permute.xlu0 0
      %1189 = vperm.xlu0 %1188, %v233
      %v1190 = vpop.permute.xlu0 %1189
      %v1192 = vmul.f32 %v1155, %v1126
      %v1193 = vmul.f32 %v1160, %v1105
      %v1194 = vmul.f32 %v1165, %v1107
      %v1195 = vmul.f32 %v1170, %v1109
      %v1196 = vmul.f32 %v1175, %v1111
      %v1197 = vmul.f32 %v1180, %v1113
      %v1198 = vmul.f32 %v1185, %v1115
      %v1199 = vmul.f32 %v1190, %v1117
      %v1200 = vsub.f32 1.0, %v226
      %v1201 = vsub.f32 1.0, %v227
      %v1202 = vsub.f32 1.0, %v228
      %v1203 = vsub.f32 1.0, %v229
      %v1204 = vsub.f32 1.0, %v230
      %v1205 = vsub.f32 1.0, %v231
      %v1206 = vsub.f32 1.0, %v232
      %v1207 = vsub.f32 1.0, %v233
      %1209 = vset.pattern.permute.xlu0 0
      %1210 = vperm.xlu0 %1209, %v1200
      %v1211 = vpop.permute.xlu0 %1210
      %1214 = vset.pattern.permute.xlu0 0
      %1215 = vperm.xlu0 %1214, %v1201
      %v1216 = vpop.permute.xlu0 %1215
      %1219 = vset.pattern.permute.xlu0 0
      %1220 = vperm.xlu0 %1219, %v1202
      %v1221 = vpop.permute.xlu0 %1220
      %1224 = vset.pattern.permute.xlu0 0
      %1225 = vperm.xlu0 %1224, %v1203
      %v1226 = vpop.permute.xlu0 %1225
      %1229 = vset.pattern.permute.xlu0 0
      %1230 = vperm.xlu0 %1229, %v1204
      %v1231 = vpop.permute.xlu0 %1230
      %1234 = vset.pattern.permute.xlu0 0
      %1235 = vperm.xlu0 %1234, %v1205
      %v1236 = vpop.permute.xlu0 %1235
      %1239 = vset.pattern.permute.xlu0 0
      %1240 = vperm.xlu0 %1239, %v1206
      %v1241 = vpop.permute.xlu0 %1240
      %1244 = vset.pattern.permute.xlu0 0
      %1245 = vperm.xlu0 %1244, %v1207
      %v1246 = vpop.permute.xlu0 %1245
      %v1248 = vmul.f32 %v1211, %v1064
      %v1249 = vmul.f32 %v1216, %v1067
      %v1250 = vmul.f32 %v1221, %v1072
      %v1251 = vmul.f32 %v1226, %v1075
      %v1252 = vmul.f32 %v1231, %v1080
      %v1253 = vmul.f32 %v1236, %v1083
      %v1254 = vmul.f32 %v1241, %v1088
      %v1255 = vmul.f32 %v1246, %v1091
      %v1256 = vadd.f32 %v1192, %v1248
      %v1257 = vadd.f32 %v1193, %v1249
      %v1258 = vadd.f32 %v1194, %v1250
      %v1259 = vadd.f32 %v1195, %v1251
      %v1260 = vadd.f32 %v1196, %v1252
      %v1261 = vadd.f32 %v1197, %v1253
      %v1262 = vadd.f32 %v1198, %v1254
      %v1263 = vadd.f32 %v1199, %v1255
      %1265 = vset.pattern.permute.xlu0 0
      %1266 = vperm.xlu0 %1265, %v234
      %v1267 = vpop.permute.xlu0 %1266
      %1270 = vset.pattern.permute.xlu0 0
      %1271 = vperm.xlu0 %1270, %v235
      %v1272 = vpop.permute.xlu0 %1271
      %1275 = vset.pattern.permute.xlu0 0
      %1276 = vperm.xlu0 %1275, %v236
      %v1277 = vpop.permute.xlu0 %1276
      %1280 = vset.pattern.permute.xlu0 0
      %1281 = vperm.xlu0 %1280, %v237
      %v1282 = vpop.permute.xlu0 %1281
      %1285 = vset.pattern.permute.xlu0 0
      %1286 = vperm.xlu0 %1285, %v238
      %v1287 = vpop.permute.xlu0 %1286
      %1290 = vset.pattern.permute.xlu0 0
      %1291 = vperm.xlu0 %1290, %v239
      %v1292 = vpop.permute.xlu0 %1291
      %1295 = vset.pattern.permute.xlu0 0
      %1296 = vperm.xlu0 %1295, %v240
      %v1297 = vpop.permute.xlu0 %1296
      %1300 = vset.pattern.permute.xlu0 0
      %1301 = vperm.xlu0 %1300, %v241
      %v1302 = vpop.permute.xlu0 %1301
      %v1304 = vmul.f32 %v1267, %v1130
      %v1305 = vmul.f32 %v1272, %v1132
      %v1306 = vmul.f32 %v1277, %v1134
      %v1307 = vmul.f32 %v1282, %v1136
      %v1308 = vmul.f32 %v1287, %v1138
      %v1309 = vmul.f32 %v1292, %v1140
      %v1310 = vmul.f32 %v1297, %v1142
      %v1311 = vmul.f32 %v1302, %v1151
      %v1312 = vsub.f32 1.0, %v234
      %v1313 = vsub.f32 1.0, %v235
      %v1314 = vsub.f32 1.0, %v236
      %v1315 = vsub.f32 1.0, %v237
      %v1316 = vsub.f32 1.0, %v238
      %v1317 = vsub.f32 1.0, %v239
      %v1318 = vsub.f32 1.0, %v240
      %v1319 = vsub.f32 1.0, %v241
      %1321 = vset.pattern.permute.xlu0 0
      %1322 = vperm.xlu0 %1321, %v1312
      %v1323 = vpop.permute.xlu0 %1322
      %1326 = vset.pattern.permute.xlu0 0
      %1327 = vperm.xlu0 %1326, %v1313
      %v1328 = vpop.permute.xlu0 %1327
      %1331 = vset.pattern.permute.xlu0 0
      %1332 = vperm.xlu0 %1331, %v1314
      %v1333 = vpop.permute.xlu0 %1332
      %1336 = vset.pattern.permute.xlu0 0
      %1337 = vperm.xlu0 %1336, %v1315
      %v1338 = vpop.permute.xlu0 %1337
      %1341 = vset.pattern.permute.xlu0 0
      %1342 = vperm.xlu0 %1341, %v1316
      %v1343 = vpop.permute.xlu0 %1342
      %1346 = vset.pattern.permute.xlu0 0
      %1347 = vperm.xlu0 %1346, %v1317
      %v1348 = vpop.permute.xlu0 %1347
      %1351 = vset.pattern.permute.xlu0 0
      %1352 = vperm.xlu0 %1351, %v1318
      %v1353 = vpop.permute.xlu0 %1352
      %1356 = vset.pattern.permute.xlu0 0
      %1357 = vperm.xlu0 %1356, %v1319
      %v1358 = vpop.permute.xlu0 %1357
      %v1360 = vmul.f32 %v1323, %v1064
      %v1361 = vmul.f32 %v1328, %v1067
      %v1362 = vmul.f32 %v1333, %v1072
      %v1363 = vmul.f32 %v1338, %v1075
      %v1364 = vmul.f32 %v1343, %v1080
      %v1365 = vmul.f32 %v1348, %v1083
      %v1366 = vmul.f32 %v1353, %v1088
      %v1367 = vmul.f32 %v1358, %v1091
      %v1368 = vadd.f32 %v1304, %v1360
      %v1369 = vadd.f32 %v1305, %v1361
      %v1370 = vadd.f32 %v1306, %v1362
      %v1371 = vadd.f32 %v1307, %v1363
      %v1372 = vadd.f32 %v1308, %v1364
      %v1373 = vadd.f32 %v1309, %v1365
      %v1374 = vadd.f32 %v1310, %v1366
      %v1375 = vadd.f32 %v1311, %v1367
      %v1376 = vmul.f32 %v1256, 0.25
      %v1377 = vmul.f32 %v1257, 0.25
      %v1378 = vmul.f32 %v1258, 0.25
      %v1379 = vmul.f32 %v1259, 0.25
      %v1380 = vmul.f32 %v1260, 0.25
      %v1381 = vmul.f32 %v1261, 0.25
      %v1382 = vmul.f32 %v1262, 0.25
      %v1383 = vmul.f32 %v1263, 0.25
      %v1384 = vmul.f32 %v1064, 0.75
      %v1385 = vmul.f32 %v1067, 0.75
      %v1386 = vmul.f32 %v1072, 0.75
      %v1387 = vmul.f32 %v1075, 0.75
      %v1388 = vmul.f32 %v1080, 0.75
      %v1389 = vmul.f32 %v1083, 0.75
      %v1390 = vmul.f32 %v1088, 0.75
      %v1391 = vmul.f32 %v1091, 0.75
      %v1392 = vadd.f32 %v1376, %v1384
      %v1393 = vadd.f32 %v1377, %v1385
      %v1394 = vadd.f32 %v1378, %v1386
      %v1395 = vadd.f32 %v1379, %v1387
      %v1396 = vadd.f32 %v1380, %v1388
      %v1397 = vadd.f32 %v1381, %v1389
      %v1398 = vadd.f32 %v1382, %v1390
      %v1399 = vadd.f32 %v1383, %v1391
      %v1400 = vmul.f32 %v1368, 0.25
      %v1401 = vmul.f32 %v1369, 0.25
      %v1402 = vmul.f32 %v1370, 0.25
      %v1403 = vmul.f32 %v1371, 0.25
      %v1404 = vmul.f32 %v1372, 0.25
      %v1405 = vmul.f32 %v1373, 0.25
      %v1406 = vmul.f32 %v1374, 0.25
      %v1407 = vmul.f32 %v1375, 0.25
      %v1408 = vadd.f32 %v1384, %v1400
      %v1409 = vadd.f32 %v1385, %v1401
      %v1410 = vadd.f32 %v1386, %v1402
      %v1411 = vadd.f32 %v1387, %v1403
      %v1412 = vadd.f32 %v1388, %v1404
      %v1413 = vadd.f32 %v1389, %v1405
      %v1414 = vadd.f32 %v1390, %v1406
      %v1415 = vadd.f32 %v1391, %v1407
      %1424 = vrot.lane.b32.xlu0 %v1408, 2
      %v1425 = vpop.permute.xlu0 %1424
      %1426 = vrot.lane.b32.xlu0 %v1409, 2
      %v1427 = vpop.permute.xlu0 %1426
      %1428 = vrot.lane.b32.xlu0 %v1410, 2
      %v1429 = vpop.permute.xlu0 %1428
      %1430 = vrot.lane.b32.xlu0 %v1411, 2
      %v1431 = vpop.permute.xlu0 %1430
      %1432 = vrot.lane.b32.xlu0 %v1412, 2
      %v1433 = vpop.permute.xlu0 %1432
      %1434 = vrot.lane.b32.xlu0 %v1413, 2
      %v1435 = vpop.permute.xlu0 %1434
      %1436 = vrot.lane.b32.xlu0 %v1414, 2
      %v1437 = vpop.permute.xlu0 %1436
      %1438 = vrot.lane.b32.xlu0 %v1415, 2
      %v1439 = vpop.permute.xlu0 %1438
      %vm1448 = vcmask 15360
      %v1449 = vsel %vm1448, %v1392, %v1425
      %v1450 = vsel %vm1448, %v1393, %v1427
      %v1451 = vsel %vm1448, %v1394, %v1429
      %v1452 = vsel %vm1448, %v1395, %v1431
      %v1453 = vsel %vm1448, %v1396, %v1433
      %v1454 = vsel %vm1448, %v1397, %v1435
      %v1455 = vsel %vm1448, %v1398, %v1437
      %v1456 = vsel %vm1448, %v1399, %v1439
      %v1457 = vpack.c.bf16 %v1450, %v1449
      %v1458 = vpack.c.bf16 %v1452, %v1451
      %v1459 = vpack.c.bf16 %v1454, %v1453
      %v1460 = vpack.c.bf16 %v1456, %v1455
      %v1465 = vunpack.c.l.b16 %v1457
      %v1466 = vunpack.c.h.b16 %v1457
      %v1467 = vunpack.c.l.b16 %v1458
      %v1468 = vunpack.c.h.b16 %v1458
      %v1469 = vunpack.c.l.b16 %v1459
      %v1470 = vunpack.c.h.b16 %v1459
      %v1471 = vunpack.c.l.b16 %v1460
      %v1472 = vunpack.c.h.b16 %v1460
      %v1473 = vpack.c.b16 %v1465, %v1465
      %v1474 = vpack.c.b16 %v1466, %v1466
      %v1475 = vpack.c.b16 %v1467, %v1467
      %v1476 = vpack.c.b16 %v1468, %v1468
      %v1477 = vpack.c.b16 %v1469, %v1469
      %v1478 = vpack.c.b16 %v1470, %v1470
      %v1479 = vpack.c.b16 %v1471, %v1471
      %v1480 = vpack.c.b16 %v1472, %v1472
      %vm1489 = vcmask 27648
      %1490 = vst.msk [vmem:[%s224] sm:$0xf] %vm1489, %v1473
      %1491 = vst.msk [vmem:[%s224 + $0x4] sm:$0xf] %vm1489, %v1474
      %1492 = vst.msk [vmem:[%s224 + $0x8] sm:$0xf] %vm1489, %v1475
      %1493 = vst.msk [vmem:[%s224 + $0xc] sm:$0xf] %vm1489, %v1476
      %1494 = vst.msk [vmem:[%s224 + $0x10] sm:$0xf] %vm1489, %v1477
      %1495 = vst.msk [vmem:[%s224 + $0x14] sm:$0xf] %vm1489, %v1478
      %1496 = vst.msk [vmem:[%s224 + $0x18] sm:$0xf] %vm1489, %v1479
      %1497 = vst.msk [vmem:[%s224 + $0x1c] sm:$0xf] %vm1489, %v1480
      %p1498 = scmp.lt.s32.totalorder %s16, 1
      %s1499 = scalar_select %p1498, %s16, 1
      %s1500 = smul.addr %s1499, 8
      %s1501 = smul.addr %s1500, 4
      %s1502 = scalar_lea.vmem %s5, %s1501
      // Predicated region
      $region41: #{conv_u_forward.3} parent=39 // pred_check
        %p1503 = pneg %p144
      $region42: #{conv_u_forward.3} parent=39 // pred_check_branch
        %1505 = sbr.rel (%p1503) target = $region44
      $region43: #{conv_u_forward.3} parent=39 // pred_region
        _
      $region44: #{conv_u_forward.3} parent=39 // pred_fallthru
        _
    $region40: #{conv_u_forward.3} parent=5 // pred_fallthru
      _
    %p1506 = scmp.le.s32.totalorder 2, %s11
    // Predicated region
    $region45: #{conv_u_forward.3} parent=5 // pred_check
      %p1507 = pneg %p1506
    $region46: #{conv_u_forward.3} parent=5 // pred_check_branch
      %1509 = sbr.rel (%p1507) target = $region48
    $region47: #{conv_u_forward.3} parent=5 // pred_region
      %s1510 = ssub.s32 %s11, 2
      // Predicated region
      $region49: #{conv_u_forward.3} parent=47 // pred_check
        %p1511 = pneg %p150
      $region50: #{conv_u_forward.3} parent=47 // pred_check_branch
        %1513 = sbr.rel (%p1511) target = $region52
      $region51: #{conv_u_forward.3} parent=47 // pred_region
        %p1514 = scmp.lt.s32.totalorder %s17, 1
        %s1515 = scalar_select %p1514, %s17, 1
        %s1516 = smul.addr %s1515, 8
        %s1517 = smul.addr %s1516, 4
        %s1518 = scalar_lea.vmem %s5, %s1517
      $region52: #{conv_u_forward.3} parent=47 // pred_fallthru
        _
    $region48: #{conv_u_forward.3} parent=5 // pred_fallthru
      _
  $region6: #{conv_u_forward.3} parent=0 // loop_footer
    %s15 = sadd.s32 1, %s11
  $region7: #{conv_u_forward.3} parent=0 // loop_footer_branch
    %10 = sbr.rel target = $region3
  $region8: #{conv_u_forward.3} parent=0 // loop_exit
    _

// kernel: conv_u_forward.5
$region0: #{conv_u_forward.5}
  #allocation0 [shape = 'u32[]', space=smem, size = 0x4, offset = 0x4, fixed_abs, tag = 'smem constant byte address 0x4 - core index']
  #allocation1 [shape = 'u32[144,128]{1,0:T(1,128)}', space=vmem, size = 0x12000, scoped, tag = 'internal scratch']
  %s0 = inlined_call_operand.vmem [shape: bf16[2,256,2], index: 0, kind: input, shape index: {}]
  %s1 = inlined_call_operand.vmem [shape: bf16[2,256,2], index: 1, kind: input, shape index: {}]
  %s2 = inlined_call_operand.vmem [shape: bf16[3,12,4], index: 2, kind: input, shape index: {}]
  %s3 = inlined_call_operand.vmem [shape: f32[256,1], index: 3, kind: input, shape index: {}]
  %s4 = inlined_call_operand.vmem [shape: f32[256,1], index: 4, kind: input, shape index: {}]
  %s5 = inlined_call_operand.vmem [shape: f32[2,256,4], index: 5, kind: output, shape index: {}]
  %s6 = sld [smem:[#allocation0]]
  $region53: #{conv_u_forward.5} parent=0
    _
  %s8 = ssub.s32 1, %s6
  %s9 = scalar_select 0, %s8, %s6
  loop: start=0, step=1, limit=4
  $region2: #{conv_u_forward.5} parent=0 // loop_pre_header
    _
  $region3: #{conv_u_forward.5} parent=0 // loop_header
    %s11 = sphi 0, %s15
    %p12 = scmp.ge.s32.totalorder %s11, 4
    %s18 = sphi 0, %s30
    %s19 = sphi 0, %s26
    %s20 = sphi 0, %s18
    %s21 = sphi 0, %s19
    %s22 = sphi 0, %s20
    %s23 = sphi 0, %s21
    %s33 = sphi 0, %s35
    %s36 = sphi 0, %s33
    %s37 = sphi 0, %s36
    %s53 = sphi 0, %s37
    %s59 = sphi 0, %s61
    %s62 = sphi 0, %s59
    %s63 = sphi 0, %s62
    %s79 = sphi 0, %s63
    %s85 = sphi 0, %s87
    %s88 = sphi 0, %s85
    %s89 = sphi 0, %s88
    %s105 = sphi 0, %s89
    %s109 = sphi 0, %s109
    %s111 = sphi 0, %s109
    %s112 = sphi 0, %s111
    %s126 = sphi 0, %s112
    %s130 = sphi 0, %s130
    %s132 = sphi 0, %s130
    %s133 = sphi 0, %s132
    %s147 = sphi 0, %s133
    %s155 = sphi 0, %s157
    %s158 = sphi 0, %s155
    %s159 = sphi 0, %s158
    %s175 = sphi 0, %s159
  $region4: #{conv_u_forward.5} parent=0 // loop_header_branch
    %14 = sbr.rel (%p12) target = $region8
  $region5: #{conv_u_forward.5} parent=0 // loop_body
    %s16 = ssub.s32 %s11, 1
    %s17 = ssub.s32 %s11, 2
    %s24 = sadd.s32 1, %s19
    %p25 = scmp.ge.s32.totalorder %s24, 1
    %s26 = scalar_select %p25, 0, %s24
    %s27 = sadd.s32 1, %s18
    %s28 = scalar_select %p25, %s27, %s18
    %p29 = scmp.ge.s32.totalorder %s28, 2
    %s30 = scalar_select %p29, 0, %s28
    %s31 = ssub.s32 %s18, %s30
    %p32 = scmp.eq.s32.totalorder %s31, 0
    %s34 = sadd.s32 %s33, 1
    %s35 = scalar_select %p32, %s33, %s34
    %p38 = pneg %p32
    %p39 = scmp.eq.s32.totalorder %s11, 1
    %p40 = por %p38, %p39
    %p41 = scmp.ne.s32.totalorder %s33, %s36
    %p42 = scmp.eq.s32.totalorder %s11, 0
    %p43 = por %p41, %p42
    %p44 = scmp.ne.s32.totalorder %s33, %s36
    %p45 = scmp.eq.s32.totalorder %s16, 1
    %p46 = por %p44, %p45
    %p47 = scmp.ne.s32.totalorder %s36, %s37
    %p48 = scmp.eq.s32.totalorder %s16, 0
    %p49 = por %p47, %p48
    %p50 = scmp.ne.s32.totalorder %s36, %s37
    %p51 = scmp.eq.s32.totalorder %s17, 1
    %p52 = por %p50, %p51
    %p54 = scmp.ne.s32.totalorder %s37, %s53
    %p55 = scmp.eq.s32.totalorder %s17, 0
    %p56 = por %p54, %p55
    %s57 = ssub.s32 %s18, %s30
    %p58 = scmp.eq.s32.totalorder %s57, 0
    %s60 = sadd.s32 %s59, 1
    %s61 = scalar_select %p58, %s59, %s60
    %p64 = pneg %p58
    %p65 = scmp.eq.s32.totalorder %s11, 1
    %p66 = por %p64, %p65
    %p67 = scmp.ne.s32.totalorder %s59, %s62
    %p68 = scmp.eq.s32.totalorder %s11, 0
    %p69 = por %p67, %p68
    %p70 = scmp.ne.s32.totalorder %s59, %s62
    %p71 = scmp.eq.s32.totalorder %s16, 1
    %p72 = por %p70, %p71
    %p73 = scmp.ne.s32.totalorder %s62, %s63
    %p74 = scmp.eq.s32.totalorder %s16, 0
    %p75 = por %p73, %p74
    %p76 = scmp.ne.s32.totalorder %s62, %s63
    %p77 = scmp.eq.s32.totalorder %s17, 1
    %p78 = por %p76, %p77
    %p80 = scmp.ne.s32.totalorder %s63, %s79
    %p81 = scmp.eq.s32.totalorder %s17, 0
    %p82 = por %p80, %p81
    %s83 = ssub.s32 %s19, %s26
    %p84 = scmp.eq.s32.totalorder %s83, 0
    %s86 = sadd.s32 %s85, 1
    %s87 = scalar_select %p84, %s85, %s86
    %p90 = pneg %p84
    %p91 = scmp.eq.s32.totalorder %s11, 1
    %p92 = por %p90, %p91
    %p93 = scmp.ne.s32.totalorder %s85, %s88
    %p94 = scmp.eq.s32.totalorder %s11, 0
    %p95 = por %p93, %p94
    %p96 = scmp.ne.s32.totalorder %s85, %s88
    %p97 = scmp.eq.s32.totalorder %s16, 1
    %p98 = por %p96, %p97
    %p99 = scmp.ne.s32.totalorder %s88, %s89
    %p100 = scmp.eq.s32.totalorder %s16, 0
    %p101 = por %p99, %p100
    %p102 = scmp.ne.s32.totalorder %s88, %s89
    %p103 = scmp.eq.s32.totalorder %s17, 1
    %p104 = por %p102, %p103
    %p106 = scmp.ne.s32.totalorder %s89, %s105
    %p107 = scmp.eq.s32.totalorder %s17, 0
    %p108 = por %p106, %p107
    %s110 = sadd.s32 %s109, 1
    %p113 = scmp.eq.s32.totalorder %s11, 1
    %p114 = scmp.ne.s32.totalorder %s109, %s111
    %p115 = scmp.eq.s32.totalorder %s11, 0
    %p116 = por %p114, %p115
    %p117 = scmp.ne.s32.totalorder %s109, %s111
    %p118 = scmp.eq.s32.totalorder %s16, 1
    %p119 = por %p117, %p118
    %p120 = scmp.ne.s32.totalorder %s111, %s112
    %p121 = scmp.eq.s32.totalorder %s16, 0
    %p122 = por %p120, %p121
    %p123 = scmp.ne.s32.totalorder %s111, %s112
    %p124 = scmp.eq.s32.totalorder %s17, 1
    %p125 = por %p123, %p124
    %p127 = scmp.ne.s32.totalorder %s112, %s126
    %p128 = scmp.eq.s32.totalorder %s17, 0
    %p129 = por %p127, %p128
    %s131 = sadd.s32 %s130, 1
    %p134 = scmp.eq.s32.totalorder %s11, 1
    %p135 = scmp.ne.s32.totalorder %s130, %s132
    %p136 = scmp.eq.s32.totalorder %s11, 0
    %p137 = por %p135, %p136
    %p138 = scmp.ne.s32.totalorder %s130, %s132
    %p139 = scmp.eq.s32.totalorder %s16, 1
    %p140 = por %p138, %p139
    %p141 = scmp.ne.s32.totalorder %s132, %s133
    %p142 = scmp.eq.s32.totalorder %s16, 0
    %p143 = por %p141, %p142
    %p144 = scmp.ne.s32.totalorder %s132, %s133
    %p145 = scmp.eq.s32.totalorder %s17, 1
    %p146 = por %p144, %p145
    %p148 = scmp.ne.s32.totalorder %s133, %s147
    %p149 = scmp.eq.s32.totalorder %s17, 0
    %p150 = por %p148, %p149
    %s151 = ssub.s32 %s18, %s30
    %s152 = ssub.s32 %s19, %s26
    %s153 = sor.u32 %s151, %s152
    %p154 = scmp.eq.s32.totalorder %s153, 0
    %s156 = sadd.s32 %s155, 1
    %s157 = scalar_select %p154, %s155, %s156
    %p160 = pneg %p154
    %p161 = scmp.eq.s32.totalorder %s11, 1
    %p162 = por %p160, %p161
    %p163 = scmp.ne.s32.totalorder %s155, %s158
    %p164 = scmp.eq.s32.totalorder %s11, 0
    %p165 = por %p163, %p164
    %p166 = scmp.ne.s32.totalorder %s155, %s158
    %p167 = scmp.eq.s32.totalorder %s16, 1
    %p168 = por %p166, %p167
    %p169 = scmp.ne.s32.totalorder %s158, %s159
    %p170 = scmp.eq.s32.totalorder %s16, 0
    %p171 = por %p169, %p170
    %p172 = scmp.ne.s32.totalorder %s158, %s159
    %p173 = scmp.eq.s32.totalorder %s17, 1
    %p174 = por %p172, %p173
    %p176 = scmp.ne.s32.totalorder %s159, %s175
    %p177 = scmp.eq.s32.totalorder %s17, 0
    %p178 = por %p176, %p177
    %p179 = scmp.le.s32.totalorder 1, %s11
    %p180 = scmp.lt.s32.totalorder %s11, 3
    %p181 = pnand %p179, %p180
    %p182 = pneg %p181
    // Predicated region
    $region9: #{conv_u_forward.5} parent=5 // pred_check
      _
    $region10: #{conv_u_forward.5} parent=5 // pred_check_branch
      %184 = sbr.rel (%p181) target = $region12
    $region11: #{conv_u_forward.5} parent=5 // pred_region
      %s185 = ssub.s32 %s11, 1
      // Predicated region
      $region13: #{conv_u_forward.5} parent=11 // pred_check
        %p186 = pneg %p101
      $region14: #{conv_u_forward.5} parent=11 // pred_check_branch
        %188 = sbr.rel (%p186) target = $region16
      $region15: #{conv_u_forward.5} parent=11 // pred_region
        %p189 = scmp.lt.s32.totalorder %s21, 0
        %s190 = scalar_select %p189, %s21, 0
        %s191 = smul.addr %s190, 4
        %s192 = scalar_lea.vmem %s2, %s191
      $region16: #{conv_u_forward.5} parent=11 // pred_fallthru
        _
      // Predicated region
      $region17: #{conv_u_forward.5} parent=11 // pred_check
        %p193 = pneg %p122
      $region18: #{conv_u_forward.5} parent=11 // pred_check_branch
        %195 = sbr.rel (%p193) target = $region20
      $region19: #{conv_u_forward.5} parent=11 // pred_region
        _
      $region20: #{conv_u_forward.5} parent=11 // pred_fallthru
        _
      // Predicated region
      $region21: #{conv_u_forward.5} parent=11 // pred_check
        %p196 = pneg %p143
      $region22: #{conv_u_forward.5} parent=11 // pred_check_branch
        %198 = sbr.rel (%p196) target = $region24
      $region23: #{conv_u_forward.5} parent=11 // pred_region
        _
      $region24: #{conv_u_forward.5} parent=11 // pred_fallthru
        _
    $region12: #{conv_u_forward.5} parent=5 // pred_fallthru
      _
    %p199 = scmp.lt.s32.totalorder %s11, 2
    // Predicated region
    $region25: #{conv_u_forward.5} parent=5 // pred_check
      %p200 = pneg %p199
    $region26: #{conv_u_forward.5} parent=5 // pred_check_branch
      %202 = sbr.rel (%p200) target = $region28
    $region27: #{conv_u_forward.5} parent=5 // pred_region
      // Predicated region
      $region29: #{conv_u_forward.5} parent=27 // pred_check
        %p203 = pneg %p43
      $region30: #{conv_u_forward.5} parent=27 // pred_check_branch
        %205 = sbr.rel (%p203) target = $region32
      $region31: #{conv_u_forward.5} parent=27 // pred_region
        %p206 = scmp.lt.s32.totalorder %s18, 1
        %s207 = scalar_select %p206, %s18, 1
        %s208 = smul.addr %s207, 32
        %s209 = smul.addr %s208, 4
        %s210 = scalar_lea.vmem %s0, %s209
      $region32: #{conv_u_forward.5} parent=27 // pred_fallthru
        _
      // Predicated region
      $region33: #{conv_u_forward.5} parent=27 // pred_check
        %p211 = pneg %p69
      $region34: #{conv_u_forward.5} parent=27 // pred_check_branch
        %213 = sbr.rel (%p211) target = $region36
      $region35: #{conv_u_forward.5} parent=27 // pred_region
        %p214 = scmp.lt.s32.totalorder %s18, 1
        %s215 = scalar_select %p214, %s18, 1
        %s216 = smul.addr %s215, 32
        %s217 = smul.addr %s216, 4
        %s218 = scalar_lea.vmem %s1, %s217
      $region36: #{conv_u_forward.5} parent=27 // pred_fallthru
        _
    $region28: #{conv_u_forward.5} parent=5 // pred_fallthru
      _
    %p219 = scmp.le.s32.totalorder 1, %s11
    %p220 = scmp.lt.s32.totalorder %s11, 3
    %p221 = pnand %p219, %p220
    %p222 = pneg %p221
    // Predicated region
    $region37: #{conv_u_forward.5} parent=5 // pred_check
      _
    $region38: #{conv_u_forward.5} parent=5 // pred_check_branch
      %224 = sbr.rel (%p221) target = $region40
    $region39: #{conv_u_forward.5} parent=5 // pred_region
      %s225 = ssub.s32 %s11, 1
      %p226 = scmp.lt.s32.totalorder %s20, 1
      %s227 = scalar_select %p226, %s20, 1
      %s228 = smul.addr %s227, 32
      %s229 = smul.addr %s228, 4
      %s230 = scalar_lea.vmem %s0, %s229
      %p231 = pneg %p49
      %p232 = pneg %p46
      %p233 = scmp.lt.s32.totalorder %s20, 1
      %s234 = scalar_select %p233, %s20, 1
      %s235 = smul.addr %s234, 32
      %s236 = smul.addr %s235, 4
      %s237 = scalar_lea.vmem %s1, %s236
      %p238 = pneg %p75
      %p239 = pneg %p72
      %p240 = scmp.lt.s32.totalorder %s21, 0
      %s241 = scalar_select %p240, %s21, 0
      %s242 = smul.addr %s241, 4
      %s243 = scalar_lea.vmem %s2, %s242
      %p244 = pneg %p101
      %p245 = pneg %p98
      %p246 = pneg %p122
      %p247 = pneg %p119
      %p248 = pneg %p143
      %p249 = pneg %p140
      %p250 = pneg %p171
      %p251 = pneg %p168
      %p252 = scmp.lt.s32.totalorder %s20, 1
      %s253 = scalar_select %p252, %s20, 1
      %p254 = scmp.lt.s32.totalorder %s21, 0
      %s255 = scalar_select %p254, %s21, 0
      %s256 = smul.addr %s253, 32
      %s257 = sadd.s32 %s255, %s256
      %s258 = smul.addr %s257, 8
      %s259 = scalar_lea.vmem %s5, %s258
      %p260 = scmp.lt.s32.totalorder %s20, 1
      %s261 = scalar_select %p260, %s20, 1
      %s262 = smul.addr %s261, 32
      %s263 = smul.addr %s262, 4
      %s264 = scalar_lea.vmem %s0, %s263
      %p265 = scmp.lt.s32.totalorder %s20, 1
      %s266 = scalar_select %p265, %s20, 1
      %s267 = smul.addr %s266, 32
      %s268 = smul.addr %s267, 4
      %s269 = scalar_lea.vmem %s1, %s268
      %p270 = scmp.lt.s32.totalorder %s21, 0
      %s271 = scalar_select %p270, %s21, 0
      %s272 = smul.addr %s271, 4
      %s273 = scalar_lea.vmem %s2, %s272
      %p274 = scmp.lt.s32.totalorder %s20, 1
      %s275 = scalar_select %p274, %s20, 1
      %p276 = scmp.lt.s32.totalorder %s21, 0
      %s277 = scalar_select %p276, %s21, 0
      %s278 = smul.addr %s275, 32
      %s279 = sadd.s32 %s277, %s278
      %s280 = smul.addr %s279, 8
      %s281 = scalar_lea.vmem %s5, %s280
      %v283 = vld [vmem:[%s264] sm:$0xf]
      %v284 = vld [vmem:[%s264 + $0x4] sm:$0xf]
      %v285 = vld [vmem:[%s264 + $0x8] sm:$0xf]
      %v286 = vld [vmem:[%s264 + $0xc] sm:$0xf]
      %v287 = vld [vmem:[%s264 + $0x10] sm:$0xf]
      %v288 = vld [vmem:[%s264 + $0x14] sm:$0xf]
      %v289 = vld [vmem:[%s264 + $0x18] sm:$0xf]
      %v290 = vld [vmem:[%s264 + $0x1c] sm:$0xf]
      %v291 = vld [vmem:[%s264 + $0x20] sm:$0xf]
      %v292 = vld [vmem:[%s264 + $0x24] sm:$0xf]
      %v293 = vld [vmem:[%s264 + $0x28] sm:$0xf]
      %v294 = vld [vmem:[%s264 + $0x2c] sm:$0xf]
      %v295 = vld [vmem:[%s264 + $0x30] sm:$0xf]
      %v296 = vld [vmem:[%s264 + $0x34] sm:$0xf]
      %v297 = vld [vmem:[%s264 + $0x38] sm:$0xf]
      %v298 = vld [vmem:[%s264 + $0x3c] sm:$0xf]
      %v299 = vld [vmem:[%s264 + $0x40] sm:$0xf]
      %v300 = vld [vmem:[%s264 + $0x44] sm:$0xf]
      %v301 = vld [vmem:[%s264 + $0x48] sm:$0xf]
      %v302 = vld [vmem:[%s264 + $0x4c] sm:$0xf]
      %v303 = vld [vmem:[%s264 + $0x50] sm:$0xf]
      %v304 = vld [vmem:[%s264 + $0x54] sm:$0xf]
      %v305 = vld [vmem:[%s264 + $0x58] sm:$0xf]
      %v306 = vld [vmem:[%s264 + $0x5c] sm:$0xf]
      %v307 = vld [vmem:[%s264 + $0x60] sm:$0xf]
      %v308 = vld [vmem:[%s264 + $0x64] sm:$0xf]
      %v309 = vld [vmem:[%s264 + $0x68] sm:$0xf]
      %v310 = vld [vmem:[%s264 + $0x6c] sm:$0xf]
      %v311 = vld [vmem:[%s264 + $0x70] sm:$0xf]
      %v312 = vld [vmem:[%s264 + $0x74] sm:$0xf]
      %v313 = vld [vmem:[%s264 + $0x78] sm:$0xf]
      %v314 = vld [vmem:[%s264 + $0x7c] sm:$0xf]
      %v315 = vunpack.c.l.bf16 %v283
      %v316 = vunpack.c.l.bf16 %v284
      %v317 = vunpack.c.l.bf16 %v285
      %v318 = vunpack.c.l.bf16 %v286
      %v319 = vunpack.c.l.bf16 %v287
      %v320 = vunpack.c.l.bf16 %v288
      %v321 = vunpack.c.l.bf16 %v289
      %v322 = vunpack.c.l.bf16 %v290
      %v323 = vunpack.c.l.bf16 %v291
      %v324 = vunpack.c.l.bf16 %v292
      %v325 = vunpack.c.l.bf16 %v293
      %v326 = vunpack.c.l.bf16 %v294
      %v327 = vunpack.c.l.bf16 %v295
      %v328 = vunpack.c.l.bf16 %v296
      %v329 = vunpack.c.l.bf16 %v297
      %v330 = vunpack.c.l.bf16 %v298
      %v331 = vunpack.c.l.bf16 %v299
      %v332 = vunpack.c.l.bf16 %v300
      %v333 = vunpack.c.l.bf16 %v301
      %v334 = vunpack.c.l.bf16 %v302
      %v335 = vunpack.c.l.bf16 %v303
      %v336 = vunpack.c.l.bf16 %v304
      %v337 = vunpack.c.l.bf16 %v305
      %v338 = vunpack.c.l.bf16 %v306
      %v339 = vunpack.c.l.bf16 %v307
      %v340 = vunpack.c.l.bf16 %v308
      %v341 = vunpack.c.l.bf16 %v309
      %v342 = vunpack.c.l.bf16 %v310
      %v343 = vunpack.c.l.bf16 %v311
      %v344 = vunpack.c.l.bf16 %v312
      %v345 = vunpack.c.l.bf16 %v313
      %v346 = vunpack.c.l.bf16 %v314
      %vm347 = vcmask 15360
      %v348 = vsel %vm347, %v315, 0.0
      %v349 = vsel %vm347, %v316, 0.0
      %v350 = vadd.f32 %v348, %v349
      %v351 = vsel %vm347, %v317, 0.0
      %v352 = vadd.f32 %v350, %v351
      %v353 = vsel %vm347, %v318, 0.0
      %v354 = vadd.f32 %v352, %v353
      %v355 = vsel %vm347, %v319, 0.0
      %v356 = vadd.f32 %v354, %v355
      %v357 = vsel %vm347, %v320, 0.0
      %v358 = vadd.f32 %v356, %v357
      %v359 = vsel %vm347, %v321, 0.0
      %v360 = vadd.f32 %v358, %v359
      %v361 = vsel %vm347, %v322, 0.0
      %v362 = vadd.f32 %v360, %v361
      %v363 = vsel %vm347, %v323, 0.0
      %v364 = vadd.f32 %v362, %v363
      %v365 = vsel %vm347, %v324, 0.0
      %v366 = vadd.f32 %v364, %v365
      %v367 = vsel %vm347, %v325, 0.0
      %v368 = vadd.f32 %v366, %v367
      %v369 = vsel %vm347, %v326, 0.0
      %v370 = vadd.f32 %v368, %v369
      %v371 = vsel %vm347, %v327, 0.0
      %v372 = vadd.f32 %v370, %v371
      %v373 = vsel %vm347, %v328, 0.0
      %v374 = vadd.f32 %v372, %v373
      %v375 = vsel %vm347, %v329, 0.0
      %v376 = vadd.f32 %v374, %v375
      %v377 = vsel %vm347, %v330, 0.0
      %v378 = vadd.f32 %v376, %v377
      %v379 = vsel %vm347, %v331, 0.0
      %v380 = vadd.f32 %v378, %v379
      %v381 = vsel %vm347, %v332, 0.0
      %v382 = vadd.f32 %v380, %v381
      %v383 = vsel %vm347, %v333, 0.0
      %v384 = vadd.f32 %v382, %v383
      %v385 = vsel %vm347, %v334, 0.0
      %v386 = vadd.f32 %v384, %v385
      %v387 = vsel %vm347, %v335, 0.0
      %v388 = vadd.f32 %v386, %v387
      %v389 = vsel %vm347, %v336, 0.0
      %v390 = vadd.f32 %v388, %v389
      %v391 = vsel %vm347, %v337, 0.0
      %v392 = vadd.f32 %v390, %v391
      %v393 = vsel %vm347, %v338, 0.0
      %v394 = vadd.f32 %v392, %v393
      %v395 = vsel %vm347, %v339, 0.0
      %v396 = vadd.f32 %v394, %v395
      %v397 = vsel %vm347, %v340, 0.0
      %v398 = vadd.f32 %v396, %v397
      %v399 = vsel %vm347, %v341, 0.0
      %v400 = vadd.f32 %v398, %v399
      %v401 = vsel %vm347, %v342, 0.0
      %v402 = vadd.f32 %v400, %v401
      %v403 = vsel %vm347, %v343, 0.0
      %v404 = vadd.f32 %v402, %v403
      %v405 = vsel %vm347, %v344, 0.0
      %v406 = vadd.f32 %v404, %v405
      %v407 = vsel %vm347, %v345, 0.0
      %v408 = vadd.f32 %v406, %v407
      %v409 = vsel %vm347, %v346, 0.0
      %v410 = vadd.f32 %v408, %v409
      %v411 = vrot.slane %v410, 4
      %v412 = vadd.f32 %v410, %v411
      %v413 = vrot.slane %v412, 2
      %v414 = vadd.f32 %v412, %v413
      %v415 = vrot.slane %v414, 1
      %v416 = vadd.f32 %v414, %v415
      %v417 = vmul.f32 %v416, 0.00390625
      %v418 = vsub.f32 %v315, %v417
      %v419 = vsub.f32 %v316, %v417
      %v420 = vsub.f32 %v317, %v417
      %v421 = vsub.f32 %v318, %v417
      %v422 = vsub.f32 %v319, %v417
      %v423 = vsub.f32 %v320, %v417
      %v424 = vsub.f32 %v321, %v417
      %v425 = vsub.f32 %v322, %v417
      %v426 = vsub.f32 %v323, %v417
      %v427 = vsub.f32 %v324, %v417
      %v428 = vsub.f32 %v325, %v417
      %v429 = vsub.f32 %v326, %v417
      %v430 = vsub.f32 %v327, %v417
      %v431 = vsub.f32 %v328, %v417
      %v432 = vsub.f32 %v329, %v417
      %v433 = vsub.f32 %v330, %v417
      %v434 = vsub.f32 %v331, %v417
      %v435 = vsub.f32 %v332, %v417
      %v436 = vsub.f32 %v333, %v417
      %v437 = vsub.f32 %v334, %v417
      %v438 = vsub.f32 %v335, %v417
      %v439 = vsub.f32 %v336, %v417
      %v440 = vsub.f32 %v337, %v417
      %v441 = vsub.f32 %v338, %v417
      %v442 = vsub.f32 %v339, %v417
      %v443 = vsub.f32 %v340, %v417
      %v444 = vsub.f32 %v341, %v417
      %v445 = vsub.f32 %v342, %v417
      %v446 = vsub.f32 %v343, %v417
      %v447 = vsub.f32 %v344, %v417
      %v448 = vsub.f32 %v345, %v417
      %v449 = vsub.f32 %v346, %v417
      %v450 = vmul.f32 %v418, %v418
      %v451 = vmul.f32 %v419, %v419
      %v452 = vmul.f32 %v420, %v420
      %v453 = vmul.f32 %v421, %v421
      %v454 = vmul.f32 %v422, %v422
      %v455 = vmul.f32 %v423, %v423
      %v456 = vmul.f32 %v424, %v424
      %v457 = vmul.f32 %v425, %v425
      %v458 = vmul.f32 %v426, %v426
      %v459 = vmul.f32 %v427, %v427
      %v460 = vmul.f32 %v428, %v428
      %v461 = vmul.f32 %v429, %v429
      %v462 = vmul.f32 %v430, %v430
      %v463 = vmul.f32 %v431, %v431
      %v464 = vmul.f32 %v432, %v432
      %v465 = vmul.f32 %v433, %v433
      %v466 = vmul.f32 %v434, %v434
      %v467 = vmul.f32 %v435, %v435
      %v468 = vmul.f32 %v436, %v436
      %v469 = vmul.f32 %v437, %v437
      %v470 = vmul.f32 %v438, %v438
      %v471 = vmul.f32 %v439, %v439
      %v472 = vmul.f32 %v440, %v440
      %v473 = vmul.f32 %v441, %v441
      %v474 = vmul.f32 %v442, %v442
      %v475 = vmul.f32 %v443, %v443
      %v476 = vmul.f32 %v444, %v444
      %v477 = vmul.f32 %v445, %v445
      %v478 = vmul.f32 %v446, %v446
      %v479 = vmul.f32 %v447, %v447
      %v480 = vmul.f32 %v448, %v448
      %v481 = vmul.f32 %v449, %v449
      %v482 = vsel %vm347, %v450, 0.0
      %v483 = vsel %vm347, %v451, 0.0
      %v484 = vadd.f32 %v482, %v483
      %v485 = vsel %vm347, %v452, 0.0
      %v486 = vadd.f32 %v484, %v485
      %v487 = vsel %vm347, %v453, 0.0
      %v488 = vadd.f32 %v486, %v487
      %v489 = vsel %vm347, %v454, 0.0
      %v490 = vadd.f32 %v488, %v489
      %v491 = vsel %vm347, %v455, 0.0
      %v492 = vadd.f32 %v490, %v491
      %v493 = vsel %vm347, %v456, 0.0
      %v494 = vadd.f32 %v492, %v493
      %v495 = vsel %vm347, %v457, 0.0
      %v496 = vadd.f32 %v494, %v495
      %v497 = vsel %vm347, %v458, 0.0
      %v498 = vadd.f32 %v496, %v497
      %v499 = vsel %vm347, %v459, 0.0
      %v500 = vadd.f32 %v498, %v499
      %v501 = vsel %vm347, %v460, 0.0
      %v502 = vadd.f32 %v500, %v501
      %v503 = vsel %vm347, %v461, 0.0
      %v504 = vadd.f32 %v502, %v503
      %v505 = vsel %vm347, %v462, 0.0
      %v506 = vadd.f32 %v504, %v505
      %v507 = vsel %vm347, %v463, 0.0
      %v508 = vadd.f32 %v506, %v507
      %v509 = vsel %vm347, %v464, 0.0
      %v510 = vadd.f32 %v508, %v509
      %v511 = vsel %vm347, %v465, 0.0
      %v512 = vadd.f32 %v510, %v511
      %v513 = vsel %vm347, %v466, 0.0
      %v514 = vadd.f32 %v512, %v513
      %v515 = vsel %vm347, %v467, 0.0
      %v516 = vadd.f32 %v514, %v515
      %v517 = vsel %vm347, %v468, 0.0
      %v518 = vadd.f32 %v516, %v517
      %v519 = vsel %vm347, %v469, 0.0
      %v520 = vadd.f32 %v518, %v519
      %v521 = vsel %vm347, %v470, 0.0
      %v522 = vadd.f32 %v520, %v521
      %v523 = vsel %vm347, %v471, 0.0
      %v524 = vadd.f32 %v522, %v523
      %v525 = vsel %vm347, %v472, 0.0
      %v526 = vadd.f32 %v524, %v525
      %v527 = vsel %vm347, %v473, 0.0
      %v528 = vadd.f32 %v526, %v527
      %v529 = vsel %vm347, %v474, 0.0
      %v530 = vadd.f32 %v528, %v529
      %v531 = vsel %vm347, %v475, 0.0
      %v532 = vadd.f32 %v530, %v531
      %v533 = vsel %vm347, %v476, 0.0
      %v534 = vadd.f32 %v532, %v533
      %v535 = vsel %vm347, %v477, 0.0
      %v536 = vadd.f32 %v534, %v535
      %v537 = vsel %vm347, %v478, 0.0
      %v538 = vadd.f32 %v536, %v537
      %v539 = vsel %vm347, %v479, 0.0
      %v540 = vadd.f32 %v538, %v539
      %v541 = vsel %vm347, %v480, 0.0
      %v542 = vadd.f32 %v540, %v541
      %v543 = vsel %vm347, %v481, 0.0
      %v544 = vadd.f32 %v542, %v543
      %v545 = vrot.slane %v544, 4
      %v546 = vadd.f32 %v544, %v545
      %v547 = vrot.slane %v546, 2
      %v548 = vadd.f32 %v546, %v547
      %v549 = vrot.slane %v548, 1
      %v550 = vadd.f32 %v548, %v549
      %v551 = vmul.f32 %v550, 0.00390625
      %v552 = vadd.f32 %v551, 1e-05
      %v553 = vrsqrt.pop %v552
      %v554 = vmul.f32 %v418, %v553
      %v555 = vmul.f32 %v419, %v553
      %v556 = vmul.f32 %v420, %v553
      %v557 = vmul.f32 %v421, %v553
      %v558 = vmul.f32 %v422, %v553
      %v559 = vmul.f32 %v423, %v553
      %v560 = vmul.f32 %v424, %v553
      %v561 = vmul.f32 %v425, %v553
      %v562 = vmul.f32 %v426, %v553
      %v563 = vmul.f32 %v427, %v553
      %v564 = vmul.f32 %v428, %v553
      %v565 = vmul.f32 %v429, %v553
      %v566 = vmul.f32 %v430, %v553
      %v567 = vmul.f32 %v431, %v553
      %v568 = vmul.f32 %v432, %v553
      %v569 = vmul.f32 %v433, %v553
      %v570 = vmul.f32 %v434, %v553
      %v571 = vmul.f32 %v435, %v553
      %v572 = vmul.f32 %v436, %v553
      %v573 = vmul.f32 %v437, %v553
      %v574 = vmul.f32 %v438, %v553
      %v575 = vmul.f32 %v439, %v553
      %v576 = vmul.f32 %v440, %v553
      %v577 = vmul.f32 %v441, %v553
      %v578 = vmul.f32 %v442, %v553
      %v579 = vmul.f32 %v443, %v553
      %v580 = vmul.f32 %v444, %v553
      %v581 = vmul.f32 %v445, %v553
      %v582 = vmul.f32 %v446, %v553
      %v583 = vmul.f32 %v447, %v553
      %v584 = vmul.f32 %v448, %v553
      %v585 = vmul.f32 %v449, %v553
      %vm586 = vcmp.ge.f32.partialorder %v554, 0.0
      %vm587 = vcmp.ge.f32.partialorder %v555, 0.0
      %vm588 = vcmp.ge.f32.partialorder %v556, 0.0
      %vm589 = vcmp.ge.f32.partialorder %v557, 0.0
      %vm590 = vcmp.ge.f32.partialorder %v558, 0.0
      %vm591 = vcmp.ge.f32.partialorder %v559, 0.0
      %vm592 = vcmp.ge.f32.partialorder %v560, 0.0
      %vm593 = vcmp.ge.f32.partialorder %v561, 0.0
      %vm594 = vcmp.ge.f32.partialorder %v562, 0.0
      %vm595 = vcmp.ge.f32.partialorder %v563, 0.0
      %vm596 = vcmp.ge.f32.partialorder %v564, 0.0
      %vm597 = vcmp.ge.f32.partialorder %v565, 0.0
      %vm598 = vcmp.ge.f32.partialorder %v566, 0.0
      %vm599 = vcmp.ge.f32.partialorder %v567, 0.0
      %vm600 = vcmp.ge.f32.partialorder %v568, 0.0
      %vm601 = vcmp.ge.f32.partialorder %v569, 0.0
      %vm602 = vcmp.ge.f32.partialorder %v570, 0.0
      %vm603 = vcmp.ge.f32.partialorder %v571, 0.0
      %vm604 = vcmp.ge.f32.partialorder %v572, 0.0
      %vm605 = vcmp.ge.f32.partialorder %v573, 0.0
      %vm606 = vcmp.ge.f32.partialorder %v574, 0.0
      %vm607 = vcmp.ge.f32.partialorder %v575, 0.0
      %vm608 = vcmp.ge.f32.partialorder %v576, 0.0
      %vm609 = vcmp.ge.f32.partialorder %v577, 0.0
      %vm610 = vcmp.ge.f32.partialorder %v578, 0.0
      %vm611 = vcmp.ge.f32.partialorder %v579, 0.0
      %vm612 = vcmp.ge.f32.partialorder %v580, 0.0
      %vm613 = vcmp.ge.f32.partialorder %v581, 0.0
      %vm614 = vcmp.ge.f32.partialorder %v582, 0.0
      %vm615 = vcmp.ge.f32.partialorder %v583, 0.0
      %vm616 = vcmp.ge.f32.partialorder %v584, 0.0
      %vm617 = vcmp.ge.f32.partialorder %v585, 0.0
      %v618 = vmul.f32 %v554, 0.01
      %v619 = vmul.f32 %v555, 0.01
      %v620 = vmul.f32 %v556, 0.01
      %v621 = vmul.f32 %v557, 0.01
      %v622 = vmul.f32 %v558, 0.01
      %v623 = vmul.f32 %v559, 0.01
      %v624 = vmul.f32 %v560, 0.01
      %v625 = vmul.f32 %v561, 0.01
      %v626 = vmul.f32 %v562, 0.01
      %v627 = vmul.f32 %v563, 0.01
      %v628 = vmul.f32 %v564, 0.01
      %v629 = vmul.f32 %v565, 0.01
      %v630 = vmul.f32 %v566, 0.01
      %v631 = vmul.f32 %v567, 0.01
      %v632 = vmul.f32 %v568, 0.01
      %v633 = vmul.f32 %v569, 0.01
      %v634 = vmul.f32 %v570, 0.01
      %v635 = vmul.f32 %v571, 0.01
      %v636 = vmul.f32 %v572, 0.01
      %v637 = vmul.f32 %v573, 0.01
      %v638 = vmul.f32 %v574, 0.01
      %v639 = vmul.f32 %v575, 0.01
      %v640 = vmul.f32 %v576, 0.01
      %v641 = vmul.f32 %v577, 0.01
      %v642 = vmul.f32 %v578, 0.01
      %v643 = vmul.f32 %v579, 0.01
      %v644 = vmul.f32 %v580, 0.01
      %v645 = vmul.f32 %v581, 0.01
      %v646 = vmul.f32 %v582, 0.01
      %v647 = vmul.f32 %v583, 0.01
      %v648 = vmul.f32 %v584, 0.01
      %v649 = vmul.f32 %v585, 0.01
      %v650 = vsel %vm586, %v554, %v618
      %v651 = vsel %vm587, %v555, %v619
      %v652 = vsel %vm588, %v556, %v620
      %v653 = vsel %vm589, %v557, %v621
      %v654 = vsel %vm590, %v558, %v622
      %v655 = vsel %vm591, %v559, %v623
      %v656 = vsel %vm592, %v560, %v624
      %v657 = vsel %vm593, %v561, %v625
      %v658 = vsel %vm594, %v562, %v626
      %v659 = vsel %vm595, %v563, %v627
      %v660 = vsel %vm596, %v564, %v628
      %v661 = vsel %vm597, %v565, %v629
      %v662 = vsel %vm598, %v566, %v630
      %v663 = vsel %vm599, %v567, %v631
      %v664 = vsel %vm600, %v568, %v632
      %v665 = vsel %vm601, %v569, %v633
      %v666 = vsel %vm602, %v570, %v634
      %v667 = vsel %vm603, %v571, %v635
      %v668 = vsel %vm604, %v572, %v636
      %v669 = vsel %vm605, %v573, %v637
      %v670 = vsel %vm606, %v574, %v638
      %v671 = vsel %vm607, %v575, %v639
      %v672 = vsel %vm608, %v576, %v640
      %v673 = vsel %vm609, %v577, %v641
      %v674 = vsel %vm610, %v578, %v642
      %v675 = vsel %vm611, %v579, %v643
      %v676 = vsel %vm612, %v580, %v644
      %v677 = vsel %vm613, %v581, %v645
      %v678 = vsel %vm614, %v582, %v646
      %v679 = vsel %vm615, %v583, %v647
      %v680 = vsel %vm616, %v584, %v648
      %v681 = vsel %vm617, %v585, %v649
      %v682 = vld [vmem:[%s269] sm:$0xf]
      %v683 = vld [vmem:[%s269 + $0x4] sm:$0xf]
      %v684 = vld [vmem:[%s269 + $0x8] sm:$0xf]
      %v685 = vld [vmem:[%s269 + $0xc] sm:$0xf]
      %v686 = vld [vmem:[%s269 + $0x10] sm:$0xf]
      %v687 = vld [vmem:[%s269 + $0x14] sm:$0xf]
      %v688 = vld [vmem:[%s269 + $0x18] sm:$0xf]
      %v689 = vld [vmem:[%s269 + $0x1c] sm:$0xf]
      %v690 = vld [vmem:[%s269 + $0x20] sm:$0xf]
      %v691 = vld [vmem:[%s269 + $0x24] sm:$0xf]
      %v692 = vld [vmem:[%s269 + $0x28] sm:$0xf]
      %v693 = vld [vmem:[%s269 + $0x2c] sm:$0xf]
      %v694 = vld [vmem:[%s269 + $0x30] sm:$0xf]
      %v695 = vld [vmem:[%s269 + $0x34] sm:$0xf]
      %v696 = vld [vmem:[%s269 + $0x38] sm:$0xf]
      %v697 = vld [vmem:[%s269 + $0x3c] sm:$0xf]
      %v698 = vld [vmem:[%s269 + $0x40] sm:$0xf]
      %v699 = vld [vmem:[%s269 + $0x44] sm:$0xf]
      %v700 = vld [vmem:[%s269 + $0x48] sm:$0xf]
      %v701 = vld [vmem:[%s269 + $0x4c] sm:$0xf]
      %v702 = vld [vmem:[%s269 + $0x50] sm:$0xf]
      %v703 = vld [vmem:[%s269 + $0x54] sm:$0xf]
      %v704 = vld [vmem:[%s269 + $0x58] sm:$0xf]
      %v705 = vld [vmem:[%s269 + $0x5c] sm:$0xf]
      %v706 = vld [vmem:[%s269 + $0x60] sm:$0xf]
      %v707 = vld [vmem:[%s269 + $0x64] sm:$0xf]
      %v708 = vld [vmem:[%s269 + $0x68] sm:$0xf]
      %v709 = vld [vmem:[%s269 + $0x6c] sm:$0xf]
      %v710 = vld [vmem:[%s269 + $0x70] sm:$0xf]
      %v711 = vld [vmem:[%s269 + $0x74] sm:$0xf]
      %v712 = vld [vmem:[%s269 + $0x78] sm:$0xf]
      %v713 = vld [vmem:[%s269 + $0x7c] sm:$0xf]
      %v714 = vpack.c.bf16 %v651, %v650
      %v715 = vpack.c.bf16 %v653, %v652
      %v716 = vpack.c.bf16 %v655, %v654
      %v717 = vpack.c.bf16 %v657, %v656
      %v718 = vpack.c.bf16 %v659, %v658
      %v719 = vpack.c.bf16 %v661, %v660
      %v720 = vpack.c.bf16 %v663, %v662
      %v721 = vpack.c.bf16 %v665, %v664
      %v722 = vpack.c.bf16 %v667, %v666
      %v723 = vpack.c.bf16 %v669, %v668
      %v724 = vpack.c.bf16 %v671, %v670
      %v725 = vpack.c.bf16 %v673, %v672
      %v726 = vpack.c.bf16 %v675, %v674
      %v727 = vpack.c.bf16 %v677, %v676
      %v728 = vpack.c.bf16 %v679, %v678
      %v729 = vpack.c.bf16 %v681, %v680
      %v762 = vunpack.c.l.b16 %v682
      %v763 = vunpack.c.l.b16 %v683
      %v764 = vunpack.c.l.b16 %v684
      %v765 = vunpack.c.l.b16 %v685
      %v766 = vunpack.c.l.b16 %v686
      %v767 = vunpack.c.l.b16 %v687
      %v768 = vunpack.c.l.b16 %v688
      %v769 = vunpack.c.l.b16 %v689
      %v770 = vunpack.c.l.b16 %v690
      %v771 = vunpack.c.l.b16 %v691
      %v772 = vunpack.c.l.b16 %v692
      %v773 = vunpack.c.l.b16 %v693
      %v774 = vunpack.c.l.b16 %v694
      %v775 = vunpack.c.l.b16 %v695
      %v776 = vunpack.c.l.b16 %v696
      %v777 = vunpack.c.l.b16 %v697
      %v778 = vunpack.c.l.b16 %v698
      %v779 = vunpack.c.l.b16 %v699
      %v780 = vunpack.c.l.b16 %v700
      %v781 = vunpack.c.l.b16 %v701
      %v782 = vunpack.c.l.b16 %v702
      %v783 = vunpack.c.l.b16 %v703
      %v784 = vunpack.c.l.b16 %v704
      %v785 = vunpack.c.l.b16 %v705
      %v786 = vunpack.c.l.b16 %v706
      %v787 = vunpack.c.l.b16 %v707
      %v788 = vunpack.c.l.b16 %v708
      %v789 = vunpack.c.l.b16 %v709
      %v790 = vunpack.c.l.b16 %v710
      %v791 = vunpack.c.l.b16 %v711
      %v792 = vunpack.c.l.b16 %v712
      %v793 = vunpack.c.l.b16 %v713
      %v794 = vpack.c.b16 %v763, %v762
      %v795 = vpack.c.b16 %v765, %v764
      %v796 = vpack.c.b16 %v767, %v766
      %v797 = vpack.c.b16 %v769, %v768
      %v798 = vpack.c.b16 %v771, %v770
      %v799 = vpack.c.b16 %v773, %v772
      %v800 = vpack.c.b16 %v775, %v774
      %v801 = vpack.c.b16 %v777, %v776
      %v802 = vpack.c.b16 %v779, %v778
      %v803 = vpack.c.b16 %v781, %v780
      %v804 = vpack.c.b16 %v783, %v782
      %v805 = vpack.c.b16 %v785, %v784
      %v806 = vpack.c.b16 %v787, %v786
      %v807 = vpack.c.b16 %v789, %v788
      %v808 = vpack.c.b16 %v791, %v790
      %v809 = vpack.c.b16 %v793, %v792
      %826 = vrot.lane.b32.xlu0 %v714, 2
      %v827 = vpop.permute.xlu0 %826
      %828 = vrot.lane.b32.xlu0 %v715, 2
      %v829 = vpop.permute.xlu0 %828
      %830 = vrot.lane.b32.xlu0 %v716, 2
      %v831 = vpop.permute.xlu0 %830
      %832 = vrot.lane.b32.xlu0 %v717, 2
      %v833 = vpop.permute.xlu0 %832
      %834 = vrot.lane.b32.xlu0 %v718, 2
      %v835 = vpop.permute.xlu0 %834
      %836 = vrot.lane.b32.xlu0 %v719, 2
      %v837 = vpop.permute.xlu0 %836
      %838 = vrot.lane.b32.xlu0 %v720, 2
      %v839 = vpop.permute.xlu0 %838
      %840 = vrot.lane.b32.xlu0 %v721, 2
      %v841 = vpop.permute.xlu0 %840
      %842 = vrot.lane.b32.xlu0 %v722, 2
      %v843 = vpop.permute.xlu0 %842
      %844 = vrot.lane.b32.xlu0 %v723, 2
      %v845 = vpop.permute.xlu0 %844
      %846 = vrot.lane.b32.xlu0 %v724, 2
      %v847 = vpop.permute.xlu0 %846
      %848 = vrot.lane.b32.xlu0 %v725, 2
      %v849 = vpop.permute.xlu0 %848
      %850 = vrot.lane.b32.xlu0 %v726, 2
      %v851 = vpop.permute.xlu0 %850
      %852 = vrot.lane.b32.xlu0 %v727, 2
      %v853 = vpop.permute.xlu0 %852
      %854 = vrot.lane.b32.xlu0 %v728, 2
      %v855 = vpop.permute.xlu0 %854
      %856 = vrot.lane.b32.xlu0 %v729, 2
      %v857 = vpop.permute.xlu0 %856
      %v860 = vsel %vm347, %v794, %v827
      %v863 = vsel %vm347, %v795, %v829
      %v866 = vsel %vm347, %v796, %v831
      %v869 = vsel %vm347, %v797, %v833
      %v872 = vsel %vm347, %v798, %v835
      %v875 = vsel %vm347, %v799, %v837
      %v878 = vsel %vm347, %v800, %v839
      %v881 = vsel %vm347, %v801, %v841
      %v884 = vsel %vm347, %v802, %v843
      %v887 = vsel %vm347, %v803, %v845
      %v890 = vsel %vm347, %v804, %v847
      %v893 = vsel %vm347, %v805, %v849
      %v896 = vsel %vm347, %v806, %v851
      %v899 = vsel %vm347, %v807, %v853
      %v902 = vsel %vm347, %v808, %v855
      %v905 = vsel %vm347, %v809, %v857
      %v906 = vld [vmem:[%s3] sm:$0xff]
      %v907 = vld [vmem:[%s3 + $0x8] sm:$0xff]
      %v908 = vld [vmem:[%s3 + $0x10] sm:$0xff]
      %v909 = vld [vmem:[%s3 + $0x18] sm:$0xff]
      %v910 = vld [vmem:[%s3 + $0x20] sm:$0xff]
      %v911 = vld [vmem:[%s3 + $0x28] sm:$0xff]
      %v912 = vld [vmem:[%s3 + $0x30] sm:$0xff]
      %v913 = vld [vmem:[%s3 + $0x38] sm:$0xff]
      %v914 = vld [vmem:[%s3 + $0x40] sm:$0xff]
      %v915 = vld [vmem:[%s3 + $0x48] sm:$0xff]
      %v916 = vld [vmem:[%s3 + $0x50] sm:$0xff]
      %v917 = vld [vmem:[%s3 + $0x58] sm:$0xff]
      %v918 = vld [vmem:[%s3 + $0x60] sm:$0xff]
      %v919 = vld [vmem:[%s3 + $0x68] sm:$0xff]
      %v920 = vld [vmem:[%s3 + $0x70] sm:$0xff]
      %v921 = vld [vmem:[%s3 + $0x78] sm:$0xff]
      %v922 = vld [vmem:[%s3 + $0x80] sm:$0xff]
      %v923 = vld [vmem:[%s3 + $0x88] sm:$0xff]
      %v924 = vld [vmem:[%s3 + $0x90] sm:$0xff]
      %v925 = vld [vmem:[%s3 + $0x98] sm:$0xff]
      %v926 = vld [vmem:[%s3 + $0xa0] sm:$0xff]
      %v927 = vld [vmem:[%s3 + $0xa8] sm:$0xff]
      %v928 = vld [vmem:[%s3 + $0xb0] sm:$0xff]
      %v929 = vld [vmem:[%s3 + $0xb8] sm:$0xff]
      %v930 = vld [vmem:[%s3 + $0xc0] sm:$0xff]
      %v931 = vld [vmem:[%s3 + $0xc8] sm:$0xff]
      %v932 = vld [vmem:[%s3 + $0xd0] sm:$0xff]
      %v933 = vld [vmem:[%s3 + $0xd8] sm:$0xff]
      %v934 = vld [vmem:[%s3 + $0xe0] sm:$0xff]
      %v935 = vld [vmem:[%s3 + $0xe8] sm:$0xff]
      %v936 = vld [vmem:[%s3 + $0xf0] sm:$0xff]
      %v937 = vld [vmem:[%s3 + $0xf8] sm:$0xff]
      %v938 = vpack.c.bf16 %v907, %v906
      %v939 = vpack.c.bf16 %v909, %v908
      %v940 = vpack.c.bf16 %v911, %v910
      %v941 = vpack.c.bf16 %v913, %v912
      %v942 = vpack.c.bf16 %v915, %v914
      %v943 = vpack.c.bf16 %v917, %v916
      %v944 = vpack.c.bf16 %v919, %v918
      %v945 = vpack.c.bf16 %v921, %v920
      %v946 = vpack.c.bf16 %v923, %v922
      %v947 = vpack.c.bf16 %v925, %v924
      %v948 = vpack.c.bf16 %v927, %v926
      %v949 = vpack.c.bf16 %v929, %v928
      %v950 = vpack.c.bf16 %v931, %v930
      %v951 = vpack.c.bf16 %v933, %v932
      %v952 = vpack.c.bf16 %v935, %v934
      %v953 = vpack.c.bf16 %v937, %v936
      %v954 = vld [vmem:[%s4] sm:$0xff]
      %v955 = vld [vmem:[%s4 + $0x8] sm:$0xff]
      %v956 = vld [vmem:[%s4 + $0x10] sm:$0xff]
      %v957 = vld [vmem:[%s4 + $0x18] sm:$0xff]
      %v958 = vld [vmem:[%s4 + $0x20] sm:$0xff]
      %v959 = vld [vmem:[%s4 + $0x28] sm:$0xff]
      %v960 = vld [vmem:[%s4 + $0x30] sm:$0xff]
      %v961 = vld [vmem:[%s4 + $0x38] sm:$0xff]
      %v962 = vld [vmem:[%s4 + $0x40] sm:$0xff]
      %v963 = vld [vmem:[%s4 + $0x48] sm:$0xff]
      %v964 = vld [vmem:[%s4 + $0x50] sm:$0xff]
      %v965 = vld [vmem:[%s4 + $0x58] sm:$0xff]
      %v966 = vld [vmem:[%s4 + $0x60] sm:$0xff]
      %v967 = vld [vmem:[%s4 + $0x68] sm:$0xff]
      %v968 = vld [vmem:[%s4 + $0x70] sm:$0xff]
      %v969 = vld [vmem:[%s4 + $0x78] sm:$0xff]
      %v970 = vld [vmem:[%s4 + $0x80] sm:$0xff]
      %v971 = vld [vmem:[%s4 + $0x88] sm:$0xff]
      %v972 = vld [vmem:[%s4 + $0x90] sm:$0xff]
      %v973 = vld [vmem:[%s4 + $0x98] sm:$0xff]
      %v974 = vld [vmem:[%s4 + $0xa0] sm:$0xff]
      %v975 = vld [vmem:[%s4 + $0xa8] sm:$0xff]
      %v976 = vld [vmem:[%s4 + $0xb0] sm:$0xff]
      %v977 = vld [vmem:[%s4 + $0xb8] sm:$0xff]
      %v978 = vld [vmem:[%s4 + $0xc0] sm:$0xff]
      %v979 = vld [vmem:[%s4 + $0xc8] sm:$0xff]
      %v980 = vld [vmem:[%s4 + $0xd0] sm:$0xff]
      %v981 = vld [vmem:[%s4 + $0xd8] sm:$0xff]
      %v982 = vld [vmem:[%s4 + $0xe0] sm:$0xff]
      %v983 = vld [vmem:[%s4 + $0xe8] sm:$0xff]
      %v984 = vld [vmem:[%s4 + $0xf0] sm:$0xff]
      %v985 = vld [vmem:[%s4 + $0xf8] sm:$0xff]
      %v986 = vpack.c.bf16 %v955, %v954
      %v987 = vpack.c.bf16 %v957, %v956
      %v988 = vpack.c.bf16 %v959, %v958
      %v989 = vpack.c.bf16 %v961, %v960
      %v990 = vpack.c.bf16 %v963, %v962
      %v991 = vpack.c.bf16 %v965, %v964
      %v992 = vpack.c.bf16 %v967, %v966
      %v993 = vpack.c.bf16 %v969, %v968
      %v994 = vpack.c.bf16 %v971, %v970
      %v995 = vpack.c.bf16 %v973, %v972
      %v996 = vpack.c.bf16 %v975, %v974
      %v997 = vpack.c.bf16 %v977, %v976
      %v998 = vpack.c.bf16 %v979, %v978
      %v999 = vpack.c.bf16 %v981, %v980
      %v1000 = vpack.c.bf16 %v983, %v982
      %v1001 = vpack.c.bf16 %v985, %v984
      %vm1002 = vsmask.f32 256
      %v1003 = vshrl.u32 %v860, 16
      %v1005 = vrot.slane %v1003, 7
      %v1006 = vshll.u32 %v860, 16
      %v1008 = vor.u32 %v1005, %v1006
      %v1009 = vshrl.u32 %v863, 16
      %v1011 = vrot.slane %v1009, 7
      %v1012 = vshll.u32 %v863, 16
      %v1014 = vor.u32 %v1011, %v1012
      %v1015 = vsel %vm1002, %v1005, %v1014
      %v1016 = vshrl.u32 %v866, 16
      %v1018 = vrot.slane %v1016, 7
      %v1019 = vshll.u32 %v866, 16
      %v1021 = vor.u32 %v1018, %v1019
      %v1022 = vsel %vm1002, %v1011, %v1021
      %v1023 = vshrl.u32 %v869, 16
      %v1025 = vrot.slane %v1023, 7
      %v1026 = vshll.u32 %v869, 16
      %v1028 = vor.u32 %v1025, %v1026
      %v1029 = vsel %vm1002, %v1018, %v1028
      %v1030 = vshrl.u32 %v872, 16
      %v1032 = vrot.slane %v1030, 7
      %v1033 = vshll.u32 %v872, 16
      %v1035 = vor.u32 %v1032, %v1033
      %v1036 = vsel %vm1002, %v1025, %v1035
      %v1037 = vshrl.u32 %v875, 16
      %v1039 = vrot.slane %v1037, 7
      %v1040 = vshll.u32 %v875, 16
      %v1042 = vor.u32 %v1039, %v1040
      %v1043 = vsel %vm1002, %v1032, %v1042
      %v1044 = vshrl.u32 %v878, 16
      %v1046 = vrot.slane %v1044, 7
      %v1047 = vshll.u32 %v878, 16
      %v1049 = vor.u32 %v1046, %v1047
      %v1050 = vsel %vm1002, %v1039, %v1049
      %v1051 = vshrl.u32 %v881, 16
      %v1053 = vrot.slane %v1051, 7
      %v1054 = vshll.u32 %v881, 16
      %v1056 = vor.u32 %v1053, %v1054
      %v1057 = vsel %vm1002, %v1046, %v1056
      %v1058 = vshrl.u32 %v884, 16
      %v1060 = vrot.slane %v1058, 7
      %v1061 = vshll.u32 %v884, 16
      %v1063 = vor.u32 %v1060, %v1061
      %v1064 = vsel %vm1002, %v1053, %v1063
      %v1065 = vshrl.u32 %v887, 16
      %v1067 = vrot.slane %v1065, 7
      %v1068 = vshll.u32 %v887, 16
      %v1070 = vor.u32 %v1067, %v1068
      %v1071 = vsel %vm1002, %v1060, %v1070
      %v1072 = vshrl.u32 %v890, 16
      %v1074 = vrot.slane %v1072, 7
      %v1075 = vshll.u32 %v890, 16
      %v1077 = vor.u32 %v1074, %v1075
      %v1078 = vsel %vm1002, %v1067, %v1077
      %v1079 = vshrl.u32 %v893, 16
      %v1081 = vrot.slane %v1079, 7
      %v1082 = vshll.u32 %v893, 16
      %v1084 = vor.u32 %v1081, %v1082
      %v1085 = vsel %vm1002, %v1074, %v1084
      %v1086 = vshrl.u32 %v896, 16
      %v1088 = vrot.slane %v1086, 7
      %v1089 = vshll.u32 %v896, 16
      %v1091 = vor.u32 %v1088, %v1089
      %v1092 = vsel %vm1002, %v1081, %v1091
      %v1093 = vshrl.u32 %v899, 16
      %v1095 = vrot.slane %v1093, 7
      %v1096 = vshll.u32 %v899, 16
      %v1098 = vor.u32 %v1095, %v1096
      %v1099 = vsel %vm1002, %v1088, %v1098
      %v1100 = vshrl.u32 %v902, 16
      %v1102 = vrot.slane %v1100, 7
      %v1103 = vshll.u32 %v902, 16
      %v1105 = vor.u32 %v1102, %v1103
      %v1106 = vsel %vm1002, %v1095, %v1105
      %v1107 = vshrl.u32 %v905, 16
      %v1109 = vrot.slane %v1107, 7
      %v1110 = vshll.u32 %v905, 16
      %v1112 = vor.u32 %v1109, %v1110
      %v1113 = vsel %vm1002, %v1102, %v1112
      %vm1131 = vcmask 1040384
      %vm1132 = vmand %vm1131, %vm1002
      %v1133 = vsel %vm1132, 0, %v1008
      %v1134 = vsel %vm1132, %v1109, 0
      %1136 = vset.pattern.permute.xlu0 0
      %1137 = vperm.xlu0 %1136, %v938
      %v1138 = vpop.permute.xlu0 %1137
      %1141 = vset.pattern.permute.xlu0 0
      %1142 = vperm.xlu0 %1141, %v939
      %v1143 = vpop.permute.xlu0 %1142
      %1146 = vset.pattern.permute.xlu0 0
      %1147 = vperm.xlu0 %1146, %v940
      %v1148 = vpop.permute.xlu0 %1147
      %1151 = vset.pattern.permute.xlu0 0
      %1152 = vperm.xlu0 %1151, %v941
      %v1153 = vpop.permute.xlu0 %1152
      %1156 = vset.pattern.permute.xlu0 0
      %1157 = vperm.xlu0 %1156, %v942
      %v1158 = vpop.permute.xlu0 %1157
      %1161 = vset.pattern.permute.xlu0 0
      %1162 = vperm.xlu0 %1161, %v943
      %v1163 = vpop.permute.xlu0 %1162
      %1166 = vset.pattern.permute.xlu0 0
      %1167 = vperm.xlu0 %1166, %v944
      %v1168 = vpop.permute.xlu0 %1167
      %1171 = vset.pattern.permute.xlu0 0
      %1172 = vperm.xlu0 %1171, %v945
      %v1173 = vpop.permute.xlu0 %1172
      %1176 = vset.pattern.permute.xlu0 0
      %1177 = vperm.xlu0 %1176, %v946
      %v1178 = vpop.permute.xlu0 %1177
      %1181 = vset.pattern.permute.xlu0 0
      %1182 = vperm.xlu0 %1181, %v947
      %v1183 = vpop.permute.xlu0 %1182
      %1186 = vset.pattern.permute.xlu0 0
      %1187 = vperm.xlu0 %1186, %v948
      %v1188 = vpop.permute.xlu0 %1187
      %1191 = vset.pattern.permute.xlu0 0
      %1192 = vperm.xlu0 %1191, %v949
      %v1193 = vpop.permute.xlu0 %1192
      %1196 = vset.pattern.permute.xlu0 0
      %1197 = vperm.xlu0 %1196, %v950
      %v1198 = vpop.permute.xlu0 %1197
      %1201 = vset.pattern.permute.xlu0 0
      %1202 = vperm.xlu0 %1201, %v951
      %v1203 = vpop.permute.xlu0 %1202
      %1206 = vset.pattern.permute.xlu0 0
      %1207 = vperm.xlu0 %1206, %v952
      %v1208 = vpop.permute.xlu0 %1207
      %1211 = vset.pattern.permute.xlu0 0
      %1212 = vperm.xlu0 %1211, %v953
      %v1213 = vpop.permute.xlu0 %1212
      %v1215 = vmul.bf16 %v1138, 0
      %v1216 = vmul.bf16 %v1133, %v1143
      %v1217 = vmul.bf16 %v1015, %v1148
      %v1218 = vmul.bf16 %v1022, %v1153
      %v1219 = vmul.bf16 %v1029, %v1158
      %v1220 = vmul.bf16 %v1036, %v1163
      %v1221 = vmul.bf16 %v1043, %v1168
      %v1222 = vmul.bf16 %v1050, %v1173
      %v1223 = vmul.bf16 %v1057, %v1178
      %v1224 = vmul.bf16 %v1064, %v1183
      %v1225 = vmul.bf16 %v1071, %v1188
      %v1226 = vmul.bf16 %v1078, %v1193
      %v1227 = vmul.bf16 %v1085, %v1198
      %v1228 = vmul.bf16 %v1092, %v1203
      %v1229 = vmul.bf16 %v1099, %v1208
      %v1230 = vmul.bf16 %v1106, %v1213
      %1232 = vset.pattern.permute.xlu0 0
      %1233 = vperm.xlu0 %1232, %v986
      %v1234 = vpop.permute.xlu0 %1233
      %1236 = vset.pattern.permute.xlu0 0
      %1237 = vperm.xlu0 %1236, %v987
      %v1238 = vpop.permute.xlu0 %1237
      %1240 = vset.pattern.permute.xlu0 0
      %1241 = vperm.xlu0 %1240, %v988
      %v1242 = vpop.permute.xlu0 %1241
      %1244 = vset.pattern.permute.xlu0 0
      %1245 = vperm.xlu0 %1244, %v989
      %v1246 = vpop.permute.xlu0 %1245
      %1248 = vset.pattern.permute.xlu0 0
      %1249 = vperm.xlu0 %1248, %v990
      %v1250 = vpop.permute.xlu0 %1249
      %1252 = vset.pattern.permute.xlu0 0
      %1253 = vperm.xlu0 %1252, %v991
      %v1254 = vpop.permute.xlu0 %1253
      %1256 = vset.pattern.permute.xlu0 0
      %1257 = vperm.xlu0 %1256, %v992
      %v1258 = vpop.permute.xlu0 %1257
      %1260 = vset.pattern.permute.xlu0 0
      %1261 = vperm.xlu0 %1260, %v993
      %v1262 = vpop.permute.xlu0 %1261
      %1264 = vset.pattern.permute.xlu0 0
      %1265 = vperm.xlu0 %1264, %v994
      %v1266 = vpop.permute.xlu0 %1265
      %1268 = vset.pattern.permute.xlu0 0
      %1269 = vperm.xlu0 %1268, %v995
      %v1270 = vpop.permute.xlu0 %1269
      %1272 = vset.pattern.permute.xlu0 0
      %1273 = vperm.xlu0 %1272, %v996
      %v1274 = vpop.permute.xlu0 %1273
      %1276 = vset.pattern.permute.xlu0 0
      %1277 = vperm.xlu0 %1276, %v997
      %v1278 = vpop.permute.xlu0 %1277
      %1280 = vset.pattern.permute.xlu0 0
      %1281 = vperm.xlu0 %1280, %v998
      %v1282 = vpop.permute.xlu0 %1281
      %1284 = vset.pattern.permute.xlu0 0
      %1285 = vperm.xlu0 %1284, %v999
      %v1286 = vpop.permute.xlu0 %1285
      %1288 = vset.pattern.permute.xlu0 0
      %1289 = vperm.xlu0 %1288, %v1000
      %v1290 = vpop.permute.xlu0 %1289
      %1292 = vset.pattern.permute.xlu0 0
      %1293 = vperm.xlu0 %1292, %v1001
      %v1294 = vpop.permute.xlu0 %1293
      %v1311 = vrot.slane %v1234, 7
      %v1312 = vrot.slane %v1238, 7
      %v1313 = vsel %vm1131, %v1311, %v1312
      %v1314 = vrot.slane %v1242, 7
      %v1315 = vsel %vm1131, %v1312, %v1314
      %v1316 = vrot.slane %v1246, 7
      %v1317 = vsel %vm1131, %v1314, %v1316
      %v1318 = vrot.slane %v1250, 7
      %v1319 = vsel %vm1131, %v1316, %v1318
      %v1320 = vrot.slane %v1254, 7
      %v1321 = vsel %vm1131, %v1318, %v1320
      %v1322 = vrot.slane %v1258, 7
      %v1323 = vsel %vm1131, %v1320, %v1322
      %v1324 = vrot.slane %v1262, 7
      %v1325 = vsel %vm1131, %v1322, %v1324
      %v1326 = vrot.slane %v1266, 7
      %v1327 = vsel %vm1131, %v1324, %v1326
      %v1328 = vrot.slane %v1270, 7
      %v1329 = vsel %vm1131, %v1326, %v1328
      %v1330 = vrot.slane %v1274, 7
      %v1331 = vsel %vm1131, %v1328, %v1330
      %v1332 = vrot.slane %v1278, 7
      %v1333 = vsel %vm1131, %v1330, %v1332
      %v1334 = vrot.slane %v1282, 7
      %v1335 = vsel %vm1131, %v1332, %v1334
      %v1336 = vrot.slane %v1286, 7
      %v1337 = vsel %vm1131, %v1334, %v1336
      %v1338 = vrot.slane %v1290, 7
      %v1339 = vsel %vm1131, %v1336, %v1338
      %v1340 = vrot.slane %v1294, 7
      %v1341 = vsel %vm1131, %v1338, %v1340
      %v1359 = vmul.bf16 %v1311, 0
      %v1360 = vmul.bf16 %v1133, %v1313
      %v1361 = vmul.bf16 %v1015, %v1315
      %v1362 = vmul.bf16 %v1022, %v1317
      %v1363 = vmul.bf16 %v1029, %v1319
      %v1364 = vmul.bf16 %v1036, %v1321
      %v1365 = vmul.bf16 %v1043, %v1323
      %v1366 = vmul.bf16 %v1050, %v1325
      %v1367 = vmul.bf16 %v1057, %v1327
      %v1368 = vmul.bf16 %v1064, %v1329
      %v1369 = vmul.bf16 %v1071, %v1331
      %v1370 = vmul.bf16 %v1078, %v1333
      %v1371 = vmul.bf16 %v1085, %v1335
      %v1372 = vmul.bf16 %v1092, %v1337
      %v1373 = vmul.bf16 %v1099, %v1339
      %v1374 = vmul.bf16 %v1106, %v1341
      %v1375 = vmul.bf16 %v1113, %v1340
      %vm1376 = vsmask.f32 7424
      %v1378 = vshrl.u32 0, 16
      %v1380 = vshll.u32 0, 16
      %v1382 = vrot.slane %v1380, 1
      %v1383 = vor.u32 %v1378, %v1382
      %v1385 = vshll.u32 %v1133, 16
      %v1387 = vrot.slane %v1385, 1
      %v1388 = vsel %vm1376, %v1383, %v1387
      %v1389 = vshrl.u32 %v1133, 16
      %v1391 = vor.u32 %v1389, %v1387
      %v1393 = vshll.u32 %v1015, 16
      %v1395 = vrot.slane %v1393, 1
      %v1396 = vsel %vm1376, %v1391, %v1395
      %v1397 = vshrl.u32 %v1015, 16
      %v1399 = vor.u32 %v1397, %v1395
      %v1401 = vshll.u32 %v1022, 16
      %v1403 = vrot.slane %v1401, 1
      %v1404 = vsel %vm1376, %v1399, %v1403
      %v1405 = vshrl.u32 %v1022, 16
      %v1407 = vor.u32 %v1405, %v1403
      %v1409 = vshll.u32 %v1029, 16
      %v1411 = vrot.slane %v1409, 1
      %v1412 = vsel %vm1376, %v1407, %v1411
      %v1413 = vshrl.u32 %v1029, 16
      %v1415 = vor.u32 %v1413, %v1411
      %v1417 = vshll.u32 %v1036, 16
      %v1419 = vrot.slane %v1417, 1
      %v1420 = vsel %vm1376, %v1415, %v1419
      %v1421 = vshrl.u32 %v1036, 16
      %v1423 = vor.u32 %v1421, %v1419
      %v1425 = vshll.u32 %v1043, 16
      %v1427 = vrot.slane %v1425, 1
      %v1428 = vsel %vm1376, %v1423, %v1427
      %v1429 = vshrl.u32 %v1043, 16
      %v1431 = vor.u32 %v1429, %v1427
      %v1433 = vshll.u32 %v1050, 16
      %v1435 = vrot.slane %v1433, 1
      %v1436 = vsel %vm1376, %v1431, %v1435
      %v1437 = vshrl.u32 %v1050, 16
      %v1439 = vor.u32 %v1437, %v1435
      %v1441 = vshll.u32 %v1057, 16
      %v1443 = vrot.slane %v1441, 1
      %v1444 = vsel %vm1376, %v1439, %v1443
      %v1445 = vshrl.u32 %v1057, 16
      %v1447 = vor.u32 %v1445, %v1443
      %v1449 = vshll.u32 %v1064, 16
      %v1451 = vrot.slane %v1449, 1
      %v1452 = vsel %vm1376, %v1447, %v1451
      %v1453 = vshrl.u32 %v1064, 16
      %v1455 = vor.u32 %v1453, %v1451
      %v1457 = vshll.u32 %v1071, 16
      %v1459 = vrot.slane %v1457, 1
      %v1460 = vsel %vm1376, %v1455, %v1459
      %v1461 = vshrl.u32 %v1071, 16
      %v1463 = vor.u32 %v1461, %v1459
      %v1465 = vshll.u32 %v1078, 16
      %v1467 = vrot.slane %v1465, 1
      %v1468 = vsel %vm1376, %v1463, %v1467
      %v1469 = vshrl.u32 %v1078, 16
      %v1471 = vor.u32 %v1469, %v1467
      %v1473 = vshll.u32 %v1085, 16
      %v1475 = vrot.slane %v1473, 1
      %v1476 = vsel %vm1376, %v1471, %v1475
      %v1477 = vshrl.u32 %v1085, 16
      %v1479 = vor.u32 %v1477, %v1475
      %v1481 = vshll.u32 %v1092, 16
      %v1483 = vrot.slane %v1481, 1
      %v1484 = vsel %vm1376, %v1479, %v1483
      %v1485 = vshrl.u32 %v1092, 16
      %v1487 = vor.u32 %v1485, %v1483
      %v1489 = vshll.u32 %v1099, 16
      %v1491 = vrot.slane %v1489, 1
      %v1492 = vsel %vm1376, %v1487, %v1491
      %v1493 = vshrl.u32 %v1099, 16
      %v1495 = vor.u32 %v1493, %v1491
      %v1497 = vshll.u32 %v1106, 16
      %v1499 = vrot.slane %v1497, 1
      %v1500 = vsel %vm1376, %v1495, %v1499
      %v1501 = vshrl.u32 %v1106, 16
      %v1503 = vor.u32 %v1501, %v1499
      %v1505 = vshll.u32 %v1113, 16
      %v1507 = vrot.slane %v1505, 1
      %v1508 = vsel %vm1376, %v1503, %v1507
      %1509 = vrot.lane.b32.xlu0 %v1388, 4
      %v1510 = vpop.permute.xlu0 %1509
      %1511 = vrot.lane.b32.xlu0 %v1396, 4
      %v1512 = vpop.permute.xlu0 %1511
      %1513 = vrot.lane.b32.xlu0 %v1404, 4
      %v1514 = vpop.permute.xlu0 %1513
      %1515 = vrot.lane.b32.xlu0 %v1412, 4
      %v1516 = vpop.permute.xlu0 %1515
      %1517 = vrot.lane.b32.xlu0 %v1420, 4
      %v1518 = vpop.permute.xlu0 %1517
      %1519 = vrot.lane.b32.xlu0 %v1428, 4
      %v1520 = vpop.permute.xlu0 %1519
      %1521 = vrot.lane.b32.xlu0 %v1436, 4
      %v1522 = vpop.permute.xlu0 %1521
      %1523 = vrot.lane.b32.xlu0 %v1444, 4
      %v1524 = vpop.permute.xlu0 %1523
      %1525 = vrot.lane.b32.xlu0 %v1452, 4
      %v1526 = vpop.permute.xlu0 %1525
      %1527 = vrot.lane.b32.xlu0 %v1460, 4
      %v1528 = vpop.permute.xlu0 %1527
      %1529 = vrot.lane.b32.xlu0 %v1468, 4
      %v1530 = vpop.permute.xlu0 %1529
      %1531 = vrot.lane.b32.xlu0 %v1476, 4
      %v1532 = vpop.permute.xlu0 %1531
      %1533 = vrot.lane.b32.xlu0 %v1484, 4
      %v1534 = vpop.permute.xlu0 %1533
      %1535 = vrot.lane.b32.xlu0 %v1492, 4
      %v1536 = vpop.permute.xlu0 %1535
      %1537 = vrot.lane.b32.xlu0 %v1500, 4
      %v1538 = vpop.permute.xlu0 %1537
      %1539 = vrot.lane.b32.xlu0 %v1508, 4
      %v1540 = vpop.permute.xlu0 %1539
      %vm1558 = vcmask 1046528
      %v1559 = vrot.slane %v1359, 1
      %v1560 = vrot.slane %v1360, 1
      %v1561 = vsel %vm1558, %v1559, %v1560
      %v1562 = vrot.slane %v1361, 1
      %v1563 = vsel %vm1558, %v1560, %v1562
      %v1564 = vrot.slane %v1362, 1
      %v1565 = vsel %vm1558, %v1562, %v1564
      %v1566 = vrot.slane %v1363, 1
      %v1567 = vsel %vm1558, %v1564, %v1566
      %v1568 = vrot.slane %v1364, 1
      %v1569 = vsel %vm1558, %v1566, %v1568
      %v1570 = vrot.slane %v1365, 1
      %v1571 = vsel %vm1558, %v1568, %v1570
      %v1572 = vrot.slane %v1366, 1
      %v1573 = vsel %vm1558, %v1570, %v1572
      %v1574 = vrot.slane %v1367, 1
      %v1575 = vsel %vm1558, %v1572, %v1574
      %v1576 = vrot.slane %v1368, 1
      %v1577 = vsel %vm1558, %v1574, %v1576
      %v1578 = vrot.slane %v1369, 1
      %v1579 = vsel %vm1558, %v1576, %v1578
      %v1580 = vrot.slane %v1370, 1
      %v1581 = vsel %vm1558, %v1578, %v1580
      %v1582 = vrot.slane %v1371, 1
      %v1583 = vsel %vm1558, %v1580, %v1582
      %v1584 = vrot.slane %v1372, 1
      %v1585 = vsel %vm1558, %v1582, %v1584
      %v1586 = vrot.slane %v1373, 1
      %v1587 = vsel %vm1558, %v1584, %v1586
      %v1588 = vrot.slane %v1374, 1
      %v1589 = vsel %vm1558, %v1586, %v1588
      %v1590 = vrot.slane %v1375, 1
      %v1591 = vsel %vm1558, %v1588, %v1590
      %1592 = vrot.lane.b32.xlu0 %v1561, 8
      %v1593 = vpop.permute.xlu0 %1592
      %1594 = vrot.lane.b32.xlu0 %v1563, 8
      %v1595 = vpop.permute.xlu0 %1594
      %1596 = vrot.lane.b32.xlu0 %v1565, 8
      %v1597 = vpop.permute.xlu0 %1596
      %1598 = vrot.lane.b32.xlu0 %v1567, 8
      %v1599 = vpop.permute.xlu0 %1598
      %1600 = vrot.lane.b32.xlu0 %v1569, 8
      %v1601 = vpop.permute.xlu0 %1600
      %1602 = vrot.lane.b32.xlu0 %v1571, 8
      %v1603 = vpop.permute.xlu0 %1602
      %1604 = vrot.lane.b32.xlu0 %v1573, 8
      %v1605 = vpop.permute.xlu0 %1604
      %1606 = vrot.lane.b32.xlu0 %v1575, 8
      %v1607 = vpop.permute.xlu0 %1606
      %1608 = vrot.lane.b32.xlu0 %v1577, 8
      %v1609 = vpop.permute.xlu0 %1608
      %1610 = vrot.lane.b32.xlu0 %v1579, 8
      %v1611 = vpop.permute.xlu0 %1610
      %1612 = vrot.lane.b32.xlu0 %v1581, 8
      %v1613 = vpop.permute.xlu0 %1612
      %1614 = vrot.lane.b32.xlu0 %v1583, 8
      %v1615 = vpop.permute.xlu0 %1614
      %1616 = vrot.lane.b32.xlu0 %v1585, 8
      %v1617 = vpop.permute.xlu0 %1616
      %1618 = vrot.lane.b32.xlu0 %v1587, 8
      %v1619 = vpop.permute.xlu0 %1618
      %1620 = vrot.lane.b32.xlu0 %v1589, 8
      %v1621 = vpop.permute.xlu0 %1620
      %1622 = vrot.lane.b32.xlu0 %v1591, 8
      %v1623 = vpop.permute.xlu0 %1622
      %vm1624 = vcmask 31744
      %v1627 = vsel %vm1624, %v1215, %v1510
      %v1630 = vsel %vm1624, %v1216, %v1512
      %v1633 = vsel %vm1624, %v1217, %v1514
      %v1636 = vsel %vm1624, %v1218, %v1516
      %v1639 = vsel %vm1624, %v1219, %v1518
      %v1642 = vsel %vm1624, %v1220, %v1520
      %v1645 = vsel %vm1624, %v1221, %v1522
      %v1648 = vsel %vm1624, %v1222, %v1524
      %v1651 = vsel %vm1624, %v1223, %v1526
      %v1654 = vsel %vm1624, %v1224, %v1528
      %v1657 = vsel %vm1624, %v1225, %v1530
      %v1660 = vsel %vm1624, %v1226, %v1532
      %v1663 = vsel %vm1624, %v1227, %v1534
      %v1666 = vsel %vm1624, %v1228, %v1536
      %v1669 = vsel %vm1624, %v1229, %v1538
      %v1672 = vsel %vm1624, %v1230, %v1540
      %vm1673 = vcmask 64512
      %v1675 = vsel %vm1673, %v1627, %v1593
      %v1677 = vsel %vm1673, %v1630, %v1595
      %v1679 = vsel %vm1673, %v1633, %v1597
      %v1681 = vsel %vm1673, %v1636, %v1599
      %v1683 = vsel %vm1673, %v1639, %v1601
      %v1685 = vsel %vm1673, %v1642, %v1603
      %v1687 = vsel %vm1673, %v1645, %v1605
      %v1689 = vsel %vm1673, %v1648, %v1607
      %v1691 = vsel %vm1673, %v1651, %v1609
      %v1693 = vsel %vm1673, %v1654, %v1611
      %v1695 = vsel %vm1673, %v1657, %v1613
      %v1697 = vsel %vm1673, %v1660, %v1615
      %v1699 = vsel %vm1673, %v1663, %v1617
      %v1701 = vsel %vm1673, %v1666, %v1619
      %v1703 = vsel %vm1673, %v1669, %v1621
      %v1705 = vsel %vm1673, %v1672, %v1623
      %v1706 = vld [vmem:[%s273] sm:$0xf]
      %v1707 = vld [vmem:[%s273 + $0x4] sm:$0x3]
      %v1708 = vmul.bf16 %v1133, %v1138
      %v1709 = vmul.bf16 %v1015, %v1143
      %v1710 = vmul.bf16 %v1022, %v1148
      %v1711 = vmul.bf16 %v1029, %v1153
      %v1712 = vmul.bf16 %v1036, %v1158
      %v1713 = vmul.bf16 %v1043, %v1163
      %v1714 = vmul.bf16 %v1050, %v1168
      %v1715 = vmul.bf16 %v1057, %v1173
      %v1716 = vmul.bf16 %v1064, %v1178
      %v1717 = vmul.bf16 %v1071, %v1183
      %v1718 = vmul.bf16 %v1078, %v1188
      %v1719 = vmul.bf16 %v1085, %v1193
      %v1720 = vmul.bf16 %v1092, %v1198
      %v1721 = vmul.bf16 %v1099, %v1203
      %v1722 = vmul.bf16 %v1106, %v1208
      %v1723 = vmul.bf16 %v1113, %v1213
      %v1724 = vmul.bf16 %v1133, %v1311
      %v1725 = vmul.bf16 %v1015, %v1313
      %v1726 = vmul.bf16 %v1022, %v1315
      %v1727 = vmul.bf16 %v1029, %v1317
      %v1728 = vmul.bf16 %v1036, %v1319
      %v1729 = vmul.bf16 %v1043, %v1321
      %v1730 = vmul.bf16 %v1050, %v1323
      %v1731 = vmul.bf16 %v1057, %v1325
      %v1732 = vmul.bf16 %v1064, %v1327
      %v1733 = vmul.bf16 %v1071, %v1329
      %v1734 = vmul.bf16 %v1078, %v1331
      %v1735 = vmul.bf16 %v1085, %v1333
      %v1736 = vmul.bf16 %v1092, %v1335
      %v1737 = vmul.bf16 %v1099, %v1337
      %v1738 = vmul.bf16 %v1106, %v1339
      %v1739 = vmul.bf16 %v1113, %v1341
      %v1740 = vmul.bf16 %v1134, %v1340
      %v1741 = vshrl.u32 %v1113, 16
      %v1743 = vor.u32 %v1741, %v1507
      %v1745 = vshll.u32 %v1134, 16
      %v1747 = vrot.slane %v1745, 1
      %v1748 = vsel %vm1376, %v1743, %v1747
      %1749 = vrot.lane.b32.xlu0 %v1748, 4
      %v1750 = vpop.permute.xlu0 %1749
      %v1768 = vrot.slane %v1724, 1
      %v1769 = vrot.slane %v1725, 1
      %v1770 = vsel %vm1558, %v1768, %v1769
      %v1771 = vrot.slane %v1726, 1
      %v1772 = vsel %vm1558, %v1769, %v1771
      %v1773 = vrot.slane %v1727, 1
      %v1774 = vsel %vm1558, %v1771, %v1773
      %v1775 = vrot.slane %v1728, 1
      %v1776 = vsel %vm1558, %v1773, %v1775
      %v1777 = vrot.slane %v1729, 1
      %v1778 = vsel %vm1558, %v1775, %v1777
      %v1779 = vrot.slane %v1730, 1
      %v1780 = vsel %vm1558, %v1777, %v1779
      %v1781 = vrot.slane %v1731, 1
      %v1782 = vsel %vm1558, %v1779, %v1781
      %v1783 = vrot.slane %v1732, 1
      %v1784 = vsel %vm1558, %v1781, %v1783
      %v1785 = vrot.slane %v1733, 1
      %v1786 = vsel %vm1558, %v1783, %v1785
      %v1787 = vrot.slane %v1734, 1
      %v1788 = vsel %vm1558, %v1785, %v1787
      %v1789 = vrot.slane %v1735, 1
      %v1790 = vsel %vm1558, %v1787, %v1789
      %v1791 = vrot.slane %v1736, 1
      %v1792 = vsel %vm1558, %v1789, %v1791
      %v1793 = vrot.slane %v1737, 1
      %v1794 = vsel %vm1558, %v1791, %v1793
      %v1795 = vrot.slane %v1738, 1
      %v1796 = vsel %vm1558, %v1793, %v1795
      %v1797 = vrot.slane %v1739, 1
      %v1798 = vsel %vm1558, %v1795, %v1797
      %v1799 = vrot.slane %v1740, 1
      %v1800 = vsel %vm1558, %v1797, %v1799
      %1801 = vrot.lane.b32.xlu0 %v1770, 8
      %v1802 = vpop.permute.xlu0 %1801
      %1803 = vrot.lane.b32.xlu0 %v1772, 8
      %v1804 = vpop.permute.xlu0 %1803
      %1805 = vrot.lane.b32.xlu0 %v1774, 8
      %v1806 = vpop.permute.xlu0 %1805
      %1807 = vrot.lane.b32.xlu0 %v1776, 8
      %v1808 = vpop.permute.xlu0 %1807
      %1809 = vrot.lane.b32.xlu0 %v1778, 8
      %v1810 = vpop.permute.xlu0 %1809
      %1811 = vrot.lane.b32.xlu0 %v1780, 8
      %v1812 = vpop.permute.xlu0 %1811
      %1813 = vrot.lane.b32.xlu0 %v1782, 8
      %v1814 = vpop.permute.xlu0 %1813
      %1815 = vrot.lane.b32.xlu0 %v1784, 8
      %v1816 = vpop.permute.xlu0 %1815
      %1817 = vrot.lane.b32.xlu0 %v1786, 8
      %v1818 = vpop.permute.xlu0 %1817
      %1819 = vrot.lane.b32.xlu0 %v1788, 8
      %v1820 = vpop.permute.xlu0 %1819
      %1821 = vrot.lane.b32.xlu0 %v1790, 8
      %v1822 = vpop.permute.xlu0 %1821
      %1823 = vrot.lane.b32.xlu0 %v1792, 8
      %v1824 = vpop.permute.xlu0 %1823
      %1825 = vrot.lane.b32.xlu0 %v1794, 8
      %v1826 = vpop.permute.xlu0 %1825
      %1827 = vrot.lane.b32.xlu0 %v1796, 8
      %v1828 = vpop.permute.xlu0 %1827
      %1829 = vrot.lane.b32.xlu0 %v1798, 8
      %v1830 = vpop.permute.xlu0 %1829
      %1831 = vrot.lane.b32.xlu0 %v1800, 8
      %v1832 = vpop.permute.xlu0 %1831
      %v1834 = vsel %vm1624, %v1708, %v1512
      %v1836 = vsel %vm1624, %v1709, %v1514
      %v1838 = vsel %vm1624, %v1710, %v1516
      %v1840 = vsel %vm1624, %v1711, %v1518
      %v1842 = vsel %vm1624, %v1712, %v1520
      %v1844 = vsel %vm1624, %v1713, %v1522
      %v1846 = vsel %vm1624, %v1714, %v1524
      %v1848 = vsel %vm1624, %v1715, %v1526
      %v1850 = vsel %vm1624, %v1716, %v1528
      %v1852 = vsel %vm1624, %v1717, %v1530
      %v1854 = vsel %vm1624, %v1718, %v1532
      %v1856 = vsel %vm1624, %v1719, %v1534
      %v1858 = vsel %vm1624, %v1720, %v1536
      %v1860 = vsel %vm1624, %v1721, %v1538
      %v1862 = vsel %vm1624, %v1722, %v1540
      %v1865 = vsel %vm1624, %v1723, %v1750
      %v1867 = vsel %vm1673, %v1834, %v1802
      %v1869 = vsel %vm1673, %v1836, %v1804
      %v1871 = vsel %vm1673, %v1838, %v1806
      %v1873 = vsel %vm1673, %v1840, %v1808
      %v1875 = vsel %vm1673, %v1842, %v1810
      %v1877 = vsel %vm1673, %v1844, %v1812
      %v1879 = vsel %vm1673, %v1846, %v1814
      %v1881 = vsel %vm1673, %v1848, %v1816
      %v1883 = vsel %vm1673, %v1850, %v1818
      %v1885 = vsel %vm1673, %v1852, %v1820
      %v1887 = vsel %vm1673, %v1854, %v1822
      %v1889 = vsel %vm1673, %v1856, %v1824
      %v1891 = vsel %vm1673, %v1858, %v1826
      %v1893 = vsel %vm1673, %v1860, %v1828
      %v1895 = vsel %vm1673, %v1862, %v1830
      %v1897 = vsel %vm1673, %v1865, %v1832
      %s1898 = scalar_lea.vmem %s273, 8
      %v1899 = vld [vmem:[%s1898] sm:$0xf]
      %v1900 = vld [vmem:[%s1898 + $0x4] sm:$0x3]
      %v1903 = vunpack.c.l.b16 %v1899
      %v1904 = vunpack.c.l.b16 %v1900
      %v1905 = vpack.c.b16 %v1904, %v1903
      %vm1906 = vcmask 97280
      %v1907 = vsel %vm1906, %v1867, 0
      %v1909 = vsel %vm1906, %v1869, 0
      %v1911 = vsel %vm1906, %v1871, 0
      %v1913 = vsel %vm1906, %v1873, 0
      %v1915 = vsel %vm1906, %v1875, 0
      %v1917 = vsel %vm1906, %v1877, 0
      %v1919 = vsel %vm1906, %v1879, 0
      %v1921 = vsel %vm1906, %v1881, 0
      %v1923 = vsel %vm1906, %v1883, 0
      %v1925 = vsel %vm1906, %v1885, 0
      %v1927 = vsel %vm1906, %v1887, 0
      %v1929 = vsel %vm1906, %v1889, 0
      %v1931 = vsel %vm1906, %v1891, 0
      %v1933 = vsel %vm1906, %v1893, 0
      %v1935 = vsel %vm1906, %v1895, 0
      %v1937 = vsel %vm1906, %v1897, 0
      %vm1939 = vcmask 1045504
      %v1941 = vsel %vm1939, %v1905, 0
      %1943 = vmatprep.subr.bf16.mxu0 0
      %1944 = vmatpush1.bf16.msra.mxu0 %v1941
      %1945 = vmatprep.subr.bf16.mxu0 0
      %1946 = vmatpush1.bf16.msra.mxu0 0
      %1947 = vmatprep.subr.bf16.mxu0 0
      %1948 = vmatpush1.bf16.msra.mxu0 0
      %1949 = vmatprep.subr.bf16.mxu0 0
      %1950 = vmatpush1.bf16.msra.mxu0 0
      %1951 = vmatprep.subr.bf16.mxu0 0
      %1952 = vmatpush1.bf16.msra.mxu0 0
      %1953 = vmatprep.subr.bf16.mxu0 0
      %1954 = vmatpush1.bf16.msra.mxu0 0
      %1955 = vmatprep.subr.bf16.mxu0 0
      %1956 = vmatpush1.bf16.msra.mxu0 0
      %1957 = vmatprep.subr.bf16.mxu0 0
      %1958 = vmatpush1.bf16.msra.mxu0 0
      %1959 = vmatprep.subr.bf16.mxu0 0
      %1960 = vmatpush1.bf16.msra.mxu0 0
      %1961 = vmatprep.subr.bf16.mxu0 0
      %1962 = vmatpush1.bf16.msra.mxu0 0
      %1963 = vmatprep.subr.bf16.mxu0 0
      %1964 = vmatpush1.bf16.msra.mxu0 0
      %1965 = vmatprep.subr.bf16.mxu0 0
      %1966 = vmatpush1.bf16.msra.mxu0 0
      %1967 = vmatprep.subr.bf16.mxu0 0
      %1968 = vmatpush1.bf16.msra.mxu0 0
      %1969 = vmatprep.subr.bf16.mxu0 0
      %1970 = vmatpush1.bf16.msra.mxu0 0
      %1971 = vmatprep.subr.bf16.mxu0 0
      %1972 = vmatpush1.bf16.msra.mxu0 0
      %1973 = vmatprep.subr.bf16.mxu0 0
      %1974 = vmatpush1.bf16.msra.mxu0 0
      %1975 = vmatprep.mubr.bf16.mxu0 0
      %1976 = vmatmul.mubr.bf16.gmra.mrb[0].mxu0 %v1907
      %v1977 = vpop.f32.mrb[0].mxu0
      %v1978 = vadd.f32 0.0, %v1977
      %v1979 = vpop.f32.mrb[0].mxu0
      %v1980 = vpop.f32.mrb[0].mxu0
      %v1981 = vadd.f32 0.0, %v1980
      %v1982 = vpop.f32.mrb[0].mxu0
      %1983 = vmatprep.mubr.bf16.mxu0 0
      %1984 = vmatmul.mubr.bf16.gmra.mrb[0].mxu0 %v1909
      %v1985 = vpop.f32.mrb[0].mxu0
      %v1986 = vadd.f32 0.0, %v1985
      %v1987 = vpop.f32.mrb[0].mxu0
      %v1988 = vpop.f32.mrb[0].mxu0
      %v1989 = vadd.f32 0.0, %v1988
      %v1990 = vpop.f32.mrb[0].mxu0
      %1991 = vmatprep.mubr.bf16.mxu0 0
      %1992 = vmatmul.mubr.bf16.gmra.mrb[0].mxu0 %v1911
      %v1993 = vpop.f32.mrb[0].mxu0
      %v1994 = vadd.f32 0.0, %v1993
      %v1995 = vpop.f32.mrb[0].mxu0
      %v1996 = vpop.f32.mrb[0].mxu0
      %v1997 = vadd.f32 0.0, %v1996
      %v1998 = vpop.f32.mrb[0].mxu0
      %1999 = vmatprep.mubr.bf16.mxu0 0
      %2000 = vmatmul.mubr.bf16.gmra.mrb[0].mxu0 %v1913
      %v2001 = vpop.f32.mrb[0].mxu0
      %v2002 = vadd.f32 0.0, %v2001
      %v2003 = vpop.f32.mrb[0].mxu0
      %v2004 = vpop.f32.mrb[0].mxu0
      %v2005 = vadd.f32 0.0, %v2004
      %v2006 = vpop.f32.mrb[0].mxu0
      %2007 = vmatprep.mubr.bf16.mxu0 0
      %2008 = vmatmul.mubr.bf16.gmra.mrb[0].mxu0 %v1915
      %v2009 = vpop.f32.mrb[0].mxu0
      %v2010 = vadd.f32 0.0, %v2009
      %v2011 = vpop.f32.mrb[0].mxu0
      %v2012 = vpop.f32.mrb[0].mxu0
      %v2013 = vadd.f32 0.0, %v2012
      %v2014 = vpop.f32.mrb[0].mxu0
      %2015 = vmatprep.mubr.bf16.mxu0 0
      %2016 = vmatmul.mubr.bf16.gmra.mrb[0].mxu0 %v1917
      %v2017 = vpop.f32.mrb[0].mxu0
      %v2018 = vadd.f32 0.0, %v2017
      %v2019 = vpop.f32.mrb[0].mxu0
      %v2020 = vpop.f32.mrb[0].mxu0
      %v2021 = vadd.f32 0.0, %v2020
      %v2022 = vpop.f32.mrb[0].mxu0
      %2023 = vmatprep.mubr.bf16.mxu0 0
      %2024 = vmatmul.mubr.bf16.gmra.mrb[0].mxu0 %v1919
      %v2025 = vpop.f32.mrb[0].mxu0
      %v2026 = vadd.f32 0.0, %v2025
      %v2027 = vpop.f32.mrb[0].mxu0
      %v2028 = vpop.f32.mrb[0].mxu0
      %v2029 = vadd.f32 0.0, %v2028
      %v2030 = vpop.f32.mrb[0].mxu0
      %2031 = vmatprep.mubr.bf16.mxu0 0
      %2032 = vmatmul.mubr.bf16.gmra.mrb[0].mxu0 %v1921
      %v2033 = vpop.f32.mrb[0].mxu0
      %v2034 = vadd.f32 0.0, %v2033
      %v2035 = vpop.f32.mrb[0].mxu0
      %v2036 = vpop.f32.mrb[0].mxu0
      %v2037 = vadd.f32 0.0, %v2036
      %v2038 = vpop.f32.mrb[0].mxu0
      %2039 = vmatprep.mubr.bf16.mxu0 0
      %2040 = vmatmul.mubr.bf16.gmra.mrb[0].mxu0 %v1923
      %v2041 = vpop.f32.mrb[0].mxu0
      %v2042 = vadd.f32 0.0, %v2041
      %v2043 = vpop.f32.mrb[0].mxu0
      %v2044 = vpop.f32.mrb[0].mxu0
      %v2045 = vadd.f32 0.0, %v2044
      %v2046 = vpop.f32.mrb[0].mxu0
      %2047 = vmatprep.mubr.bf16.mxu0 0
      %2048 = vmatmul.mubr.bf16.gmra.mrb[0].mxu0 %v1925
      %v2049 = vpop.f32.mrb[0].mxu0
      %v2050 = vadd.f32 0.0, %v2049
      %v2051 = vpop.f32.mrb[0].mxu0
      %v2052 = vpop.f32.mrb[0].mxu0
      %v2053 = vadd.f32 0.0, %v2052
      %v2054 = vpop.f32.mrb[0].mxu0
      %2055 = vmatprep.mubr.bf16.mxu0 0
      %2056 = vmatmul.mubr.bf16.gmra.mrb[0].mxu0 %v1927
      %v2057 = vpop.f32.mrb[0].mxu0
      %v2058 = vadd.f32 0.0, %v2057
      %v2059 = vpop.f32.mrb[0].mxu0
      %v2060 = vpop.f32.mrb[0].mxu0
      %v2061 = vadd.f32 0.0, %v2060
      %v2062 = vpop.f32.mrb[0].mxu0
      %2063 = vmatprep.mubr.bf16.mxu0 0
      %2064 = vmatmul.mubr.bf16.gmra.mrb[0].mxu0 %v1929
      %v2065 = vpop.f32.mrb[0].mxu0
      %v2066 = vadd.f32 0.0, %v2065
      %v2067 = vpop.f32.mrb[0].mxu0
      %v2068 = vpop.f32.mrb[0].mxu0
      %v2069 = vadd.f32 0.0, %v2068
      %v2070 = vpop.f32.mrb[0].mxu0
      %2071 = vmatprep.mubr.bf16.mxu0 0
      %2072 = vmatmul.mubr.bf16.gmra.mrb[0].mxu0 %v1931
      %v2073 = vpop.f32.mrb[0].mxu0
      %v2074 = vadd.f32 0.0, %v2073
      %v2075 = vpop.f32.mrb[0].mxu0
      %v2076 = vpop.f32.mrb[0].mxu0
      %v2077 = vadd.f32 0.0, %v2076
      %v2078 = vpop.f32.mrb[0].mxu0
      %2079 = vmatprep.mubr.bf16.mxu0 0
      %2080 = vmatmul.mubr.bf16.gmra.mrb[0].mxu0 %v1933
      %v2081 = vpop.f32.mrb[0].mxu0
      %v2082 = vadd.f32 0.0, %v2081
      %v2083 = vpop.f32.mrb[0].mxu0
      %v2084 = vpop.f32.mrb[0].mxu0
      %v2085 = vadd.f32 0.0, %v2084
      %v2086 = vpop.f32.mrb[0].mxu0
      %2087 = vmatprep.mubr.bf16.mxu0 0
      %2088 = vmatmul.mubr.bf16.gmra.mrb[0].mxu0 %v1935
      %v2089 = vpop.f32.mrb[0].mxu0
      %v2090 = vadd.f32 0.0, %v2089
      %v2091 = vpop.f32.mrb[0].mxu0
      %v2092 = vpop.f32.mrb[0].mxu0
      %v2093 = vadd.f32 0.0, %v2092
      %v2094 = vpop.f32.mrb[0].mxu0
      %2095 = vmatprep.mubr.bf16.mxu0 0
      %2096 = vmatmul.mubr.bf16.gmra.mrb[0].mxu0 %v1937
      %v2097 = vpop.f32.mrb[0].mxu0
      %v2098 = vadd.f32 0.0, %v2097
      %v2099 = vpop.f32.mrb[0].mxu0
      %v2100 = vpop.f32.mrb[0].mxu0
      %v2101 = vadd.f32 0.0, %v2100
      %v2102 = vpop.f32.mrb[0].mxu0
      %2103 = vdwg.mxu0
      %v2106 = vunpack.c.l.b16 %v1706
      %v2107 = vunpack.c.l.b16 %v1707
      %v2108 = vpack.c.b16 %v2107, %v2106
      %v2109 = vsel %vm1906, %v1675, 0
      %v2111 = vsel %vm1906, %v1677, 0
      %v2113 = vsel %vm1906, %v1679, 0
      %v2115 = vsel %vm1906, %v1681, 0
      %v2117 = vsel %vm1906, %v1683, 0
      %v2119 = vsel %vm1906, %v1685, 0
      %v2121 = vsel %vm1906, %v1687, 0
      %v2123 = vsel %vm1906, %v1689, 0
      %v2125 = vsel %vm1906, %v1691, 0
      %v2127 = vsel %vm1906, %v1693, 0
      %v2129 = vsel %vm1906, %v1695, 0
      %v2131 = vsel %vm1906, %v1697, 0
      %v2133 = vsel %vm1906, %v1699, 0
      %v2135 = vsel %vm1906, %v1701, 0
      %v2137 = vsel %vm1906, %v1703, 0
      %v2139 = vsel %vm1906, %v1705, 0
      %v2142 = vsel %vm1939, %v2108, 0
      %2144 = vmatprep.subr.bf16.mxu0 0
      %2145 = vmatpush1.bf16.msra.mxu0 %v2142
      %2146 = vmatprep.subr.bf16.mxu0 0
      %2147 = vmatpush1.bf16.msra.mxu0 0
      %2148 = vmatprep.subr.bf16.mxu0 0
      %2149 = vmatpush1.bf16.msra.mxu0 0
      %2150 = vmatprep.subr.bf16.mxu0 0
      %2151 = vmatpush1.bf16.msra.mxu0 0
      %2152 = vmatprep.subr.bf16.mxu0 0
      %2153 = vmatpush1.bf16.msra.mxu0 0
      %2154 = vmatprep.subr.bf16.mxu0 0
      %2155 = vmatpush1.bf16.msra.mxu0 0
      %2156 = vmatprep.subr.bf16.mxu0 0
      %2157 = vmatpush1.bf16.msra.mxu0 0
      %2158 = vmatprep.subr.bf16.mxu0 0
      %2159 = vmatpush1.bf16.msra.mxu0 0
      %2160 = vmatprep.subr.bf16.mxu0 0
      %2161 = vmatpush1.bf16.msra.mxu0 0
      %2162 = vmatprep.subr.bf16.mxu0 0
      %2163 = vmatpush1.bf16.msra.mxu0 0
      %2164 = vmatprep.subr.bf16.mxu0 0
      %2165 = vmatpush1.bf16.msra.mxu0 0
      %2166 = vmatprep.subr.bf16.mxu0 0
      %2167 = vmatpush1.bf16.msra.mxu0 0
      %2168 = vmatprep.subr.bf16.mxu0 0
      %2169 = vmatpush1.bf16.msra.mxu0 0
      %2170 = vmatprep.subr.bf16.mxu0 0
      %2171 = vmatpush1.bf16.msra.mxu0 0
      %2172 = vmatprep.subr.bf16.mxu0 0
      %2173 = vmatpush1.bf16.msra.mxu0 0
      %2174 = vmatprep.subr.bf16.mxu0 0
      %2175 = vmatpush1.bf16.msra.mxu0 0
      %2176 = vmatprep.mubr.bf16.mxu0 0
      %2177 = vmatmul.mubr.bf16.gmra.mrb[0].mxu0 %v2109
      %v2178 = vpop.f32.mrb[0].mxu0
      %v2179 = vadd.f32 %v1978, %v2178
      %v2180 = vpop.f32.mrb[0].mxu0
      %v2181 = vpop.f32.mrb[0].mxu0
      %v2182 = vadd.f32 %v1981, %v2181
      %v2183 = vpop.f32.mrb[0].mxu0
      %2184 = vmatprep.mubr.bf16.mxu0 0
      %2185 = vmatmul.mubr.bf16.gmra.mrb[0].mxu0 %v2111
      %v2186 = vpop.f32.mrb[0].mxu0
      %v2187 = vadd.f32 %v1986, %v2186
      %v2188 = vpop.f32.mrb[0].mxu0
      %v2189 = vpop.f32.mrb[0].mxu0
      %v2190 = vadd.f32 %v1989, %v2189
      %v2191 = vpop.f32.mrb[0].mxu0
      %2192 = vmatprep.mubr.bf16.mxu0 0
      %2193 = vmatmul.mubr.bf16.gmra.mrb[0].mxu0 %v2113
      %v2194 = vpop.f32.mrb[0].mxu0
      %v2195 = vadd.f32 %v1994, %v2194
      %v2196 = vpop.f32.mrb[0].mxu0
      %v2197 = vpop.f32.mrb[0].mxu0
      %v2198 = vadd.f32 %v1997, %v2197
      %v2199 = vpop.f32.mrb[0].mxu0
      %2200 = vmatprep.mubr.bf16.mxu0 0
      %2201 = vmatmul.mubr.bf16.gmra.mrb[0].mxu0 %v2115
      %v2202 = vpop.f32.mrb[0].mxu0
      %v2203 = vadd.f32 %v2002, %v2202
      %v2204 = vpop.f32.mrb[0].mxu0
      %v2205 = vpop.f32.mrb[0].mxu0
      %v2206 = vadd.f32 %v2005, %v2205
      %v2207 = vpop.f32.mrb[0].mxu0
      %2208 = vmatprep.mubr.bf16.mxu0 0
      %2209 = vmatmul.mubr.bf16.gmra.mrb[0].mxu0 %v2117
      %v2210 = vpop.f32.mrb[0].mxu0
      %v2211 = vadd.f32 %v2010, %v2210
      %v2212 = vpop.f32.mrb[0].mxu0
      %v2213 = vpop.f32.mrb[0].mxu0
      %v2214 = vadd.f32 %v2013, %v2213
      %v2215 = vpop.f32.mrb[0].mxu0
      %2216 = vmatprep.mubr.bf16.mxu0 0
      %2217 = vmatmul.mubr.bf16.gmra.mrb[0].mxu0 %v2119
      %v2218 = vpop.f32.mrb[0].mxu0
      %v2219 = vadd.f32 %v2018, %v2218
      %v2220 = vpop.f32.mrb[0].mxu0
      %v2221 = vpop.f32.mrb[0].mxu0
      %v2222 = vadd.f32 %v2021, %v2221
      %v2223 = vpop.f32.mrb[0].mxu0
      %2224 = vmatprep.mubr.bf16.mxu0 0
      %2225 = vmatmul.mubr.bf16.gmra.mrb[0].mxu0 %v2121
      %v2226 = vpop.f32.mrb[0].mxu0
      %v2227 = vadd.f32 %v2026, %v2226
      %v2228 = vpop.f32.mrb[0].mxu0
      %v2229 = vpop.f32.mrb[0].mxu0
      %v2230 = vadd.f32 %v2029, %v2229
      %v2231 = vpop.f32.mrb[0].mxu0
      %2232 = vmatprep.mubr.bf16.mxu0 0
      %2233 = vmatmul.mubr.bf16.gmra.mrb[0].mxu0 %v2123
      %v2234 = vpop.f32.mrb[0].mxu0
      %v2235 = vadd.f32 %v2034, %v2234
      %v2236 = vpop.f32.mrb[0].mxu0
      %v2237 = vpop.f32.mrb[0].mxu0
      %v2238 = vadd.f32 %v2037, %v2237
      %v2239 = vpop.f32.mrb[0].mxu0
      %2240 = vmatprep.mubr.bf16.mxu0 0
      %2241 = vmatmul.mubr.bf16.gmra.mrb[0].mxu0 %v2125
      %v2242 = vpop.f32.mrb[0].mxu0
      %v2243 = vadd.f32 %v2042, %v2242
      %v2244 = vpop.f32.mrb[0].mxu0
      %v2245 = vpop.f32.mrb[0].mxu0
      %v2246 = vadd.f32 %v2045, %v2245
      %v2247 = vpop.f32.mrb[0].mxu0
      %2248 = vmatprep.mubr.bf16.mxu0 0
      %2249 = vmatmul.mubr.bf16.gmra.mrb[0].mxu0 %v2127
      %v2250 = vpop.f32.mrb[0].mxu0
      %v2251 = vadd.f32 %v2050, %v2250
      %v2252 = vpop.f32.mrb[0].mxu0
      %v2253 = vpop.f32.mrb[0].mxu0
      %v2254 = vadd.f32 %v2053, %v2253
      %v2255 = vpop.f32.mrb[0].mxu0
      %2256 = vmatprep.mubr.bf16.mxu0 0
      %2257 = vmatmul.mubr.bf16.gmra.mrb[0].mxu0 %v2129
      %v2258 = vpop.f32.mrb[0].mxu0
      %v2259 = vadd.f32 %v2058, %v2258
      %v2260 = vpop.f32.mrb[0].mxu0
      %v2261 = vpop.f32.mrb[0].mxu0
      %v2262 = vadd.f32 %v2061, %v2261
      %v2263 = vpop.f32.mrb[0].mxu0
      %2264 = vmatprep.mubr.bf16.mxu0 0
      %2265 = vmatmul.mubr.bf16.gmra.mrb[0].mxu0 %v2131
      %v2266 = vpop.f32.mrb[0].mxu0
      %v2267 = vadd.f32 %v2066, %v2266
      %v2268 = vpop.f32.mrb[0].mxu0
      %v2269 = vpop.f32.mrb[0].mxu0
      %v2270 = vadd.f32 %v2069, %v2269
      %v2271 = vpop.f32.mrb[0].mxu0
      %2272 = vmatprep.mubr.bf16.mxu0 0
      %2273 = vmatmul.mubr.bf16.gmra.mrb[0].mxu0 %v2133
      %v2274 = vpop.f32.mrb[0].mxu0
      %v2275 = vadd.f32 %v2074, %v2274
      %v2276 = vpop.f32.mrb[0].mxu0
      %v2277 = vpop.f32.mrb[0].mxu0
      %v2278 = vadd.f32 %v2077, %v2277
      %v2279 = vpop.f32.mrb[0].mxu0
      %2280 = vmatprep.mubr.bf16.mxu0 0
      %2281 = vmatmul.mubr.bf16.gmra.mrb[0].mxu0 %v2135
      %v2282 = vpop.f32.mrb[0].mxu0
      %v2283 = vadd.f32 %v2082, %v2282
      %v2284 = vpop.f32.mrb[0].mxu0
      %v2285 = vpop.f32.mrb[0].mxu0
      %v2286 = vadd.f32 %v2085, %v2285
      %v2287 = vpop.f32.mrb[0].mxu0
      %2288 = vmatprep.mubr.bf16.mxu0 0
      %2289 = vmatmul.mubr.bf16.gmra.mrb[0].mxu0 %v2137
      %v2290 = vpop.f32.mrb[0].mxu0
      %v2291 = vadd.f32 %v2090, %v2290
      %v2292 = vpop.f32.mrb[0].mxu0
      %v2293 = vpop.f32.mrb[0].mxu0
      %v2294 = vadd.f32 %v2093, %v2293
      %v2295 = vpop.f32.mrb[0].mxu0
      %2296 = vmatprep.mubr.bf16.mxu0 0
      %2297 = vmatmul.mubr.bf16.gmra.mrb[0].mxu0 %v2139
      %v2298 = vpop.f32.mrb[0].mxu0
      %v2299 = vadd.f32 %v2098, %v2298
      %v2300 = vpop.f32.mrb[0].mxu0
      %v2301 = vpop.f32.mrb[0].mxu0
      %v2302 = vadd.f32 %v2101, %v2301
      %v2303 = vpop.f32.mrb[0].mxu0
      %2304 = vdwg.mxu0
      %v2305 = vmul.bf16 %v1015, %v1138
      %v2306 = vmul.bf16 %v1022, %v1143
      %v2307 = vmul.bf16 %v1029, %v1148
      %v2308 = vmul.bf16 %v1036, %v1153
      %v2309 = vmul.bf16 %v1043, %v1158
      %v2310 = vmul.bf16 %v1050, %v1163
      %v2311 = vmul.bf16 %v1057, %v1168
      %v2312 = vmul.bf16 %v1064, %v1173
      %v2313 = vmul.bf16 %v1071, %v1178
      %v2314 = vmul.bf16 %v1078, %v1183
      %v2315 = vmul.bf16 %v1085, %v1188
      %v2316 = vmul.bf16 %v1092, %v1193
      %v2317 = vmul.bf16 %v1099, %v1198
      %v2318 = vmul.bf16 %v1106, %v1203
      %v2319 = vmul.bf16 %v1113, %v1208
      %v2320 = vmul.bf16 %v1134, %v1213
      %v2321 = vmul.bf16 %v1015, %v1311
      %v2322 = vmul.bf16 %v1022, %v1313
      %v2323 = vmul.bf16 %v1029, %v1315
      %v2324 = vmul.bf16 %v1036, %v1317
      %v2325 = vmul.bf16 %v1043, %v1319
      %v2326 = vmul.bf16 %v1050, %v1321
      %v2327 = vmul.bf16 %v1057, %v1323
      %v2328 = vmul.bf16 %v1064, %v1325
      %v2329 = vmul.bf16 %v1071, %v1327
      %v2330 = vmul.bf16 %v1078, %v1329
      %v2331 = vmul.bf16 %v1085, %v1331
      %v2332 = vmul.bf16 %v1092, %v1333
      %v2333 = vmul.bf16 %v1099, %v1335
      %v2334 = vmul.bf16 %v1106, %v1337
      %v2335 = vmul.bf16 %v1113, %v1339
      %v2336 = vmul.bf16 %v1134, %v1341
      %v2337 = vmul.bf16 %v1340, 0
      %v2338 = vshrl.u32 %v1134, 16
      %v2340 = vor.u32 %v2338, %v1747
      %v2341 = vsel %vm1376, %v2340, %v1382
      %2342 = vrot.lane.b32.xlu0 %v2341, 4
      %v2343 = vpop.permute.xlu0 %2342
      %v2361 = vrot.slane %v2321, 1
      %v2362 = vrot.slane %v2322, 1
      %v2363 = vsel %vm1558, %v2361, %v2362
      %v2364 = vrot.slane %v2323, 1
      %v2365 = vsel %vm1558, %v2362, %v2364
      %v2366 = vrot.slane %v2324, 1
      %v2367 = vsel %vm1558, %v2364, %v2366
      %v2368 = vrot.slane %v2325, 1
      %v2369 = vsel %vm1558, %v2366, %v2368
      %v2370 = vrot.slane %v2326, 1
      %v2371 = vsel %vm1558, %v2368, %v2370
      %v2372 = vrot.slane %v2327, 1
      %v2373 = vsel %vm1558, %v2370, %v2372
      %v2374 = vrot.slane %v2328, 1
      %v2375 = vsel %vm1558, %v2372, %v2374
      %v2376 = vrot.slane %v2329, 1
      %v2377 = vsel %vm1558, %v2374, %v2376
      %v2378 = vrot.slane %v2330, 1
      %v2379 = vsel %vm1558, %v2376, %v2378
      %v2380 = vrot.slane %v2331, 1
      %v2381 = vsel %vm1558, %v2378, %v2380
      %v2382 = vrot.slane %v2332, 1
      %v2383 = vsel %vm1558, %v2380, %v2382
      %v2384 = vrot.slane %v2333, 1
      %v2385 = vsel %vm1558, %v2382, %v2384
      %v2386 = vrot.slane %v2334, 1
      %v2387 = vsel %vm1558, %v2384, %v2386
      %v2388 = vrot.slane %v2335, 1
      %v2389 = vsel %vm1558, %v2386, %v2388
      %v2390 = vrot.slane %v2336, 1
      %v2391 = vsel %vm1558, %v2388, %v2390
      %v2392 = vrot.slane %v2337, 1
      %v2393 = vsel %vm1558, %v2390, %v2392
      %2394 = vrot.lane.b32.xlu0 %v2363, 8
      %v2395 = vpop.permute.xlu0 %2394
      %2396 = vrot.lane.b32.xlu0 %v2365, 8
      %v2397 = vpop.permute.xlu0 %2396
      %2398 = vrot.lane.b32.xlu0 %v2367, 8
      %v2399 = vpop.permute.xlu0 %2398
      %2400 = vrot.lane.b32.xlu0 %v2369, 8
      %v2401 = vpop.permute.xlu0 %2400
      %2402 = vrot.lane.b32.xlu0 %v2371, 8
      %v2403 = vpop.permute.xlu0 %2402
      %2404 = vrot.lane.b32.xlu0 %v2373, 8
      %v2405 = vpop.permute.xlu0 %2404
      %2406 = vrot.lane.b32.xlu0 %v2375, 8
      %v2407 = vpop.permute.xlu0 %2406
      %2408 = vrot.lane.b32.xlu0 %v2377, 8
      %v2409 = vpop.permute.xlu0 %2408
      %2410 = vrot.lane.b32.xlu0 %v2379, 8
      %v2411 = vpop.permute.xlu0 %2410
      %2412 = vrot.lane.b32.xlu0 %v2381, 8
      %v2413 = vpop.permute.xlu0 %2412
      %2414 = vrot.lane.b32.xlu0 %v2383, 8
      %v2415 = vpop.permute.xlu0 %2414
      %2416 = vrot.lane.b32.xlu0 %v2385, 8
      %v2417 = vpop.permute.xlu0 %2416
      %2418 = vrot.lane.b32.xlu0 %v2387, 8
      %v2419 = vpop.permute.xlu0 %2418
      %2420 = vrot.lane.b32.xlu0 %v2389, 8
      %v2421 = vpop.permute.xlu0 %2420
      %2422 = vrot.lane.b32.xlu0 %v2391, 8
      %v2423 = vpop.permute.xlu0 %2422
      %2424 = vrot.lane.b32.xlu0 %v2393, 8
      %v2425 = vpop.permute.xlu0 %2424
      %v2427 = vsel %vm1624, %v2305, %v1514
      %v2429 = vsel %vm1624, %v2306, %v1516
      %v2431 = vsel %vm1624, %v2307, %v1518
      %v2433 = vsel %vm1624, %v2308, %v1520
      %v2435 = vsel %vm1624, %v2309, %v1522
      %v2437 = vsel %vm1624, %v2310, %v1524
      %v2439 = vsel %vm1624, %v2311, %v1526
      %v2441 = vsel %vm1624, %v2312, %v1528
      %v2443 = vsel %vm1624, %v2313, %v1530
      %v2445 = vsel %vm1624, %v2314, %v1532
      %v2447 = vsel %vm1624, %v2315, %v1534
      %v2449 = vsel %vm1624, %v2316, %v1536
      %v2451 = vsel %vm1624, %v2317, %v1538
      %v2453 = vsel %vm1624, %v2318, %v1540
      %v2455 = vsel %vm1624, %v2319, %v1750
      %v2458 = vsel %vm1624, %v2320, %v2343
      %v2460 = vsel %vm1673, %v2427, %v2395
      %v2462 = vsel %vm1673, %v2429, %v2397
      %v2464 = vsel %vm1673, %v2431, %v2399
      %v2466 = vsel %vm1673, %v2433, %v2401
      %v2468 = vsel %vm1673, %v2435, %v2403
      %v2470 = vsel %vm1673, %v2437, %v2405
      %v2472 = vsel %vm1673, %v2439, %v2407
      %v2474 = vsel %vm1673, %v2441, %v2409
      %v2476 = vsel %vm1673, %v2443, %v2411
      %v2478 = vsel %vm1673, %v2445, %v2413
      %v2480 = vsel %vm1673, %v2447, %v2415
      %v2482 = vsel %vm1673, %v2449, %v2417
      %v2484 = vsel %vm1673, %v2451, %v2419
      %v2486 = vsel %vm1673, %v2453, %v2421
      %v2488 = vsel %vm1673, %v2455, %v2423
      %v2490 = vsel %vm1673, %v2458, %v2425
      %s2491 = scalar_lea.vmem %s273, 16
      %v2492 = vld [vmem:[%s2491] sm:$0xf]
      %v2493 = vld [vmem:[%s2491 + $0x4] sm:$0x3]
      %v2496 = vunpack.c.l.b16 %v2492
      %v2497 = vunpack.c.l.b16 %v2493
      %v2498 = vpack.c.b16 %v2497, %v2496
      %v2499 = vsel %vm1906, %v2460, 0
      %v2501 = vsel %vm1906, %v2462, 0
      %v2503 = vsel %vm1906, %v2464, 0
      %v2505 = vsel %vm1906, %v2466, 0
      %v2507 = vsel %vm1906, %v2468, 0
      %v2509 = vsel %vm1906, %v2470, 0
      %v2511 = vsel %vm1906, %v2472, 0
      %v2513 = vsel %vm1906, %v2474, 0
      %v2515 = vsel %vm1906, %v2476, 0
      %v2517 = vsel %vm1906, %v2478, 0
      %v2519 = vsel %vm1906, %v2480, 0
      %v2521 = vsel %vm1906, %v2482, 0
      %v2523 = vsel %vm1906, %v2484, 0
      %v2525 = vsel %vm1906, %v2486, 0
      %v2527 = vsel %vm1906, %v2488, 0
      %v2529 = vsel %vm1906, %v2490, 0
      %v2532 = vsel %vm1939, %v2498, 0
      %2534 = vmatprep.subr.bf16.mxu0 0
      %2535 = vmatpush1.bf16.msra.mxu0 %v2532
      %2536 = vmatprep.subr.bf16.mxu0 0
      %2537 = vmatpush1.bf16.msra.mxu0 0
      %2538 = vmatprep.subr.bf16.mxu0 0
      %2539 = vmatpush1.bf16.msra.mxu0 0
      %2540 = vmatprep.subr.bf16.mxu0 0
      %2541 = vmatpush1.bf16.msra.mxu0 0
      %2542 = vmatprep.subr.bf16.mxu0 0
      %2543 = vmatpush1.bf16.msra.mxu0 0
      %2544 = vmatprep.subr.bf16.mxu0 0
      %2545 = vmatpush1.bf16.msra.mxu0 0
      %2546 = vmatprep.subr.bf16.mxu0 0
      %2547 = vmatpush1.bf16.msra.mxu0 0
      %2548 = vmatprep.subr.bf16.mxu0 0
      %2549 = vmatpush1.bf16.msra.mxu0 0
      %2550 = vmatprep.subr.bf16.mxu0 0
      %2551 = vmatpush1.bf16.msra.mxu0 0
      %2552 = vmatprep.subr.bf16.mxu0 0
      %2553 = vmatpush1.bf16.msra.mxu0 0
      %2554 = vmatprep.subr.bf16.mxu0 0
      %2555 = vmatpush1.bf16.msra.mxu0 0
      %2556 = vmatprep.subr.bf16.mxu0 0
      %2557 = vmatpush1.bf16.msra.mxu0 0
      %2558 = vmatprep.subr.bf16.mxu0 0
      %2559 = vmatpush1.bf16.msra.mxu0 0
      %2560 = vmatprep.subr.bf16.mxu0 0
      %2561 = vmatpush1.bf16.msra.mxu0 0
      %2562 = vmatprep.subr.bf16.mxu0 0
      %2563 = vmatpush1.bf16.msra.mxu0 0
      %2564 = vmatprep.subr.bf16.mxu0 0
      %2565 = vmatpush1.bf16.msra.mxu0 0
      %2566 = vmatprep.mubr.bf16.mxu0 0
      %2567 = vmatmul.mubr.bf16.gmra.mrb[0].mxu0 %v2499
      %v2568 = vpop.f32.mrb[0].mxu0
      %v2569 = vadd.f32 0.0, %v2568
      %v2570 = vpop.f32.mrb[0].mxu0
      %v2571 = vpop.f32.mrb[0].mxu0
      %v2572 = vadd.f32 0.0, %v2571
      %v2573 = vpop.f32.mrb[0].mxu0
      %2574 = vmatprep.mubr.bf16.mxu0 0
      %2575 = vmatmul.mubr.bf16.gmra.mrb[0].mxu0 %v2501
      %v2576 = vpop.f32.mrb[0].mxu0
      %v2577 = vadd.f32 0.0, %v2576
      %v2578 = vpop.f32.mrb[0].mxu0
      %v2579 = vpop.f32.mrb[0].mxu0
      %v2580 = vadd.f32 0.0, %v2579
      %v2581 = vpop.f32.mrb[0].mxu0
      %2582 = vmatprep.mubr.bf16.mxu0 0
      %2583 = vmatmul.mubr.bf16.gmra.mrb[0].mxu0 %v2503
      %v2584 = vpop.f32.mrb[0].mxu0
      %v2585 = vadd.f32 0.0, %v2584
      %v2586 = vpop.f32.mrb[0].mxu0
      %v2587 = vpop.f32.mrb[0].mxu0
      %v2588 = vadd.f32 0.0, %v2587
      %v2589 = vpop.f32.mrb[0].mxu0
      %2590 = vmatprep.mubr.bf16.mxu0 0
      %2591 = vmatmul.mubr.bf16.gmra.mrb[0].mxu0 %v2505
      %v2592 = vpop.f32.mrb[0].mxu0
      %v2593 = vadd.f32 0.0, %v2592
      %v2594 = vpop.f32.mrb[0].mxu0
      %v2595 = vpop.f32.mrb[0].mxu0
      %v2596 = vadd.f32 0.0, %v2595
      %v2597 = vpop.f32.mrb[0].mxu0
      %2598 = vmatprep.mubr.bf16.mxu0 0
      %2599 = vmatmul.mubr.bf16.gmra.mrb[0].mxu0 %v2507
      %v2600 = vpop.f32.mrb[0].mxu0
      %v2601 = vadd.f32 0.0, %v2600
      %v2602 = vpop.f32.mrb[0].mxu0
      %v2603 = vpop.f32.mrb[0].mxu0
      %v2604 = vadd.f32 0.0, %v2603
      %v2605 = vpop.f32.mrb[0].mxu0
      %2606 = vmatprep.mubr.bf16.mxu0 0
      %2607 = vmatmul.mubr.bf16.gmra.mrb[0].mxu0 %v2509
      %v2608 = vpop.f32.mrb[0].mxu0
      %v2609 = vadd.f32 0.0, %v2608
      %v2610 = vpop.f32.mrb[0].mxu0
      %v2611 = vpop.f32.mrb[0].mxu0
      %v2612 = vadd.f32 0.0, %v2611
      %v2613 = vpop.f32.mrb[0].mxu0
      %2614 = vmatprep.mubr.bf16.mxu0 0
      %2615 = vmatmul.mubr.bf16.gmra.mrb[0].mxu0 %v2511
      %v2616 = vpop.f32.mrb[0].mxu0
      %v2617 = vadd.f32 0.0, %v2616
      %v2618 = vpop.f32.mrb[0].mxu0
      %v2619 = vpop.f32.mrb[0].mxu0
      %v2620 = vadd.f32 0.0, %v2619
      %v2621 = vpop.f32.mrb[0].mxu0
      %2622 = vmatprep.mubr.bf16.mxu0 0
      %2623 = vmatmul.mubr.bf16.gmra.mrb[0].mxu0 %v2513
      %v2624 = vpop.f32.mrb[0].mxu0
      %v2625 = vadd.f32 0.0, %v2624
      %v2626 = vpop.f32.mrb[0].mxu0
      %v2627 = vpop.f32.mrb[0].mxu0
      %v2628 = vadd.f32 0.0, %v2627
      %v2629 = vpop.f32.mrb[0].mxu0
      %2630 = vmatprep.mubr.bf16.mxu0 0
      %2631 = vmatmul.mubr.bf16.gmra.mrb[0].mxu0 %v2515
      %v2632 = vpop.f32.mrb[0].mxu0
      %v2633 = vadd.f32 0.0, %v2632
      %v2634 = vpop.f32.mrb[0].mxu0
      %v2635 = vpop.f32.mrb[0].mxu0
      %v2636 = vadd.f32 0.0, %v2635
      %v2637 = vpop.f32.mrb[0].mxu0
      %2638 = vmatprep.mubr.bf16.mxu0 0
      %2639 = vmatmul.mubr.bf16.gmra.mrb[0].mxu0 %v2517
      %v2640 = vpop.f32.mrb[0].mxu0
      %v2641 = vadd.f32 0.0, %v2640
      %v2642 = vpop.f32.mrb[0].mxu0
      %v2643 = vpop.f32.mrb[0].mxu0
      %v2644 = vadd.f32 0.0, %v2643
      %v2645 = vpop.f32.mrb[0].mxu0
      %2646 = vmatprep.mubr.bf16.mxu0 0
      %2647 = vmatmul.mubr.bf16.gmra.mrb[0].mxu0 %v2519
      %v2648 = vpop.f32.mrb[0].mxu0
      %v2649 = vadd.f32 0.0, %v2648
      %v2650 = vpop.f32.mrb[0].mxu0
      %v2651 = vpop.f32.mrb[0].mxu0
      %v2652 = vadd.f32 0.0, %v2651
      %v2653 = vpop.f32.mrb[0].mxu0
      %2654 = vmatprep.mubr.bf16.mxu0 0
      %2655 = vmatmul.mubr.bf16.gmra.mrb[0].mxu0 %v2521
      %v2656 = vpop.f32.mrb[0].mxu0
      %v2657 = vadd.f32 0.0, %v2656
      %v2658 = vpop.f32.mrb[0].mxu0
      %v2659 = vpop.f32.mrb[0].mxu0
      %v2660 = vadd.f32 0.0, %v2659
      %v2661 = vpop.f32.mrb[0].mxu0
      %2662 = vmatprep.mubr.bf16.mxu0 0
      %2663 = vmatmul.mubr.bf16.gmra.mrb[0].mxu0 %v2523
      %v2664 = vpop.f32.mrb[0].mxu0
      %v2665 = vadd.f32 0.0, %v2664
      %v2666 = vpop.f32.mrb[0].mxu0
      %v2667 = vpop.f32.mrb[0].mxu0
      %v2668 = vadd.f32 0.0, %v2667
      %v2669 = vpop.f32.mrb[0].mxu0
      %2670 = vmatprep.mubr.bf16.mxu0 0
      %2671 = vmatmul.mubr.bf16.gmra.mrb[0].mxu0 %v2525
      %v2672 = vpop.f32.mrb[0].mxu0
      %v2673 = vadd.f32 0.0, %v2672
      %v2674 = vpop.f32.mrb[0].mxu0
      %v2675 = vpop.f32.mrb[0].mxu0
      %v2676 = vadd.f32 0.0, %v2675
      %v2677 = vpop.f32.mrb[0].mxu0
      %2678 = vmatprep.mubr.bf16.mxu0 0
      %2679 = vmatmul.mubr.bf16.gmra.mrb[0].mxu0 %v2527
      %v2680 = vpop.f32.mrb[0].mxu0
      %v2681 = vadd.f32 0.0, %v2680
      %v2682 = vpop.f32.mrb[0].mxu0
      %v2683 = vpop.f32.mrb[0].mxu0
      %v2684 = vadd.f32 0.0, %v2683
      %v2685 = vpop.f32.mrb[0].mxu0
      %2686 = vmatprep.mubr.bf16.mxu0 0
      %2687 = vmatmul.mubr.bf16.gmra.mrb[0].mxu0 %v2529
      %v2688 = vpop.f32.mrb[0].mxu0
      %v2689 = vadd.f32 0.0, %v2688
      %v2690 = vpop.f32.mrb[0].mxu0
      %v2691 = vpop.f32.mrb[0].mxu0
      %v2692 = vadd.f32 0.0, %v2691
      %v2693 = vpop.f32.mrb[0].mxu0
      %2694 = vdwg.mxu0
      %v2695 = vadd.f32 %v2179, %v2569
      %v2696 = vadd.f32 %v2182, %v2572
      %v2697 = vadd.f32 %v2187, %v2577
      %v2698 = vadd.f32 %v2190, %v2580
      %v2699 = vadd.f32 %v2195, %v2585
      %v2700 = vadd.f32 %v2198, %v2588
      %v2701 = vadd.f32 %v2203, %v2593
      %v2702 = vadd.f32 %v2206, %v2596
      %v2703 = vadd.f32 %v2211, %v2601
      %v2704 = vadd.f32 %v2214, %v2604
      %v2705 = vadd.f32 %v2219, %v2609
      %v2706 = vadd.f32 %v2222, %v2612
      %v2707 = vadd.f32 %v2227, %v2617
      %v2708 = vadd.f32 %v2230, %v2620
      %v2709 = vadd.f32 %v2235, %v2625
      %v2710 = vadd.f32 %v2238, %v2628
      %v2711 = vadd.f32 %v2243, %v2633
      %v2712 = vadd.f32 %v2246, %v2636
      %v2713 = vadd.f32 %v2251, %v2641
      %v2714 = vadd.f32 %v2254, %v2644
      %v2715 = vadd.f32 %v2259, %v2649
      %v2716 = vadd.f32 %v2262, %v2652
      %v2717 = vadd.f32 %v2267, %v2657
      %v2718 = vadd.f32 %v2270, %v2660
      %v2719 = vadd.f32 %v2275, %v2665
      %v2720 = vadd.f32 %v2278, %v2668
      %v2721 = vadd.f32 %v2283, %v2673
      %v2722 = vadd.f32 %v2286, %v2676
      %v2723 = vadd.f32 %v2291, %v2681
      %v2724 = vadd.f32 %v2294, %v2684
      %v2725 = vadd.f32 %v2299, %v2689
      %v2726 = vadd.f32 %v2302, %v2692
      %v2727 = vsel %vm1624, %v2695, 0.0
      %v2728 = vsel %vm1624, %v2696, 0.0
      %v2729 = vadd.f32 %v2727, %v2728
      %v2730 = vsel %vm1624, %v2697, 0.0
      %v2731 = vadd.f32 %v2729, %v2730
      %v2732 = vsel %vm1624, %v2698, 0.0
      %v2733 = vadd.f32 %v2731, %v2732
      %v2734 = vsel %vm1624, %v2699, 0.0
      %v2735 = vadd.f32 %v2733, %v2734
      %v2736 = vsel %vm1624, %v2700, 0.0
      %v2737 = vadd.f32 %v2735, %v2736
      %v2738 = vsel %vm1624, %v2701, 0.0
      %v2739 = vadd.f32 %v2737, %v2738
      %v2740 = vsel %vm1624, %v2702, 0.0
      %v2741 = vadd.f32 %v2739, %v2740
      %v2742 = vsel %vm1624, %v2703, 0.0
      %v2743 = vadd.f32 %v2741, %v2742
      %v2744 = vsel %vm1624, %v2704, 0.0
      %v2745 = vadd.f32 %v2743, %v2744
      %v2746 = vsel %vm1624, %v2705, 0.0
      %v2747 = vadd.f32 %v2745, %v2746
      %v2748 = vsel %vm1624, %v2706, 0.0
      %v2749 = vadd.f32 %v2747, %v2748
      %v2750 = vsel %vm1624, %v2707, 0.0
      %v2751 = vadd.f32 %v2749, %v2750
      %v2752 = vsel %vm1624, %v2708, 0.0
      %v2753 = vadd.f32 %v2751, %v2752
      %v2754 = vsel %vm1624, %v2709, 0.0
      %v2755 = vadd.f32 %v2753, %v2754
      %v2756 = vsel %vm1624, %v2710, 0.0
      %v2757 = vadd.f32 %v2755, %v2756
      %v2758 = vsel %vm1624, %v2711, 0.0
      %v2759 = vadd.f32 %v2757, %v2758
      %v2760 = vsel %vm1624, %v2712, 0.0
      %v2761 = vadd.f32 %v2759, %v2760
      %v2762 = vsel %vm1624, %v2713, 0.0
      %v2763 = vadd.f32 %v2761, %v2762
      %v2764 = vsel %vm1624, %v2714, 0.0
      %v2765 = vadd.f32 %v2763, %v2764
      %v2766 = vsel %vm1624, %v2715, 0.0
      %v2767 = vadd.f32 %v2765, %v2766
      %v2768 = vsel %vm1624, %v2716, 0.0
      %v2769 = vadd.f32 %v2767, %v2768
      %v2770 = vsel %vm1624, %v2717, 0.0
      %v2771 = vadd.f32 %v2769, %v2770
      %v2772 = vsel %vm1624, %v2718, 0.0
      %v2773 = vadd.f32 %v2771, %v2772
      %v2774 = vsel %vm1624, %v2719, 0.0
      %v2775 = vadd.f32 %v2773, %v2774
      %v2776 = vsel %vm1624, %v2720, 0.0
      %v2777 = vadd.f32 %v2775, %v2776
      %v2778 = vsel %vm1624, %v2721, 0.0
      %v2779 = vadd.f32 %v2777, %v2778
      %v2780 = vsel %vm1624, %v2722, 0.0
      %v2781 = vadd.f32 %v2779, %v2780
      %v2782 = vsel %vm1624, %v2723, 0.0
      %v2783 = vadd.f32 %v2781, %v2782
      %v2784 = vsel %vm1624, %v2724, 0.0
      %v2785 = vadd.f32 %v2783, %v2784
      %v2786 = vsel %vm1624, %v2725, 0.0
      %v2787 = vadd.f32 %v2785, %v2786
      %v2788 = vsel %vm1624, %v2726, 0.0
      %v2789 = vadd.f32 %v2787, %v2788
      %v2790 = vrot.slane %v2789, 4
      %v2791 = vadd.f32 %v2789, %v2790
      %v2792 = vrot.slane %v2791, 2
      %v2793 = vadd.f32 %v2791, %v2792
      %v2794 = vrot.slane %v2793, 1
      %v2795 = vadd.f32 %v2793, %v2794
      %v2796 = vmul.f32 %v2795, 0.00390625
      %v2797 = vsub.f32 %v2695, %v2796
      %v2798 = vsub.f32 %v2696, %v2796
      %v2799 = vsub.f32 %v2697, %v2796
      %v2800 = vsub.f32 %v2698, %v2796
      %v2801 = vsub.f32 %v2699, %v2796
      %v2802 = vsub.f32 %v2700, %v2796
      %v2803 = vsub.f32 %v2701, %v2796
      %v2804 = vsub.f32 %v2702, %v2796
      %v2805 = vsub.f32 %v2703, %v2796
      %v2806 = vsub.f32 %v2704, %v2796
      %v2807 = vsub.f32 %v2705, %v2796
      %v2808 = vsub.f32 %v2706, %v2796
      %v2809 = vsub.f32 %v2707, %v2796
      %v2810 = vsub.f32 %v2708, %v2796
      %v2811 = vsub.f32 %v2709, %v2796
      %v2812 = vsub.f32 %v2710, %v2796
      %v2813 = vsub.f32 %v2711, %v2796
      %v2814 = vsub.f32 %v2712, %v2796
      %v2815 = vsub.f32 %v2713, %v2796
      %v2816 = vsub.f32 %v2714, %v2796
      %v2817 = vsub.f32 %v2715, %v2796
      %v2818 = vsub.f32 %v2716, %v2796
      %v2819 = vsub.f32 %v2717, %v2796
      %v2820 = vsub.f32 %v2718, %v2796
      %v2821 = vsub.f32 %v2719, %v2796
      %v2822 = vsub.f32 %v2720, %v2796
      %v2823 = vsub.f32 %v2721, %v2796
      %v2824 = vsub.f32 %v2722, %v2796
      %v2825 = vsub.f32 %v2723, %v2796
      %v2826 = vsub.f32 %v2724, %v2796
      %v2827 = vsub.f32 %v2725, %v2796
      %v2828 = vsub.f32 %v2726, %v2796
      %v2829 = vmul.f32 %v2797, %v2797
      %v2830 = vmul.f32 %v2798, %v2798
      %v2831 = vmul.f32 %v2799, %v2799
      %v2832 = vmul.f32 %v2800, %v2800
      %v2833 = vmul.f32 %v2801, %v2801
      %v2834 = vmul.f32 %v2802, %v2802
      %v2835 = vmul.f32 %v2803, %v2803
      %v2836 = vmul.f32 %v2804, %v2804
      %v2837 = vmul.f32 %v2805, %v2805
      %v2838 = vmul.f32 %v2806, %v2806
      %v2839 = vmul.f32 %v2807, %v2807
      %v2840 = vmul.f32 %v2808, %v2808
      %v2841 = vmul.f32 %v2809, %v2809
      %v2842 = vmul.f32 %v2810, %v2810
      %v2843 = vmul.f32 %v2811, %v2811
      %v2844 = vmul.f32 %v2812, %v2812
      %v2845 = vmul.f32 %v2813, %v2813
      %v2846 = vmul.f32 %v2814, %v2814
      %v2847 = vmul.f32 %v2815, %v2815
      %v2848 = vmul.f32 %v2816, %v2816
      %v2849 = vmul.f32 %v2817, %v2817
      %v2850 = vmul.f32 %v2818, %v2818
      %v2851 = vmul.f32 %v2819, %v2819
      %v2852 = vmul.f32 %v2820, %v2820
      %v2853 = vmul.f32 %v2821, %v2821
      %v2854 = vmul.f32 %v2822, %v2822
      %v2855 = vmul.f32 %v2823, %v2823
      %v2856 = vmul.f32 %v2824, %v2824
      %v2857 = vmul.f32 %v2825, %v2825
      %v2858 = vmul.f32 %v2826, %v2826
      %v2859 = vmul.f32 %v2827, %v2827
      %v2860 = vmul.f32 %v2828, %v2828
      %v2861 = vsel %vm1624, %v2829, 0.0
      %v2862 = vsel %vm1624, %v2830, 0.0
      %v2863 = vadd.f32 %v2861, %v2862
      %v2864 = vsel %vm1624, %v2831, 0.0
      %v2865 = vadd.f32 %v2863, %v2864
      %v2866 = vsel %vm1624, %v2832, 0.0
      %v2867 = vadd.f32 %v2865, %v2866
      %v2868 = vsel %vm1624, %v2833, 0.0
      %v2869 = vadd.f32 %v2867, %v2868
      %v2870 = vsel %vm1624, %v2834, 0.0
      %v2871 = vadd.f32 %v2869, %v2870
      %v2872 = vsel %vm1624, %v2835, 0.0
      %v2873 = vadd.f32 %v2871, %v2872
      %v2874 = vsel %vm1624, %v2836, 0.0
      %v2875 = vadd.f32 %v2873, %v2874
      %v2876 = vsel %vm1624, %v2837, 0.0
      %v2877 = vadd.f32 %v2875, %v2876
      %v2878 = vsel %vm1624, %v2838, 0.0
      %v2879 = vadd.f32 %v2877, %v2878
      %v2880 = vsel %vm1624, %v2839, 0.0
      %v2881 = vadd.f32 %v2879, %v2880
      %v2882 = vsel %vm1624, %v2840, 0.0
      %v2883 = vadd.f32 %v2881, %v2882
      %v2884 = vsel %vm1624, %v2841, 0.0
      %v2885 = vadd.f32 %v2883, %v2884
      %v2886 = vsel %vm1624, %v2842, 0.0
      %v2887 = vadd.f32 %v2885, %v2886
      %v2888 = vsel %vm1624, %v2843, 0.0
      %v2889 = vadd.f32 %v2887, %v2888
      %v2890 = vsel %vm1624, %v2844, 0.0
      %v2891 = vadd.f32 %v2889, %v2890
      %v2892 = vsel %vm1624, %v2845, 0.0
      %v2893 = vadd.f32 %v2891, %v2892
      %v2894 = vsel %vm1624, %v2846, 0.0
      %v2895 = vadd.f32 %v2893, %v2894
      %v2896 = vsel %vm1624, %v2847, 0.0
      %v2897 = vadd.f32 %v2895, %v2896
      %v2898 = vsel %vm1624, %v2848, 0.0
      %v2899 = vadd.f32 %v2897, %v2898
      %v2900 = vsel %vm1624, %v2849, 0.0
      %v2901 = vadd.f32 %v2899, %v2900
      %v2902 = vsel %vm1624, %v2850, 0.0
      %v2903 = vadd.f32 %v2901, %v2902
      %v2904 = vsel %vm1624, %v2851, 0.0
      %v2905 = vadd.f32 %v2903, %v2904
      %v2906 = vsel %vm1624, %v2852, 0.0
      %v2907 = vadd.f32 %v2905, %v2906
      %v2908 = vsel %vm1624, %v2853, 0.0
      %v2909 = vadd.f32 %v2907, %v2908
      %v2910 = vsel %vm1624, %v2854, 0.0
      %v2911 = vadd.f32 %v2909, %v2910
      %v2912 = vsel %vm1624, %v2855, 0.0
      %v2913 = vadd.f32 %v2911, %v2912
      %v2914 = vsel %vm1624, %v2856, 0.0
      %v2915 = vadd.f32 %v2913, %v2914
      %v2916 = vsel %vm1624, %v2857, 0.0
      %v2917 = vadd.f32 %v2915, %v2916
      %v2918 = vsel %vm1624, %v2858, 0.0
      %v2919 = vadd.f32 %v2917, %v2918
      %v2920 = vsel %vm1624, %v2859, 0.0
      %v2921 = vadd.f32 %v2919, %v2920
      %v2922 = vsel %vm1624, %v2860, 0.0
      %v2923 = vadd.f32 %v2921, %v2922
      %v2924 = vrot.slane %v2923, 4
      %v2925 = vadd.f32 %v2923, %v2924
      %v2926 = vrot.slane %v2925, 2
      %v2927 = vadd.f32 %v2925, %v2926
      %v2928 = vrot.slane %v2927, 1
      %v2929 = vadd.f32 %v2927, %v2928
      %v2930 = vmul.f32 %v2929, 0.00390625
      %v2931 = vadd.f32 %v2930, 1e-05
      %v2932 = vrsqrt.pop %v2931
      %v2933 = vmul.f32 %v2797, %v2932
      %v2934 = vmul.f32 %v2798, %v2932
      %v2935 = vmul.f32 %v2799, %v2932
      %v2936 = vmul.f32 %v2800, %v2932
      %v2937 = vmul.f32 %v2801, %v2932
      %v2938 = vmul.f32 %v2802, %v2932
      %v2939 = vmul.f32 %v2803, %v2932
      %v2940 = vmul.f32 %v2804, %v2932
      %v2941 = vmul.f32 %v2805, %v2932
      %v2942 = vmul.f32 %v2806, %v2932
      %v2943 = vmul.f32 %v2807, %v2932
      %v2944 = vmul.f32 %v2808, %v2932
      %v2945 = vmul.f32 %v2809, %v2932
      %v2946 = vmul.f32 %v2810, %v2932
      %v2947 = vmul.f32 %v2811, %v2932
      %v2948 = vmul.f32 %v2812, %v2932
      %v2949 = vmul.f32 %v2813, %v2932
      %v2950 = vmul.f32 %v2814, %v2932
      %v2951 = vmul.f32 %v2815, %v2932
      %v2952 = vmul.f32 %v2816, %v2932
      %v2953 = vmul.f32 %v2817, %v2932
      %v2954 = vmul.f32 %v2818, %v2932
      %v2955 = vmul.f32 %v2819, %v2932
      %v2956 = vmul.f32 %v2820, %v2932
      %v2957 = vmul.f32 %v2821, %v2932
      %v2958 = vmul.f32 %v2822, %v2932
      %v2959 = vmul.f32 %v2823, %v2932
      %v2960 = vmul.f32 %v2824, %v2932
      %v2961 = vmul.f32 %v2825, %v2932
      %v2962 = vmul.f32 %v2826, %v2932
      %v2963 = vmul.f32 %v2827, %v2932
      %v2964 = vmul.f32 %v2828, %v2932
      %vm2965 = vcmp.ge.f32.partialorder %v2933, 0.0
      %vm2966 = vcmp.ge.f32.partialorder %v2934, 0.0
      %vm2967 = vcmp.ge.f32.partialorder %v2935, 0.0
      %vm2968 = vcmp.ge.f32.partialorder %v2936, 0.0
      %vm2969 = vcmp.ge.f32.partialorder %v2937, 0.0
      %vm2970 = vcmp.ge.f32.partialorder %v2938, 0.0
      %vm2971 = vcmp.ge.f32.partialorder %v2939, 0.0
      %vm2972 = vcmp.ge.f32.partialorder %v2940, 0.0
      %vm2973 = vcmp.ge.f32.partialorder %v2941, 0.0
      %vm2974 = vcmp.ge.f32.partialorder %v2942, 0.0
      %vm2975 = vcmp.ge.f32.partialorder %v2943, 0.0
      %vm2976 = vcmp.ge.f32.partialorder %v2944, 0.0
      %vm2977 = vcmp.ge.f32.partialorder %v2945, 0.0
      %vm2978 = vcmp.ge.f32.partialorder %v2946, 0.0
      %vm2979 = vcmp.ge.f32.partialorder %v2947, 0.0
      %vm2980 = vcmp.ge.f32.partialorder %v2948, 0.0
      %vm2981 = vcmp.ge.f32.partialorder %v2949, 0.0
      %vm2982 = vcmp.ge.f32.partialorder %v2950, 0.0
      %vm2983 = vcmp.ge.f32.partialorder %v2951, 0.0
      %vm2984 = vcmp.ge.f32.partialorder %v2952, 0.0
      %vm2985 = vcmp.ge.f32.partialorder %v2953, 0.0
      %vm2986 = vcmp.ge.f32.partialorder %v2954, 0.0
      %vm2987 = vcmp.ge.f32.partialorder %v2955, 0.0
      %vm2988 = vcmp.ge.f32.partialorder %v2956, 0.0
      %vm2989 = vcmp.ge.f32.partialorder %v2957, 0.0
      %vm2990 = vcmp.ge.f32.partialorder %v2958, 0.0
      %vm2991 = vcmp.ge.f32.partialorder %v2959, 0.0
      %vm2992 = vcmp.ge.f32.partialorder %v2960, 0.0
      %vm2993 = vcmp.ge.f32.partialorder %v2961, 0.0
      %vm2994 = vcmp.ge.f32.partialorder %v2962, 0.0
      %vm2995 = vcmp.ge.f32.partialorder %v2963, 0.0
      %vm2996 = vcmp.ge.f32.partialorder %v2964, 0.0
      %v2997 = vmul.f32 %v2933, 0.01
      %v2998 = vmul.f32 %v2934, 0.01
      %v2999 = vmul.f32 %v2935, 0.01
      %v3000 = vmul.f32 %v2936, 0.01
      %v3001 = vmul.f32 %v2937, 0.01
      %v3002 = vmul.f32 %v2938, 0.01
      %v3003 = vmul.f32 %v2939, 0.01
      %v3004 = vmul.f32 %v2940, 0.01
      %v3005 = vmul.f32 %v2941, 0.01
      %v3006 = vmul.f32 %v2942, 0.01
      %v3007 = vmul.f32 %v2943, 0.01
      %v3008 = vmul.f32 %v2944, 0.01
      %v3009 = vmul.f32 %v2945, 0.01
      %v3010 = vmul.f32 %v2946, 0.01
      %v3011 = vmul.f32 %v2947, 0.01
      %v3012 = vmul.f32 %v2948, 0.01
      %v3013 = vmul.f32 %v2949, 0.01
      %v3014 = vmul.f32 %v2950, 0.01
      %v3015 = vmul.f32 %v2951, 0.01
      %v3016 = vmul.f32 %v2952, 0.01
      %v3017 = vmul.f32 %v2953, 0.01
      %v3018 = vmul.f32 %v2954, 0.01
      %v3019 = vmul.f32 %v2955, 0.01
      %v3020 = vmul.f32 %v2956, 0.01
      %v3021 = vmul.f32 %v2957, 0.01
      %v3022 = vmul.f32 %v2958, 0.01
      %v3023 = vmul.f32 %v2959, 0.01
      %v3024 = vmul.f32 %v2960, 0.01
      %v3025 = vmul.f32 %v2961, 0.01
      %v3026 = vmul.f32 %v2962, 0.01
      %v3027 = vmul.f32 %v2963, 0.01
      %v3028 = vmul.f32 %v2964, 0.01
      %v3029 = vsel %vm2965, %v2933, %v2997
      %v3030 = vsel %vm2966, %v2934, %v2998
      %v3031 = vsel %vm2967, %v2935, %v2999
      %v3032 = vsel %vm2968, %v2936, %v3000
      %v3033 = vsel %vm2969, %v2937, %v3001
      %v3034 = vsel %vm2970, %v2938, %v3002
      %v3035 = vsel %vm2971, %v2939, %v3003
      %v3036 = vsel %vm2972, %v2940, %v3004
      %v3037 = vsel %vm2973, %v2941, %v3005
      %v3038 = vsel %vm2974, %v2942, %v3006
      %v3039 = vsel %vm2975, %v2943, %v3007
      %v3040 = vsel %vm2976, %v2944, %v3008
      %v3041 = vsel %vm2977, %v2945, %v3009
      %v3042 = vsel %vm2978, %v2946, %v3010
      %v3043 = vsel %vm2979, %v2947, %v3011
      %v3044 = vsel %vm2980, %v2948, %v3012
      %v3045 = vsel %vm2981, %v2949, %v3013
      %v3046 = vsel %vm2982, %v2950, %v3014
      %v3047 = vsel %vm2983, %v2951, %v3015
      %v3048 = vsel %vm2984, %v2952, %v3016
      %v3049 = vsel %vm2985, %v2953, %v3017
      %v3050 = vsel %vm2986, %v2954, %v3018
      %v3051 = vsel %vm2987, %v2955, %v3019
      %v3052 = vsel %vm2988, %v2956, %v3020
      %v3053 = vsel %vm2989, %v2957, %v3021
      %v3054 = vsel %vm2990, %v2958, %v3022
      %v3055 = vsel %vm2991, %v2959, %v3023
      %v3056 = vsel %vm2992, %v2960, %v3024
      %v3057 = vsel %vm2993, %v2961, %v3025
      %v3058 = vsel %vm2994, %v2962, %v3026
      %v3059 = vsel %vm2995, %v2963, %v3027
      %v3060 = vsel %vm2996, %v2964, %v3028
      %3061 = vst.msk [vmem:[%s281] sm:$0xff] %vm1624, %v3029
      %3062 = vst.msk [vmem:[%s281 + $0x8] sm:$0xff] %vm1624, %v3030
      %3063 = vst.msk [vmem:[%s281 + $0x10] sm:$0xff] %vm1624, %v3031
      %3064 = vst.msk [vmem:[%s281 + $0x18] sm:$0xff] %vm1624, %v3032
      %3065 = vst.msk [vmem:[%s281 + $0x20] sm:$0xff] %vm1624, %v3033
      %3066 = vst.msk [vmem:[%s281 + $0x28] sm:$0xff] %vm1624, %v3034
      %3067 = vst.msk [vmem:[%s281 + $0x30] sm:$0xff] %vm1624, %v3035
      %3068 = vst.msk [vmem:[%s281 + $0x38] sm:$0xff] %vm1624, %v3036
      %3069 = vst.msk [vmem:[%s281 + $0x40] sm:$0xff] %vm1624, %v3037
      %3070 = vst.msk [vmem:[%s281 + $0x48] sm:$0xff] %vm1624, %v3038
      %3071 = vst.msk [vmem:[%s281 + $0x50] sm:$0xff] %vm1624, %v3039
      %3072 = vst.msk [vmem:[%s281 + $0x58] sm:$0xff] %vm1624, %v3040
      %3073 = vst.msk [vmem:[%s281 + $0x60] sm:$0xff] %vm1624, %v3041
      %3074 = vst.msk [vmem:[%s281 + $0x68] sm:$0xff] %vm1624, %v3042
      %3075 = vst.msk [vmem:[%s281 + $0x70] sm:$0xff] %vm1624, %v3043
      %3076 = vst.msk [vmem:[%s281 + $0x78] sm:$0xff] %vm1624, %v3044
      %3077 = vst.msk [vmem:[%s281 + $0x80] sm:$0xff] %vm1624, %v3045
      %3078 = vst.msk [vmem:[%s281 + $0x88] sm:$0xff] %vm1624, %v3046
      %3079 = vst.msk [vmem:[%s281 + $0x90] sm:$0xff] %vm1624, %v3047
      %3080 = vst.msk [vmem:[%s281 + $0x98] sm:$0xff] %vm1624, %v3048
      %3081 = vst.msk [vmem:[%s281 + $0xa0] sm:$0xff] %vm1624, %v3049
      %3082 = vst.msk [vmem:[%s281 + $0xa8] sm:$0xff] %vm1624, %v3050
      %3083 = vst.msk [vmem:[%s281 + $0xb0] sm:$0xff] %vm1624, %v3051
      %3084 = vst.msk [vmem:[%s281 + $0xb8] sm:$0xff] %vm1624, %v3052
      %3085 = vst.msk [vmem:[%s281 + $0xc0] sm:$0xff] %vm1624, %v3053
      %3086 = vst.msk [vmem:[%s281 + $0xc8] sm:$0xff] %vm1624, %v3054
      %3087 = vst.msk [vmem:[%s281 + $0xd0] sm:$0xff] %vm1624, %v3055
      %3088 = vst.msk [vmem:[%s281 + $0xd8] sm:$0xff] %vm1624, %v3056
      %3089 = vst.msk [vmem:[%s281 + $0xe0] sm:$0xff] %vm1624, %v3057
      %3090 = vst.msk [vmem:[%s281 + $0xe8] sm:$0xff] %vm1624, %v3058
      %3091 = vst.msk [vmem:[%s281 + $0xf0] sm:$0xff] %vm1624, %v3059
      %3092 = vst.msk [vmem:[%s281 + $0xf8] sm:$0xff] %vm1624, %v3060
      %p3093 = scmp.lt.s32.totalorder %s20, 1
      %s3094 = scalar_select %p3093, %s20, 1
      %p3095 = scmp.lt.s32.totalorder %s21, 0
      %s3096 = scalar_select %p3095, %s21, 0
      %s3097 = smul.addr %s3094, 32
      %s3098 = sadd.s32 %s3096, %s3097
      %s3099 = smul.addr %s3098, 8
      %s3100 = scalar_lea.vmem %s5, %s3099
      // Predicated region
      $region41: #{conv_u_forward.5} parent=39 // pred_check
        %p3101 = pneg %p168
      $region42: #{conv_u_forward.5} parent=39 // pred_check_branch
        %3103 = sbr.rel (%p3101) target = $region44
      $region43: #{conv_u_forward.5} parent=39 // pred_region
        _
      $region44: #{conv_u_forward.5} parent=39 // pred_fallthru
        _
    $region40: #{conv_u_forward.5} parent=5 // pred_fallthru
      _
    %p3104 = scmp.le.s32.totalorder 2, %s11
    // Predicated region
    $region45: #{conv_u_forward.5} parent=5 // pred_check
      %p3105 = pneg %p3104
    $region46: #{conv_u_forward.5} parent=5 // pred_check_branch
      %3107 = sbr.rel (%p3105) target = $region48
    $region47: #{conv_u_forward.5} parent=5 // pred_region
      %s3108 = ssub.s32 %s11, 2
      // Predicated region
      $region49: #{conv_u_forward.5} parent=47 // pred_check
        %p3109 = pneg %p174
      $region50: #{conv_u_forward.5} parent=47 // pred_check_branch
        %3111 = sbr.rel (%p3109) target = $region52
      $region51: #{conv_u_forward.5} parent=47 // pred_region
        %p3112 = scmp.lt.s32.totalorder %s22, 1
        %s3113 = scalar_select %p3112, %s22, 1
        %p3114 = scmp.lt.s32.totalorder %s23, 0
        %s3115 = scalar_select %p3114, %s23, 0
        %s3116 = smul.addr %s3113, 32
        %s3117 = sadd.s32 %s3115, %s3116
        %s3118 = smul.addr %s3117, 8
        %s3119 = scalar_lea.vmem %s5, %s3118
      $region52: #{conv_u_forward.5} parent=47 // pred_fallthru
        _
    $region48: #{conv_u_forward.5} parent=5 // pred_fallthru
      _
  $region6: #{conv_u_forward.5} parent=0 // loop_footer
    %s15 = sadd.s32 1, %s11
  $region7: #{conv_u_forward.5} parent=0 // loop_footer_branch
    %10 = sbr.rel target = $region3
  $region8: #{conv_u_forward.5} parent=0 // loop_exit
    _

</llo_original>
